<compile_context>
chip_gen: v7x
topology: tpu7x:2x2x1
jax: 0.10.0
libtpu: 0.0.40
codegen_flags: <defaults>
</compile_context>

<pallas_src>
import functools

import jax
import jax.numpy as jnp
from jax import lax
from jax.experimental import pallas as pl
from jax.experimental.pallas import tpu as pltpu


def _round_up(x, m):
    return ((x + m - 1) // m) * m


def _vq_kernel(m_total,
               x_ref, et_ref, e_ref, e2_ref,
               dist_ref, enc_ref, q_ref, idx_ref, hist_ref, sse_ref):
    # x_ref : (tm, D)  flattened input rows (zero-padded past m_total)
    # et_ref: (D, K)   codebook transposed (hoisted, constant across grid)
    # e_ref : (K, D)   codebook
    # e2_ref: (1, K)   ||e||^2 (hoisted)
    i = pl.program_id(0)
    tm = x_ref.shape[0]

    x = x_ref[...].astype(jnp.float32)                      # (tm, D)
    et = et_ref[...]                                        # (D, K)
    e = e_ref[...]                                          # (K, D)
    e2 = e2_ref[...]                                        # (1, K)

    # squared distances: ||x||^2 + ||e||^2 - 2 x E^T      -> (tm, K)
    x2 = jnp.sum(x * x, axis=1, keepdims=True)              # (tm, 1)
    xe = jnp.dot(x, et, preferred_element_type=jnp.float32,
                 precision=lax.Precision.HIGHEST)           # (tm, K)
    dist = x2 + e2 - 2.0 * xe                               # (tm, K)

    # nearest code + one-hot encodings (exact K, no padded codes)
    idx = jnp.argmin(dist, axis=1).astype(jnp.int32)        # (tm,)
    iota_k = lax.broadcasted_iota(jnp.int32, dist.shape, 1)
    one_hot = (iota_k == idx[:, None]).astype(jnp.float32)  # (tm, K)

    # quantized rows = one_hot @ E                          -> (tm, D)
    quant = jnp.dot(one_hot, e, preferred_element_type=jnp.float32,
                    precision=lax.Precision.HIGHEST)

    # validity mask for rows past the true M (zero-padded rows)
    row_id = i * tm + lax.broadcasted_iota(jnp.int32, (tm, 1), 0)
    valid = (row_id < m_total).astype(jnp.float32)          # (tm, 1)

    # in-kernel reductions: code histogram + sum of squared error
    hist = jnp.sum(one_hot * valid, axis=0, keepdims=True)  # (1, K)
    diff = (quant - x) * valid
    sse = jnp.sum(diff * diff)                              # scalar

    dist_ref[...] = dist
    enc_ref[...] = one_hot
    q_ref[...] = quant.astype(q_ref.dtype)
    idx_ref[...] = idx[None, :]                             # (1, tm) lane-dense
    hist_ref[...] = hist
    sse_ref[...] = jnp.full((1, 128), sse, dtype=jnp.float32)


def _vmem_capacity_bytes():
    """Chip-aware VMEM capacity (64 MiB/TC on v7x, 128 MiB on v5e/v6e)."""
    try:
        cap = int(getattr(pltpu.get_tpu_info(), "vmem_capacity_bytes", 0))
        if cap > 0:
            return cap
    except Exception:
        pass
    return 64 * 1024 * 1024  # conservative fallback (v7x-sized)


def vq_quantize_pallas(flat_x, embedding, *, tm_request=2048):
    """VQ hot path on (M, D) rows against codebook (K, D)."""
    M, D = flat_x.shape
    K, D2 = embedding.shape
    assert D == D2
    f32 = jnp.float32

    # ---- chip-aware tile sizing --------------------------------------
    cap = _vmem_capacity_bytes()
    budget = cap // 2
    vmem_limit = min((cap * 3) // 4, 112 * 1024 * 1024)

    rD = _round_up(D, 128)   # lane-padded widths of D-wide blocks
    rK = _round_up(K, 128)   # lane-padded widths of K-wide blocks
    # double-buffered x / dist / enc / quant blocks + in-kernel
    # intermediates (dist, one_hot, xe, quant), counted lane-padded.
    per_row_bytes = 4 * (2 * rD + 2 * rK + 2 * rK + 2 * rD + 3 * rK + rD + 16)
    tm_cap = max(128, (budget // per_row_bytes) // 128 * 128)

    m_rounded = _round_up(M, 128)
    tm = min(tm_request, tm_cap, m_rounded)
    if m_rounded >= 256:
        # keep at least 2 grid tiles so v7x's second TensorCore gets work
        tm = min(tm, _round_up(m_rounded // 2, 128))
    tm = max(128, (tm // 128) * 128)

    Mp = _round_up(M, tm)
    num_tiles = Mp // tm

    x_pad = flat_x
    if Mp != M:
        x_pad = jnp.pad(flat_x, ((0, Mp - M), (0, 0)))

    # Hoisted codebook prep (done once, outside the grid loop).
    e32 = embedding.astype(f32)                 # (K, D)
    e_t = e32.T                                 # (D, K)
    e2 = jnp.sum(e32 * e32, axis=1)[None, :]    # (1, K)

    kernel = functools.partial(_vq_kernel, M)

    out_shapes = (
        jax.ShapeDtypeStruct((Mp, K), f32),                  # distances (exact K)
        jax.ShapeDtypeStruct((Mp, K), f32),                  # one-hot encodings
        jax.ShapeDtypeStruct((Mp, D), flat_x.dtype),         # quantized rows
        jax.ShapeDtypeStruct((num_tiles, tm), jnp.int32),    # indices (lane-dense)
        jax.ShapeDtypeStruct((num_tiles, K), f32),           # per-tile histogram
        jax.ShapeDtypeStruct((num_tiles, 128), f32),         # per-tile SSE
    )

    outs = pl.pallas_call(
        kernel,
        out_shape=out_shapes,
        grid_spec=pltpu.PrefetchScalarGridSpec(
            num_scalar_prefetch=0,
            grid=(num_tiles,),
            in_specs=[
                pl.BlockSpec((tm, D), lambda i: (i, 0)),
                pl.BlockSpec((D, K), lambda i: (0, 0)),
                pl.BlockSpec((K, D), lambda i: (0, 0)),
                pl.BlockSpec((1, K), lambda i: (0, 0)),
            ],
            out_specs=[
                pl.BlockSpec((tm, K), lambda i: (i, 0)),
                pl.BlockSpec((tm, K), lambda i: (i, 0)),
                pl.BlockSpec((tm, D), lambda i: (i, 0)),
                pl.BlockSpec((1, tm), lambda i: (i, 0)),
                pl.BlockSpec((1, K), lambda i: (i, 0)),
                pl.BlockSpec((1, 128), lambda i: (i, 0)),
            ],
        ),
        compiler_params=pltpu.CompilerParams(
            dimension_semantics=("parallel",),
            vmem_limit_bytes=vmem_limit,
        ),
    )(x_pad, e_t, e32, e2)
    return outs


@functools.partial(jax.jit, static_argnames=("commitment_cost",))
def vq_forward(inputs_nchw, embedding, commitment_cost=0.25):
    """Mirror of VQ.forward.  inputs_nchw: (N, C, H, W), C == embedding_dim."""
    N, C, H, W = inputs_nchw.shape
    K, D = embedding.shape
    assert C == D

    # NCHW -> NHWC -> (M, D)
    inputs_nhwc = jnp.transpose(inputs_nchw, (0, 2, 3, 1))
    flat_input = inputs_nhwc.reshape(-1, D)
    M = flat_input.shape[0]

    dist_p, enc_p, quant_p, idx_p, hist_p, sse_p = vq_quantize_pallas(
        flat_input, embedding)

    # Row padding is the only padding left; slice only if it actually exists.
    if dist_p.shape[0] != M:
        distances = dist_p[:M]
        min_encodings = enc_p[:M]
        quant_flat = quant_p[:M]
    else:
        distances = dist_p
        min_encodings = enc_p
        quant_flat = quant_p

    min_idx = idx_p.reshape(-1)
    if min_idx.shape[0] != M:
        min_idx = min_idx[:M]
    min_idx = min_idx[:, None]  # (M, 1) int32
    # TODO(synk): indices are int32 (torch.argmin returns int64); values match.

    quantized_nhwc = quant_flat.reshape(inputs_nhwc.shape)

    # MSE from in-kernel partial sums (padded rows already masked out).
    mse = jnp.sum(sse_p[:, 0]) / (M * D)
    # Forward values of both MSE losses are identical (detach affects grads only).
    e_latent_loss = mse
    q_latent_loss = mse
    loss = q_latent_loss + commitment_cost * e_latent_loss
    # TODO(synk): no custom VJP; gradients through the Pallas call (and the
    # detach semantics of e/q latent losses) are not implemented.

    # Straight-through estimator: forward value is just `quantized`.
    quantized_st = inputs_nhwc + lax.stop_gradient(quantized_nhwc - inputs_nhwc)

    # Perplexity from the in-kernel code histogram.
    avg_probs = jnp.sum(hist_p, axis=0) / M
    perplexity = jnp.exp(-jnp.sum(avg_probs * jnp.log(avg_probs + 1e-10)))

    quantized_nchw = jnp.transpose(quantized_st, (0, 3, 1, 2))
    return loss, quantized_nchw, perplexity, min_encodings, min_idx, distances


def _reference_forward(inputs_nchw, embedding, commitment_cost=0.25):
    """Pure-JAX mirror of the PyTorch module (f32, highest matmul precision)."""
    N, C, H, W = inputs_nchw.shape
    K, D = embedding.shape
    inputs_nhwc = jnp.transpose(inputs_nchw, (0, 2, 3, 1))
    flat = inputs_nhwc.reshape(-1, D).astype(jnp.float32)
    e = embedding.astype(jnp.float32)
    distances = (jnp.sum(flat ** 2, axis=1, keepdims=True)
                 + jnp.sum(e ** 2, axis=1)
                 - 2.0 * jnp.dot(flat, e.T, precision=lax.Precision.HIGHEST))
    idx = jnp.argmin(distances, axis=1)
    enc = jax.nn.one_hot(idx, K, dtype=jnp.float32)
    quant = jnp.dot(enc, e, precision=lax.Precision.HIGHEST)
    quant_nhwc = quant.reshape(inputs_nhwc.shape)
    mse = jnp.mean((quant_nhwc - inputs_nhwc) ** 2)
    loss = mse + commitment_cost * mse
    avg_probs = jnp.mean(enc, axis=0)
    perplexity = jnp.exp(-jnp.sum(avg_probs * jnp.log(avg_probs + 1e-10)))
    quant_nchw = jnp.transpose(quant_nhwc, (0, 3, 1, 2))
    return loss, quant_nchw, perplexity, enc, idx[:, None], distances


if __name__ == "__main__":
    num_embeddings = 16
    embedding_dim = 8
    commitment_cost = 0.25
    N, H, W = 2, 8, 8  # M = N*H*W = 128 rows

    key = jax.random.PRNGKey(0)
    k_emb, k_x = jax.random.split(key)

    # nn.Embedding weight init: uniform(-1/num_embeddings, 1/num_embeddings)
    embedding = jax.random.uniform(
        k_emb, (num_embeddings, embedding_dim), dtype=jnp.float32,
        minval=-1.0 / num_embeddings, maxval=1.0 / num_embeddings)

    x = jax.random.normal(k_x, (N, embedding_dim, H, W), dtype=jnp.float32)

    outs = vq_forward(x, embedding, commitment_cost=commitment_cost)
    outs = jax.block_until_ready(outs)
    loss, quantized, perplexity, min_encodings, min_idx, distances = outs

    # Shape checks.
    assert quantized.shape == x.shape
    assert min_encodings.shape == (N * H * W, num_embeddings)
    assert min_idx.shape == (N * H * W, 1)
    assert distances.shape == (N * H * W, num_embeddings)

    # Value checks vs. a pure-JAX reference.
    r_loss, r_quant, r_perp, r_enc, r_idx, r_dist = _reference_forward(
        x, embedding, commitment_cost)
    assert jnp.array_equal(min_idx.astype(jnp.int32), r_idx.astype(jnp.int32))
    assert jnp.allclose(min_encodings, r_enc, atol=1e-5)
    assert jnp.allclose(quantized, r_quant, rtol=1e-3, atol=1e-4)
    assert jnp.allclose(distances, r_dist, rtol=2e-2, atol=2e-3)
    assert jnp.allclose(loss, r_loss, rtol=2e-2, atol=2e-4)
    assert jnp.allclose(perplexity, r_perp, rtol=1e-3, atol=1e-3)

    print("KERNEL_OK")
</pallas_src>

<mosaic_0001>
module attributes {stable_mosaic.version = 11 : i64} {
  func.func @_vq_kernel(%arg0: i32, %arg1: memref<128x8xf32, #tpu.memory_space<vmem>>, %arg2: memref<8x16xf32, #tpu.memory_space<vmem>>, %arg3: memref<16x8xf32, #tpu.memory_space<vmem>>, %arg4: memref<1x16xf32, #tpu.memory_space<vmem>>, %arg5: memref<128x16xf32, #tpu.memory_space<vmem>>, %arg6: memref<128x16xf32, #tpu.memory_space<vmem>>, %arg7: memref<128x8xf32, #tpu.memory_space<vmem>>, %arg8: memref<1x128xi32, #tpu.memory_space<vmem>>, %arg9: memref<1x16xf32, #tpu.memory_space<vmem>>, %arg10: memref<1x128xf32, #tpu.memory_space<vmem>>) attributes {dimension_semantics = [#tpu.dimension_semantics<parallel>], iteration_bounds = array<i64: 1>, scalar_prefetch = 0 : i64, scratch_operands = 0 : i64, tpu.core_type = #tpu.core_type<tc>, window_params = [{transform_indices = @transform_0, window_bounds = array<i64: 128, 8>}, {pipeline_mode = #tpu.pipeline_mode<synchronous>, transform_indices = @transform_1, window_bounds = array<i64: 8, 16>}, {pipeline_mode = #tpu.pipeline_mode<synchronous>, transform_indices = @transform_2, window_bounds = array<i64: 16, 8>}, {pipeline_mode = #tpu.pipeline_mode<synchronous>, transform_indices = @transform_3, window_bounds = array<i64: 1, 16>}, {transform_indices = @transform_4, window_bounds = array<i64: 128, 16>}, {transform_indices = @transform_5, window_bounds = array<i64: 128, 16>}, {transform_indices = @transform_6, window_bounds = array<i64: 128, 8>}, {transform_indices = @transform_7, window_bounds = array<i64: 1, 128>}, {transform_indices = @transform_8, window_bounds = array<i64: 1, 16>}, {transform_indices = @transform_9, window_bounds = array<i64: 1, 128>}]} {
    %c0 = arith.constant 0 : index
    %c0_0 = arith.constant 0 : index
    %0 = vector.load %arg1[%c0, %c0_0] : memref<128x8xf32, #tpu.memory_space<vmem>>, vector<128x8xf32>
    %c0_1 = arith.constant 0 : index
    %c0_2 = arith.constant 0 : index
    %1 = vector.load %arg2[%c0_1, %c0_2] : memref<8x16xf32, #tpu.memory_space<vmem>>, vector<8x16xf32>
    %c0_3 = arith.constant 0 : index
    %c0_4 = arith.constant 0 : index
    %2 = vector.load %arg3[%c0_3, %c0_4] : memref<16x8xf32, #tpu.memory_space<vmem>>, vector<16x8xf32>
    %c0_5 = arith.constant 0 : index
    %c0_6 = arith.constant 0 : index
    %3 = vector.load %arg4[%c0_5, %c0_6] : memref<1x16xf32, #tpu.memory_space<vmem>>, vector<1x16xf32>
    %4 = arith.mulf %0, %0 : vector<128x8xf32>
    %cst = arith.constant dense<0.000000e+00> : vector<128xf32>
    %5 = vector.multi_reduction <add>, %4, %cst [1] : vector<128x8xf32> to vector<128xf32>
    %6 = vector.shape_cast %5 : vector<128xf32> to vector<128x1xf32>
    %cst_7 = arith.constant dense<0.000000e+00> : vector<128x16xf32>
    %7 = tpu.matmul %0, %1, %cst_7 {dimension_numbers = #tpu.dot_dimension_numbers<[1], [0], [0], [1], [0, 0, 1, 1], [], []>, precision = #tpu.contract_precision<fp32>} : vector<128x8xf32>, vector<8x16xf32>, vector<128x16xf32> -> vector<128x16xf32>
    %8 = vector.broadcast %6 : vector<128x1xf32> to vector<128x16xf32>
    %9 = vector.broadcast %3 : vector<1x16xf32> to vector<128x16xf32>
    %10 = arith.addf %8, %9 : vector<128x16xf32>
    %cst_8 = arith.constant 2.000000e+00 : f32
    %11 = vector.broadcast %cst_8 : f32 to vector<128x16xf32>
    %12 = arith.mulf %11, %7 : vector<128x16xf32>
    %13 = arith.subf %10, %12 : vector<128x16xf32>
    %14 = tpu.reduce_index %13 {axis = 1 : i32, kind = #tpu.reduction_kind<arg_min>} : vector<128x16xf32> -> vector<128xi32>
    %15 = tpu.iota {dimensions = array<i32: 1>} : vector<128x16xi32>
    %16 = vector.shape_cast %14 : vector<128xi32> to vector<128x1xi32>
    %17 = vector.broadcast %16 : vector<128x1xi32> to vector<128x16xi32>
    %18 = arith.cmpi eq, %15, %17 : vector<128x16xi32>
    %19 = arith.extui %18 : vector<128x16xi1> to vector<128x16xi32>
    %20 = arith.sitofp %19 : vector<128x16xi32> to vector<128x16xf32>
    %cst_9 = arith.constant dense<0.000000e+00> : vector<128x8xf32>
    %21 = tpu.matmul %20, %2, %cst_9 {dimension_numbers = #tpu.dot_dimension_numbers<[1], [0], [0], [1], [0, 0, 1, 1], [], []>, precision = #tpu.contract_precision<fp32>} : vector<128x16xf32>, vector<16x8xf32>, vector<128x8xf32> -> vector<128x8xf32>
    %c128_i32 = arith.constant 128 : i32
    %22 = arith.muli %arg0, %c128_i32 : i32
    %23 = tpu.iota {dimensions = array<i32: 0>} : vector<128x1xi32>
    %24 = vector.broadcast %22 : i32 to vector<128x1xi32>
    %25 = arith.addi %24, %23 : vector<128x1xi32>
    %c128_i32_10 = arith.constant 128 : i32
    %26 = vector.broadcast %c128_i32_10 : i32 to vector<128x1xi32>
    %27 = arith.cmpi slt, %25, %26 : vector<128x1xi32>
    %28 = arith.extui %27 : vector<128x1xi1> to vector<128x1xi32>
    %29 = arith.sitofp %28 : vector<128x1xi32> to vector<128x1xf32>
    %30 = vector.broadcast %29 : vector<128x1xf32> to vector<128x16xf32>
    %31 = arith.mulf %20, %30 : vector<128x16xf32>
    %cst_11 = arith.constant dense<0.000000e+00> : vector<16xf32>
    %32 = vector.multi_reduction <add>, %31, %cst_11 [0] : vector<128x16xf32> to vector<16xf32>
    %33 = vector.shape_cast %32 : vector<16xf32> to vector<1x16xf32>
    %34 = arith.subf %21, %0 : vector<128x8xf32>
    %35 = vector.broadcast %29 : vector<128x1xf32> to vector<128x8xf32>
    %36 = arith.mulf %34, %35 : vector<128x8xf32>
    %37 = arith.mulf %36, %36 : vector<128x8xf32>
    %38 = vector.shape_cast %37 : vector<128x8xf32> to vector<1x128x8xf32>
    %cst_12 = arith.constant dense<0.000000e+00> : vector<1xf32>
    %39 = vector.multi_reduction <add>, %38, %cst_12 [1, 2] : vector<1x128x8xf32> to vector<1xf32>
    %40 = vector.shape_cast %39 : vector<1xf32> to vector<1x1x1xf32>
    %41 = vector.extract %40[0, 0, 0] : f32 from vector<1x1x1xf32>
    %c0_13 = arith.constant 0 : index
    %c0_14 = arith.constant 0 : index
    %42 = vector.load %arg5[%c0_13, %c0_14] : memref<128x16xf32, #tpu.memory_space<vmem>>, vector<128x16xf32>
    tpu.vector_store %arg5[%c0_13, %c0_14], %13 {strides = array<i32>} : memref<128x16xf32, #tpu.memory_space<vmem>>, vector<128x16xf32>,
    %c0_15 = arith.constant 0 : index
    %c0_16 = arith.constant 0 : index
    %43 = vector.load %arg6[%c0_15, %c0_16] : memref<128x16xf32, #tpu.memory_space<vmem>>, vector<128x16xf32>
    tpu.vector_store %arg6[%c0_15, %c0_16], %20 {strides = array<i32>} : memref<128x16xf32, #tpu.memory_space<vmem>>, vector<128x16xf32>,
    %c0_17 = arith.constant 0 : index
    %c0_18 = arith.constant 0 : index
    %44 = vector.load %arg7[%c0_17, %c0_18] : memref<128x8xf32, #tpu.memory_space<vmem>>, vector<128x8xf32>
    tpu.vector_store %arg7[%c0_17, %c0_18], %21 {strides = array<i32>} : memref<128x8xf32, #tpu.memory_space<vmem>>, vector<128x8xf32>,
    %45 = vector.shape_cast %14 : vector<128xi32> to vector<1x128xi32>
    %c0_19 = arith.constant 0 : index
    %c0_20 = arith.constant 0 : index
    %46 = vector.load %arg8[%c0_19, %c0_20] : memref<1x128xi32, #tpu.memory_space<vmem>>, vector<1x128xi32>
    tpu.vector_store %arg8[%c0_19, %c0_20], %45 {strides = array<i32>} : memref<1x128xi32, #tpu.memory_space<vmem>>, vector<1x128xi32>,
    %c0_21 = arith.constant 0 : index
    %c0_22 = arith.constant 0 : index
    %47 = vector.load %arg9[%c0_21, %c0_22] : memref<1x16xf32, #tpu.memory_space<vmem>>, vector<1x16xf32>
    tpu.vector_store %arg9[%c0_21, %c0_22], %33 {strides = array<i32>} : memref<1x16xf32, #tpu.memory_space<vmem>>, vector<1x16xf32>,
    %48 = vector.broadcast %41 : f32 to vector<1x128xf32>
    %c0_23 = arith.constant 0 : index
    %c0_24 = arith.constant 0 : index
    %49 = vector.load %arg10[%c0_23, %c0_24] : memref<1x128xf32, #tpu.memory_space<vmem>>, vector<1x128xf32>
    tpu.vector_store %arg10[%c0_23, %c0_24], %48 {strides = array<i32>} : memref<1x128xf32, #tpu.memory_space<vmem>>, vector<1x128xf32>,
    return
  }
  func.func @transform_0(%arg0: i32) -> (i32, i32) {
    %c0_i32 = arith.constant 0 : i32
    %c0_i32_0 = arith.constant 0 : i32
    return %arg0, %c0_i32 : i32, i32
  }
  func.func @transform_1(%arg0: i32) -> (i32, i32) {
    %c0_i32 = arith.constant 0 : i32
    %c0_i32_0 = arith.constant 0 : i32
    %c0_i32_1 = arith.constant 0 : i32
    return %c0_i32, %c0_i32_0 : i32, i32
  }
  func.func @transform_2(%arg0: i32) -> (i32, i32) {
    %c0_i32 = arith.constant 0 : i32
    %c0_i32_0 = arith.constant 0 : i32
    %c0_i32_1 = arith.constant 0 : i32
    return %c0_i32, %c0_i32_0 : i32, i32
  }
  func.func @transform_3(%arg0: i32) -> (i32, i32) {
    %c0_i32 = arith.constant 0 : i32
    %c0_i32_0 = arith.constant 0 : i32
    %c0_i32_1 = arith.constant 0 : i32
    return %c0_i32, %c0_i32_0 : i32, i32
  }
  func.func @transform_4(%arg0: i32) -> (i32, i32) {
    %c0_i32 = arith.constant 0 : i32
    %c0_i32_0 = arith.constant 0 : i32
    return %arg0, %c0_i32 : i32, i32
  }
  func.func @transform_5(%arg0: i32) -> (i32, i32) {
    %c0_i32 = arith.constant 0 : i32
    %c0_i32_0 = arith.constant 0 : i32
    return %arg0, %c0_i32 : i32, i32
  }
  func.func @transform_6(%arg0: i32) -> (i32, i32) {
    %c0_i32 = arith.constant 0 : i32
    %c0_i32_0 = arith.constant 0 : i32
    return %arg0, %c0_i32 : i32, i32
  }
  func.func @transform_7(%arg0: i32) -> (i32, i32) {
    %c0_i32 = arith.constant 0 : i32
    %c0_i32_0 = arith.constant 0 : i32
    return %arg0, %c0_i32 : i32, i32
  }
  func.func @transform_8(%arg0: i32) -> (i32, i32) {
    %c0_i32 = arith.constant 0 : i32
    %c0_i32_0 = arith.constant 0 : i32
    return %arg0, %c0_i32 : i32, i32
  }
  func.func @transform_9(%arg0: i32) -> (i32, i32) {
    %c0_i32 = arith.constant 0 : i32
    %c0_i32_0 = arith.constant 0 : i32
    return %arg0, %c0_i32 : i32, i32
  }
}

</mosaic_0001>

<llo_original>
// kernel: vq_forward.1
$region0: #{vq_forward.1}
  #allocation0 [shape = 'u32[]', space=smem, size = 0x4, offset = 0x4, fixed_abs, tag = 'smem constant byte address 0x4 - core index']
  #allocation1 [shape = 'u32[144,128]{1,0:T(1,128)}', space=vmem, size = 0x12000, scoped, tag = 'internal scratch']
  %s0 = inlined_call_operand.vmem [shape: f32[128,8], index: 0, kind: input, shape index: {}]
  %s1 = inlined_call_operand.vmem [shape: f32[8,16], index: 1, kind: input, shape index: {}]
  %s2 = inlined_call_operand.vmem [shape: f32[16,8], index: 2, kind: input, shape index: {}]
  %s3 = inlined_call_operand.vmem [shape: f32[1,16], index: 3, kind: input, shape index: {}]
  %s4 = inlined_call_operand.vmem [shape: f32[128,16], index: 4, kind: output, shape index: {0}]
  %s5 = inlined_call_operand.vmem [shape: f32[128,16], index: 5, kind: output, shape index: {1}]
  %s6 = inlined_call_operand.vmem [shape: f32[128,8], index: 6, kind: output, shape index: {2}]
  %s7 = inlined_call_operand.hbm [shape: s32[1,128], index: 7, kind: output, shape index: {3}]
  %s8 = inlined_call_operand.vmem [shape: f32[1,16], index: 8, kind: output, shape index: {4}]
  %s9 = inlined_call_operand.vmem [shape: f32[1,128], index: 9, kind: output, shape index: {5}]
  %10 = xla_tuple %s4, %s5, %s6, %s7, %s8, %s9
  %s11 = sld [smem:[#allocation0]]
  $region66: #{vq_forward.1} parent=0
    _
  %s13 = ssub.s32 1, %s11
  %s14 = scalar_select 0, %s13, %s11
  $region1: #{vq_forward.1} parent=0
    #allocation2 [shape = 'u8[512]{0}', space=vmem, size = 0x400, scoped, tag = 'output window, operand 3, single buffered']
    #allocation3 [shape = 's32[1]{0}', space=sflag, size = 0x4, scoped, tag = 'scoped memory for vq_forward.1']
    %15 = vsyncpa [#allocation3], 0
    // Predicated region
    $region2: #{vq_forward.1} parent=1 // pred_check
      _
    $region3: #{vq_forward.1} parent=1 // pred_check_branch
      %17 = sbr.rel (0) target = $region5
    $region4: #{vq_forward.1} parent=1 // pred_region
      _
    $region5: #{vq_forward.1} parent=1 // pred_fallthru
      _
    // Predicated region
    $region6: #{vq_forward.1} parent=1 // pred_check
      _
    $region7: #{vq_forward.1} parent=1 // pred_check_branch
      %19 = sbr.rel (0) target = $region9
    $region8: #{vq_forward.1} parent=1 // pred_region
      _
    $region9: #{vq_forward.1} parent=1 // pred_fallthru
      _
    // Predicated region
    $region10: #{vq_forward.1} parent=1 // pred_check
      _
    $region11: #{vq_forward.1} parent=1 // pred_check_branch
      %21 = sbr.rel (0) target = $region13
    $region12: #{vq_forward.1} parent=1 // pred_region
      _
    $region13: #{vq_forward.1} parent=1 // pred_fallthru
      _
    // Predicated region
    $region14: #{vq_forward.1} parent=1 // pred_check
      _
    $region15: #{vq_forward.1} parent=1 // pred_check_branch
      %23 = sbr.rel (0) target = $region17
    $region16: #{vq_forward.1} parent=1 // pred_region
      _
    $region17: #{vq_forward.1} parent=1 // pred_fallthru
      _
    %v24 = vld [vmem:[%s0] sm:$0xff]
    %v25 = vld [vmem:[%s0 + $0x8] sm:$0xff]
    %v26 = vld [vmem:[%s0 + $0x10] sm:$0xff]
    %v27 = vld [vmem:[%s0 + $0x18] sm:$0xff]
    %v28 = vld [vmem:[%s0 + $0x20] sm:$0xff]
    %v29 = vld [vmem:[%s0 + $0x28] sm:$0xff]
    %v30 = vld [vmem:[%s0 + $0x30] sm:$0xff]
    %v31 = vld [vmem:[%s0 + $0x38] sm:$0xff]
    %v32 = vld [vmem:[%s0 + $0x40] sm:$0xff]
    %v33 = vld [vmem:[%s0 + $0x48] sm:$0xff]
    %v34 = vld [vmem:[%s0 + $0x50] sm:$0xff]
    %v35 = vld [vmem:[%s0 + $0x58] sm:$0xff]
    %v36 = vld [vmem:[%s0 + $0x60] sm:$0xff]
    %v37 = vld [vmem:[%s0 + $0x68] sm:$0xff]
    %v38 = vld [vmem:[%s0 + $0x70] sm:$0xff]
    %v39 = vld [vmem:[%s0 + $0x78] sm:$0xff]
    %v40 = vld [vmem:[%s1] sm:$0xff]
    %v41 = vld [vmem:[%s2] sm:$0xff]
    %v42 = vld [vmem:[%s2 + $0x8] sm:$0xff]
    %v43 = vld [vmem:[%s3] sm:$0x1]
    %v44 = vmul.f32 %v24, %v24
    %v45 = vmul.f32 %v25, %v25
    %v46 = vmul.f32 %v26, %v26
    %v47 = vmul.f32 %v27, %v27
    %v48 = vmul.f32 %v28, %v28
    %v49 = vmul.f32 %v29, %v29
    %v50 = vmul.f32 %v30, %v30
    %v51 = vmul.f32 %v31, %v31
    %v52 = vmul.f32 %v32, %v32
    %v53 = vmul.f32 %v33, %v33
    %v54 = vmul.f32 %v34, %v34
    %v55 = vmul.f32 %v35, %v35
    %v56 = vmul.f32 %v36, %v36
    %v57 = vmul.f32 %v37, %v37
    %v58 = vmul.f32 %v38, %v38
    %v59 = vmul.f32 %v39, %v39
    %vm60 = vcmask 64512
    %v61 = vsel %vm60, %v44, 0.0
    %62 = vadd.xlane.f32.xlu0 %v61
    %v63 = vpop.xlane.xlu0 %62
    %v64 = vsel %vm60, %v45, 0.0
    %65 = vadd.xlane.f32.xlu0 %v64
    %v66 = vpop.xlane.xlu0 %65
    %v67 = vsel %vm60, %v46, 0.0
    %68 = vadd.xlane.f32.xlu0 %v67
    %v69 = vpop.xlane.xlu0 %68
    %v70 = vsel %vm60, %v47, 0.0
    %71 = vadd.xlane.f32.xlu0 %v70
    %v72 = vpop.xlane.xlu0 %71
    %v73 = vsel %vm60, %v48, 0.0
    %74 = vadd.xlane.f32.xlu0 %v73
    %v75 = vpop.xlane.xlu0 %74
    %v76 = vsel %vm60, %v49, 0.0
    %77 = vadd.xlane.f32.xlu0 %v76
    %v78 = vpop.xlane.xlu0 %77
    %v79 = vsel %vm60, %v50, 0.0
    %80 = vadd.xlane.f32.xlu0 %v79
    %v81 = vpop.xlane.xlu0 %80
    %v82 = vsel %vm60, %v51, 0.0
    %83 = vadd.xlane.f32.xlu0 %v82
    %v84 = vpop.xlane.xlu0 %83
    %v85 = vsel %vm60, %v52, 0.0
    %86 = vadd.xlane.f32.xlu0 %v85
    %v87 = vpop.xlane.xlu0 %86
    %v88 = vsel %vm60, %v53, 0.0
    %89 = vadd.xlane.f32.xlu0 %v88
    %v90 = vpop.xlane.xlu0 %89
    %v91 = vsel %vm60, %v54, 0.0
    %92 = vadd.xlane.f32.xlu0 %v91
    %v93 = vpop.xlane.xlu0 %92
    %v94 = vsel %vm60, %v55, 0.0
    %95 = vadd.xlane.f32.xlu0 %v94
    %v96 = vpop.xlane.xlu0 %95
    %v97 = vsel %vm60, %v56, 0.0
    %98 = vadd.xlane.f32.xlu0 %v97
    %v99 = vpop.xlane.xlu0 %98
    %v100 = vsel %vm60, %v57, 0.0
    %101 = vadd.xlane.f32.xlu0 %v100
    %v102 = vpop.xlane.xlu0 %101
    %v103 = vsel %vm60, %v58, 0.0
    %104 = vadd.xlane.f32.xlu0 %v103
    %v105 = vpop.xlane.xlu0 %104
    %v106 = vsel %vm60, %v59, 0.0
    %107 = vadd.xlane.f32.xlu0 %v106
    %v108 = vpop.xlane.xlu0 %107
    %v110 = vsel %vm60, %v24, 0
    %v113 = vsel %vm60, %v25, 0
    %v116 = vsel %vm60, %v26, 0
    %v119 = vsel %vm60, %v27, 0
    %v122 = vsel %vm60, %v28, 0
    %v125 = vsel %vm60, %v29, 0
    %v128 = vsel %vm60, %v30, 0
    %v131 = vsel %vm60, %v31, 0
    %v134 = vsel %vm60, %v32, 0
    %v137 = vsel %vm60, %v33, 0
    %v140 = vsel %vm60, %v34, 0
    %v143 = vsel %vm60, %v35, 0
    %v146 = vsel %vm60, %v36, 0
    %v149 = vsel %vm60, %v37, 0
    %v152 = vsel %vm60, %v38, 0
    %v155 = vsel %vm60, %v39, 0
    %157 = vmatprep.subr.mxu0 0.0
    %v158 = vand.u32 %v40, 4294901760
    %159 = vmatpush1.msra.mxu0 %v158
    %160 = vmatprep.subr.mxu0 0.0
    %161 = vmatpush1.msra.mxu0 0.0
    %162 = vmatprep.subr.mxu0 0.0
    %163 = vmatpush1.msra.mxu0 0.0
    %164 = vmatprep.subr.mxu0 0.0
    %165 = vmatpush1.msra.mxu0 0.0
    %166 = vmatprep.subr.mxu0 0.0
    %167 = vmatpush1.msra.mxu0 0.0
    %168 = vmatprep.subr.mxu0 0.0
    %169 = vmatpush1.msra.mxu0 0.0
    %170 = vmatprep.subr.mxu0 0.0
    %171 = vmatpush1.msra.mxu0 0.0
    %172 = vmatprep.subr.mxu0 0.0
    %173 = vmatpush1.msra.mxu0 0.0
    %174 = vmatprep.subr.mxu0 0.0
    %175 = vmatpush1.msra.mxu0 0.0
    %176 = vmatprep.subr.mxu0 0.0
    %177 = vmatpush1.msra.mxu0 0.0
    %178 = vmatprep.subr.mxu0 0.0
    %179 = vmatpush1.msra.mxu0 0.0
    %180 = vmatprep.subr.mxu0 0.0
    %181 = vmatpush1.msra.mxu0 0.0
    %182 = vmatprep.subr.mxu0 0.0
    %183 = vmatpush1.msra.mxu0 0.0
    %184 = vmatprep.subr.mxu0 0.0
    %185 = vmatpush1.msra.mxu0 0.0
    %186 = vmatprep.subr.mxu0 0.0
    %187 = vmatpush1.msra.mxu0 0.0
    %188 = vmatprep.subr.mxu0 0.0
    %189 = vmatpush1.msra.mxu0 0.0
    %190 = vmatprep.subr.mxu0 0.0
    %191 = vmatpush1.msra.mxu0 0.0
    %192 = vmatprep.subr.mxu0 0.0
    %193 = vmatpush1.msra.mxu0 0.0
    %194 = vmatprep.subr.mxu0 0.0
    %195 = vmatpush1.msra.mxu0 0.0
    %196 = vmatprep.subr.mxu0 0.0
    %197 = vmatpush1.msra.mxu0 0.0
    %198 = vmatprep.subr.mxu0 0.0
    %199 = vmatpush1.msra.mxu0 0.0
    %200 = vmatprep.subr.mxu0 0.0
    %201 = vmatpush1.msra.mxu0 0.0
    %202 = vmatprep.subr.mxu0 0.0
    %203 = vmatpush1.msra.mxu0 0.0
    %204 = vmatprep.subr.mxu0 0.0
    %205 = vmatpush1.msra.mxu0 0.0
    %206 = vmatprep.subr.mxu0 0.0
    %207 = vmatpush1.msra.mxu0 0.0
    %208 = vmatprep.subr.mxu0 0.0
    %209 = vmatpush1.msra.mxu0 0.0
    %210 = vmatprep.subr.mxu0 0.0
    %211 = vmatpush1.msra.mxu0 0.0
    %212 = vmatprep.subr.mxu0 0.0
    %213 = vmatpush1.msra.mxu0 0.0
    %214 = vmatprep.subr.mxu0 0.0
    %215 = vmatpush1.msra.mxu0 0.0
    %216 = vmatprep.subr.mxu0 0.0
    %217 = vmatpush1.msra.mxu0 0.0
    %218 = vmatprep.subr.mxu0 0.0
    %219 = vmatpush1.msra.mxu0 0.0
    %220 = vmatprep.subr.mxu0 0.0
    %221 = vmatpush1.msra.mxu0 0.0
    %222 = vmatprep.mubr.f32.mxu0 0.0
    %v223 = vand.u32 %v110, 4294901760
    %v224 = vsub.f32 %v110, %v223
    %v225 = vand.u32 %v224, 4294901760
    %v226 = vsub.f32 %v224, %v225
    %v227 = vand.u32 %v226, 4294901760
    %228 = vmatmul.mubr.f32.gmra.mrb[0].mxu0 %v227
    %v229 = vpop.f32.mrb[0].mxu0
    %v230 = vadd.f32 0.0, %v229
    %v231 = vpop.f32.mrb[0].mxu0
    %232 = vmatprep.mubr.f32.mxu0 0.0
    %v233 = vand.u32 %v113, 4294901760
    %v234 = vsub.f32 %v113, %v233
    %v235 = vand.u32 %v234, 4294901760
    %v236 = vsub.f32 %v234, %v235
    %v237 = vand.u32 %v236, 4294901760
    %238 = vmatmul.mubr.f32.gmra.mrb[0].mxu0 %v237
    %v239 = vpop.f32.mrb[0].mxu0
    %v240 = vadd.f32 0.0, %v239
    %v241 = vpop.f32.mrb[0].mxu0
    %242 = vmatprep.mubr.f32.mxu0 0.0
    %v243 = vand.u32 %v116, 4294901760
    %v244 = vsub.f32 %v116, %v243
    %v245 = vand.u32 %v244, 4294901760
    %v246 = vsub.f32 %v244, %v245
    %v247 = vand.u32 %v246, 4294901760
    %248 = vmatmul.mubr.f32.gmra.mrb[0].mxu0 %v247
    %v249 = vpop.f32.mrb[0].mxu0
    %v250 = vadd.f32 0.0, %v249
    %v251 = vpop.f32.mrb[0].mxu0
    %252 = vmatprep.mubr.f32.mxu0 0.0
    %v253 = vand.u32 %v119, 4294901760
    %v254 = vsub.f32 %v119, %v253
    %v255 = vand.u32 %v254, 4294901760
    %v256 = vsub.f32 %v254, %v255
    %v257 = vand.u32 %v256, 4294901760
    %258 = vmatmul.mubr.f32.gmra.mrb[0].mxu0 %v257
    %v259 = vpop.f32.mrb[0].mxu0
    %v260 = vadd.f32 0.0, %v259
    %v261 = vpop.f32.mrb[0].mxu0
    %262 = vmatprep.mubr.f32.mxu0 0.0
    %v263 = vand.u32 %v122, 4294901760
    %v264 = vsub.f32 %v122, %v263
    %v265 = vand.u32 %v264, 4294901760
    %v266 = vsub.f32 %v264, %v265
    %v267 = vand.u32 %v266, 4294901760
    %268 = vmatmul.mubr.f32.gmra.mrb[0].mxu0 %v267
    %v269 = vpop.f32.mrb[0].mxu0
    %v270 = vadd.f32 0.0, %v269
    %v271 = vpop.f32.mrb[0].mxu0
    %272 = vmatprep.mubr.f32.mxu0 0.0
    %v273 = vand.u32 %v125, 4294901760
    %v274 = vsub.f32 %v125, %v273
    %v275 = vand.u32 %v274, 4294901760
    %v276 = vsub.f32 %v274, %v275
    %v277 = vand.u32 %v276, 4294901760
    %278 = vmatmul.mubr.f32.gmra.mrb[0].mxu0 %v277
    %v279 = vpop.f32.mrb[0].mxu0
    %v280 = vadd.f32 0.0, %v279
    %v281 = vpop.f32.mrb[0].mxu0
    %282 = vmatprep.mubr.f32.mxu0 0.0
    %v283 = vand.u32 %v128, 4294901760
    %v284 = vsub.f32 %v128, %v283
    %v285 = vand.u32 %v284, 4294901760
    %v286 = vsub.f32 %v284, %v285
    %v287 = vand.u32 %v286, 4294901760
    %288 = vmatmul.mubr.f32.gmra.mrb[0].mxu0 %v287
    %v289 = vpop.f32.mrb[0].mxu0
    %v290 = vadd.f32 0.0, %v289
    %v291 = vpop.f32.mrb[0].mxu0
    %292 = vmatprep.mubr.f32.mxu0 0.0
    %v293 = vand.u32 %v131, 4294901760
    %v294 = vsub.f32 %v131, %v293
    %v295 = vand.u32 %v294, 4294901760
    %v296 = vsub.f32 %v294, %v295
    %v297 = vand.u32 %v296, 4294901760
    %298 = vmatmul.mubr.f32.gmra.mrb[0].mxu0 %v297
    %v299 = vpop.f32.mrb[0].mxu0
    %v300 = vadd.f32 0.0, %v299
    %v301 = vpop.f32.mrb[0].mxu0
    %302 = vmatprep.mubr.f32.mxu0 0.0
    %v303 = vand.u32 %v134, 4294901760
    %v304 = vsub.f32 %v134, %v303
    %v305 = vand.u32 %v304, 4294901760
    %v306 = vsub.f32 %v304, %v305
    %v307 = vand.u32 %v306, 4294901760
    %308 = vmatmul.mubr.f32.gmra.mrb[0].mxu0 %v307
    %v309 = vpop.f32.mrb[0].mxu0
    %v310 = vadd.f32 0.0, %v309
    %v311 = vpop.f32.mrb[0].mxu0
    %312 = vmatprep.mubr.f32.mxu0 0.0
    %v313 = vand.u32 %v137, 4294901760
    %v314 = vsub.f32 %v137, %v313
    %v315 = vand.u32 %v314, 4294901760
    %v316 = vsub.f32 %v314, %v315
    %v317 = vand.u32 %v316, 4294901760
    %318 = vmatmul.mubr.f32.gmra.mrb[0].mxu0 %v317
    %v319 = vpop.f32.mrb[0].mxu0
    %v320 = vadd.f32 0.0, %v319
    %v321 = vpop.f32.mrb[0].mxu0
    %322 = vmatprep.mubr.f32.mxu0 0.0
    %v323 = vand.u32 %v140, 4294901760
    %v324 = vsub.f32 %v140, %v323
    %v325 = vand.u32 %v324, 4294901760
    %v326 = vsub.f32 %v324, %v325
    %v327 = vand.u32 %v326, 4294901760
    %328 = vmatmul.mubr.f32.gmra.mrb[0].mxu0 %v327
    %v329 = vpop.f32.mrb[0].mxu0
    %v330 = vadd.f32 0.0, %v329
    %v331 = vpop.f32.mrb[0].mxu0
    %332 = vmatprep.mubr.f32.mxu0 0.0
    %v333 = vand.u32 %v143, 4294901760
    %v334 = vsub.f32 %v143, %v333
    %v335 = vand.u32 %v334, 4294901760
    %v336 = vsub.f32 %v334, %v335
    %v337 = vand.u32 %v336, 4294901760
    %338 = vmatmul.mubr.f32.gmra.mrb[0].mxu0 %v337
    %v339 = vpop.f32.mrb[0].mxu0
    %v340 = vadd.f32 0.0, %v339
    %v341 = vpop.f32.mrb[0].mxu0
    %342 = vmatprep.mubr.f32.mxu0 0.0
    %v343 = vand.u32 %v146, 4294901760
    %v344 = vsub.f32 %v146, %v343
    %v345 = vand.u32 %v344, 4294901760
    %v346 = vsub.f32 %v344, %v345
    %v347 = vand.u32 %v346, 4294901760
    %348 = vmatmul.mubr.f32.gmra.mrb[0].mxu0 %v347
    %v349 = vpop.f32.mrb[0].mxu0
    %v350 = vadd.f32 0.0, %v349
    %v351 = vpop.f32.mrb[0].mxu0
    %352 = vmatprep.mubr.f32.mxu0 0.0
    %v353 = vand.u32 %v149, 4294901760
    %v354 = vsub.f32 %v149, %v353
    %v355 = vand.u32 %v354, 4294901760
    %v356 = vsub.f32 %v354, %v355
    %v357 = vand.u32 %v356, 4294901760
    %358 = vmatmul.mubr.f32.gmra.mrb[0].mxu0 %v357
    %v359 = vpop.f32.mrb[0].mxu0
    %v360 = vadd.f32 0.0, %v359
    %v361 = vpop.f32.mrb[0].mxu0
    %362 = vmatprep.mubr.f32.mxu0 0.0
    %v363 = vand.u32 %v152, 4294901760
    %v364 = vsub.f32 %v152, %v363
    %v365 = vand.u32 %v364, 4294901760
    %v366 = vsub.f32 %v364, %v365
    %v367 = vand.u32 %v366, 4294901760
    %368 = vmatmul.mubr.f32.gmra.mrb[0].mxu0 %v367
    %v369 = vpop.f32.mrb[0].mxu0
    %v370 = vadd.f32 0.0, %v369
    %v371 = vpop.f32.mrb[0].mxu0
    %372 = vmatprep.mubr.f32.mxu0 0.0
    %v373 = vand.u32 %v155, 4294901760
    %v374 = vsub.f32 %v155, %v373
    %v375 = vand.u32 %v374, 4294901760
    %v376 = vsub.f32 %v374, %v375
    %v377 = vand.u32 %v376, 4294901760
    %378 = vmatmul.mubr.f32.gmra.mrb[0].mxu0 %v377
    %v379 = vpop.f32.mrb[0].mxu0
    %v380 = vadd.f32 0.0, %v379
    %v381 = vpop.f32.mrb[0].mxu0
    %382 = vdwg.mxu0
    %383 = vmatprep.subr.mxu0 0.0
    %v384 = vand.u32 %v40, 4294901760
    %v385 = vsub.f32 %v40, %v384
    %v386 = vand.u32 %v385, 4294901760
    %v387 = vsub.f32 %v385, %v386
    %v388 = vand.u32 %v387, 4294901760
    %389 = vmatpush1.msra.mxu0 %v388
    %390 = vmatprep.subr.mxu0 0.0
    %391 = vmatpush1.msra.mxu0 0.0
    %392 = vmatprep.subr.mxu0 0.0
    %393 = vmatpush1.msra.mxu0 0.0
    %394 = vmatprep.subr.mxu0 0.0
    %395 = vmatpush1.msra.mxu0 0.0
    %396 = vmatprep.subr.mxu0 0.0
    %397 = vmatpush1.msra.mxu0 0.0
    %398 = vmatprep.subr.mxu0 0.0
    %399 = vmatpush1.msra.mxu0 0.0
    %400 = vmatprep.subr.mxu0 0.0
    %401 = vmatpush1.msra.mxu0 0.0
    %402 = vmatprep.subr.mxu0 0.0
    %403 = vmatpush1.msra.mxu0 0.0
    %404 = vmatprep.subr.mxu0 0.0
    %405 = vmatpush1.msra.mxu0 0.0
    %406 = vmatprep.subr.mxu0 0.0
    %407 = vmatpush1.msra.mxu0 0.0
    %408 = vmatprep.subr.mxu0 0.0
    %409 = vmatpush1.msra.mxu0 0.0
    %410 = vmatprep.subr.mxu0 0.0
    %411 = vmatpush1.msra.mxu0 0.0
    %412 = vmatprep.subr.mxu0 0.0
    %413 = vmatpush1.msra.mxu0 0.0
    %414 = vmatprep.subr.mxu0 0.0
    %415 = vmatpush1.msra.mxu0 0.0
    %416 = vmatprep.subr.mxu0 0.0
    %417 = vmatpush1.msra.mxu0 0.0
    %418 = vmatprep.subr.mxu0 0.0
    %419 = vmatpush1.msra.mxu0 0.0
    %420 = vmatprep.subr.mxu0 0.0
    %421 = vmatpush1.msra.mxu0 0.0
    %422 = vmatprep.subr.mxu0 0.0
    %423 = vmatpush1.msra.mxu0 0.0
    %424 = vmatprep.subr.mxu0 0.0
    %425 = vmatpush1.msra.mxu0 0.0
    %426 = vmatprep.subr.mxu0 0.0
    %427 = vmatpush1.msra.mxu0 0.0
    %428 = vmatprep.subr.mxu0 0.0
    %429 = vmatpush1.msra.mxu0 0.0
    %430 = vmatprep.subr.mxu0 0.0
    %431 = vmatpush1.msra.mxu0 0.0
    %432 = vmatprep.subr.mxu0 0.0
    %433 = vmatpush1.msra.mxu0 0.0
    %434 = vmatprep.subr.mxu0 0.0
    %435 = vmatpush1.msra.mxu0 0.0
    %436 = vmatprep.subr.mxu0 0.0
    %437 = vmatpush1.msra.mxu0 0.0
    %438 = vmatprep.subr.mxu0 0.0
    %439 = vmatpush1.msra.mxu0 0.0
    %440 = vmatprep.subr.mxu0 0.0
    %441 = vmatpush1.msra.mxu0 0.0
    %442 = vmatprep.subr.mxu0 0.0
    %443 = vmatpush1.msra.mxu0 0.0
    %444 = vmatprep.subr.mxu0 0.0
    %445 = vmatpush1.msra.mxu0 0.0
    %446 = vmatprep.subr.mxu0 0.0
    %447 = vmatpush1.msra.mxu0 0.0
    %448 = vmatprep.subr.mxu0 0.0
    %449 = vmatpush1.msra.mxu0 0.0
    %450 = vmatprep.subr.mxu0 0.0
    %451 = vmatpush1.msra.mxu0 0.0
    %452 = vmatprep.mubr.f32.mxu0 0.0
    %v453 = vand.u32 %v110, 4294901760
    %454 = vmatmul.mubr.f32.gmra.mrb[0].mxu0 %v453
    %v455 = vpop.f32.mrb[0].mxu0
    %v456 = vadd.f32 %v230, %v455
    %v457 = vpop.f32.mrb[0].mxu0
    %458 = vmatprep.mubr.f32.mxu0 0.0
    %v459 = vand.u32 %v113, 4294901760
    %460 = vmatmul.mubr.f32.gmra.mrb[0].mxu0 %v459
    %v461 = vpop.f32.mrb[0].mxu0
    %v462 = vadd.f32 %v240, %v461
    %v463 = vpop.f32.mrb[0].mxu0
    %464 = vmatprep.mubr.f32.mxu0 0.0
    %v465 = vand.u32 %v116, 4294901760
    %466 = vmatmul.mubr.f32.gmra.mrb[0].mxu0 %v465
    %v467 = vpop.f32.mrb[0].mxu0
    %v468 = vadd.f32 %v250, %v467
    %v469 = vpop.f32.mrb[0].mxu0
    %470 = vmatprep.mubr.f32.mxu0 0.0
    %v471 = vand.u32 %v119, 4294901760
    %472 = vmatmul.mubr.f32.gmra.mrb[0].mxu0 %v471
    %v473 = vpop.f32.mrb[0].mxu0
    %v474 = vadd.f32 %v260, %v473
    %v475 = vpop.f32.mrb[0].mxu0
    %476 = vmatprep.mubr.f32.mxu0 0.0
    %v477 = vand.u32 %v122, 4294901760
    %478 = vmatmul.mubr.f32.gmra.mrb[0].mxu0 %v477
    %v479 = vpop.f32.mrb[0].mxu0
    %v480 = vadd.f32 %v270, %v479
    %v481 = vpop.f32.mrb[0].mxu0
    %482 = vmatprep.mubr.f32.mxu0 0.0
    %v483 = vand.u32 %v125, 4294901760
    %484 = vmatmul.mubr.f32.gmra.mrb[0].mxu0 %v483
    %v485 = vpop.f32.mrb[0].mxu0
    %v486 = vadd.f32 %v280, %v485
    %v487 = vpop.f32.mrb[0].mxu0
    %488 = vmatprep.mubr.f32.mxu0 0.0
    %v489 = vand.u32 %v128, 4294901760
    %490 = vmatmul.mubr.f32.gmra.mrb[0].mxu0 %v489
    %v491 = vpop.f32.mrb[0].mxu0
    %v492 = vadd.f32 %v290, %v491
    %v493 = vpop.f32.mrb[0].mxu0
    %494 = vmatprep.mubr.f32.mxu0 0.0
    %v495 = vand.u32 %v131, 4294901760
    %496 = vmatmul.mubr.f32.gmra.mrb[0].mxu0 %v495
    %v497 = vpop.f32.mrb[0].mxu0
    %v498 = vadd.f32 %v300, %v497
    %v499 = vpop.f32.mrb[0].mxu0
    %500 = vmatprep.mubr.f32.mxu0 0.0
    %v501 = vand.u32 %v134, 4294901760
    %502 = vmatmul.mubr.f32.gmra.mrb[0].mxu0 %v501
    %v503 = vpop.f32.mrb[0].mxu0
    %v504 = vadd.f32 %v310, %v503
    %v505 = vpop.f32.mrb[0].mxu0
    %506 = vmatprep.mubr.f32.mxu0 0.0
    %v507 = vand.u32 %v137, 4294901760
    %508 = vmatmul.mubr.f32.gmra.mrb[0].mxu0 %v507
    %v509 = vpop.f32.mrb[0].mxu0
    %v510 = vadd.f32 %v320, %v509
    %v511 = vpop.f32.mrb[0].mxu0
    %512 = vmatprep.mubr.f32.mxu0 0.0
    %v513 = vand.u32 %v140, 4294901760
    %514 = vmatmul.mubr.f32.gmra.mrb[0].mxu0 %v513
    %v515 = vpop.f32.mrb[0].mxu0
    %v516 = vadd.f32 %v330, %v515
    %v517 = vpop.f32.mrb[0].mxu0
    %518 = vmatprep.mubr.f32.mxu0 0.0
    %v519 = vand.u32 %v143, 4294901760
    %520 = vmatmul.mubr.f32.gmra.mrb[0].mxu0 %v519
    %v521 = vpop.f32.mrb[0].mxu0
    %v522 = vadd.f32 %v340, %v521
    %v523 = vpop.f32.mrb[0].mxu0
    %524 = vmatprep.mubr.f32.mxu0 0.0
    %v525 = vand.u32 %v146, 4294901760
    %526 = vmatmul.mubr.f32.gmra.mrb[0].mxu0 %v525
    %v527 = vpop.f32.mrb[0].mxu0
    %v528 = vadd.f32 %v350, %v527
    %v529 = vpop.f32.mrb[0].mxu0
    %530 = vmatprep.mubr.f32.mxu0 0.0
    %v531 = vand.u32 %v149, 4294901760
    %532 = vmatmul.mubr.f32.gmra.mrb[0].mxu0 %v531
    %v533 = vpop.f32.mrb[0].mxu0
    %v534 = vadd.f32 %v360, %v533
    %v535 = vpop.f32.mrb[0].mxu0
    %536 = vmatprep.mubr.f32.mxu0 0.0
    %v537 = vand.u32 %v152, 4294901760
    %538 = vmatmul.mubr.f32.gmra.mrb[0].mxu0 %v537
    %v539 = vpop.f32.mrb[0].mxu0
    %v540 = vadd.f32 %v370, %v539
    %v541 = vpop.f32.mrb[0].mxu0
    %542 = vmatprep.mubr.f32.mxu0 0.0
    %v543 = vand.u32 %v155, 4294901760
    %544 = vmatmul.mubr.f32.gmra.mrb[0].mxu0 %v543
    %v545 = vpop.f32.mrb[0].mxu0
    %v546 = vadd.f32 %v380, %v545
    %v547 = vpop.f32.mrb[0].mxu0
    %548 = vdwg.mxu0
    %549 = vmatprep.subr.mxu0 0.0
    %v550 = vand.u32 %v40, 4294901760
    %v551 = vsub.f32 %v40, %v550
    %552 = vmatpush1.msra.mxu0 %v551
    %553 = vmatprep.subr.mxu0 0.0
    %554 = vmatpush1.msra.mxu0 0.0
    %555 = vmatprep.subr.mxu0 0.0
    %556 = vmatpush1.msra.mxu0 0.0
    %557 = vmatprep.subr.mxu0 0.0
    %558 = vmatpush1.msra.mxu0 0.0
    %559 = vmatprep.subr.mxu0 0.0
    %560 = vmatpush1.msra.mxu0 0.0
    %561 = vmatprep.subr.mxu0 0.0
    %562 = vmatpush1.msra.mxu0 0.0
    %563 = vmatprep.subr.mxu0 0.0
    %564 = vmatpush1.msra.mxu0 0.0
    %565 = vmatprep.subr.mxu0 0.0
    %566 = vmatpush1.msra.mxu0 0.0
    %567 = vmatprep.subr.mxu0 0.0
    %568 = vmatpush1.msra.mxu0 0.0
    %569 = vmatprep.subr.mxu0 0.0
    %570 = vmatpush1.msra.mxu0 0.0
    %571 = vmatprep.subr.mxu0 0.0
    %572 = vmatpush1.msra.mxu0 0.0
    %573 = vmatprep.subr.mxu0 0.0
    %574 = vmatpush1.msra.mxu0 0.0
    %575 = vmatprep.subr.mxu0 0.0
    %576 = vmatpush1.msra.mxu0 0.0
    %577 = vmatprep.subr.mxu0 0.0
    %578 = vmatpush1.msra.mxu0 0.0
    %579 = vmatprep.subr.mxu0 0.0
    %580 = vmatpush1.msra.mxu0 0.0
    %581 = vmatprep.subr.mxu0 0.0
    %582 = vmatpush1.msra.mxu0 0.0
    %583 = vmatprep.subr.mxu0 0.0
    %584 = vmatpush1.msra.mxu0 0.0
    %585 = vmatprep.subr.mxu0 0.0
    %586 = vmatpush1.msra.mxu0 0.0
    %587 = vmatprep.subr.mxu0 0.0
    %588 = vmatpush1.msra.mxu0 0.0
    %589 = vmatprep.subr.mxu0 0.0
    %590 = vmatpush1.msra.mxu0 0.0
    %591 = vmatprep.subr.mxu0 0.0
    %592 = vmatpush1.msra.mxu0 0.0
    %593 = vmatprep.subr.mxu0 0.0
    %594 = vmatpush1.msra.mxu0 0.0
    %595 = vmatprep.subr.mxu0 0.0
    %596 = vmatpush1.msra.mxu0 0.0
    %597 = vmatprep.subr.mxu0 0.0
    %598 = vmatpush1.msra.mxu0 0.0
    %599 = vmatprep.subr.mxu0 0.0
    %600 = vmatpush1.msra.mxu0 0.0
    %601 = vmatprep.subr.mxu0 0.0
    %602 = vmatpush1.msra.mxu0 0.0
    %603 = vmatprep.subr.mxu0 0.0
    %604 = vmatpush1.msra.mxu0 0.0
    %605 = vmatprep.subr.mxu0 0.0
    %606 = vmatpush1.msra.mxu0 0.0
    %607 = vmatprep.subr.mxu0 0.0
    %608 = vmatpush1.msra.mxu0 0.0
    %609 = vmatprep.subr.mxu0 0.0
    %610 = vmatpush1.msra.mxu0 0.0
    %611 = vmatprep.subr.mxu0 0.0
    %612 = vmatpush1.msra.mxu0 0.0
    %613 = vmatprep.subr.mxu0 0.0
    %614 = vmatpush1.msra.mxu0 0.0
    %615 = vmatprep.mubr.f32.mxu0 0.0
    %v616 = vand.u32 %v110, 4294901760
    %v617 = vsub.f32 %v110, %v616
    %618 = vmatmul.mubr.f32.gmra.mrb[0].mxu0 %v617
    %v619 = vpop.f32.mrb[0].mxu0
    %v620 = vadd.f32 %v456, %v619
    %v621 = vpop.f32.mrb[0].mxu0
    %622 = vmatprep.mubr.f32.mxu0 0.0
    %v623 = vand.u32 %v113, 4294901760
    %v624 = vsub.f32 %v113, %v623
    %625 = vmatmul.mubr.f32.gmra.mrb[0].mxu0 %v624
    %v626 = vpop.f32.mrb[0].mxu0
    %v627 = vadd.f32 %v462, %v626
    %v628 = vpop.f32.mrb[0].mxu0
    %629 = vmatprep.mubr.f32.mxu0 0.0
    %v630 = vand.u32 %v116, 4294901760
    %v631 = vsub.f32 %v116, %v630
    %632 = vmatmul.mubr.f32.gmra.mrb[0].mxu0 %v631
    %v633 = vpop.f32.mrb[0].mxu0
    %v634 = vadd.f32 %v468, %v633
    %v635 = vpop.f32.mrb[0].mxu0
    %636 = vmatprep.mubr.f32.mxu0 0.0
    %v637 = vand.u32 %v119, 4294901760
    %v638 = vsub.f32 %v119, %v637
    %639 = vmatmul.mubr.f32.gmra.mrb[0].mxu0 %v638
    %v640 = vpop.f32.mrb[0].mxu0
    %v641 = vadd.f32 %v474, %v640
    %v642 = vpop.f32.mrb[0].mxu0
    %643 = vmatprep.mubr.f32.mxu0 0.0
    %v644 = vand.u32 %v122, 4294901760
    %v645 = vsub.f32 %v122, %v644
    %646 = vmatmul.mubr.f32.gmra.mrb[0].mxu0 %v645
    %v647 = vpop.f32.mrb[0].mxu0
    %v648 = vadd.f32 %v480, %v647
    %v649 = vpop.f32.mrb[0].mxu0
    %650 = vmatprep.mubr.f32.mxu0 0.0
    %v651 = vand.u32 %v125, 4294901760
    %v652 = vsub.f32 %v125, %v651
    %653 = vmatmul.mubr.f32.gmra.mrb[0].mxu0 %v652
    %v654 = vpop.f32.mrb[0].mxu0
    %v655 = vadd.f32 %v486, %v654
    %v656 = vpop.f32.mrb[0].mxu0
    %657 = vmatprep.mubr.f32.mxu0 0.0
    %v658 = vand.u32 %v128, 4294901760
    %v659 = vsub.f32 %v128, %v658
    %660 = vmatmul.mubr.f32.gmra.mrb[0].mxu0 %v659
    %v661 = vpop.f32.mrb[0].mxu0
    %v662 = vadd.f32 %v492, %v661
    %v663 = vpop.f32.mrb[0].mxu0
    %664 = vmatprep.mubr.f32.mxu0 0.0
    %v665 = vand.u32 %v131, 4294901760
    %v666 = vsub.f32 %v131, %v665
    %667 = vmatmul.mubr.f32.gmra.mrb[0].mxu0 %v666
    %v668 = vpop.f32.mrb[0].mxu0
    %v669 = vadd.f32 %v498, %v668
    %v670 = vpop.f32.mrb[0].mxu0
    %671 = vmatprep.mubr.f32.mxu0 0.0
    %v672 = vand.u32 %v134, 4294901760
    %v673 = vsub.f32 %v134, %v672
    %674 = vmatmul.mubr.f32.gmra.mrb[0].mxu0 %v673
    %v675 = vpop.f32.mrb[0].mxu0
    %v676 = vadd.f32 %v504, %v675
    %v677 = vpop.f32.mrb[0].mxu0
    %678 = vmatprep.mubr.f32.mxu0 0.0
    %v679 = vand.u32 %v137, 4294901760
    %v680 = vsub.f32 %v137, %v679
    %681 = vmatmul.mubr.f32.gmra.mrb[0].mxu0 %v680
    %v682 = vpop.f32.mrb[0].mxu0
    %v683 = vadd.f32 %v510, %v682
    %v684 = vpop.f32.mrb[0].mxu0
    %685 = vmatprep.mubr.f32.mxu0 0.0
    %v686 = vand.u32 %v140, 4294901760
    %v687 = vsub.f32 %v140, %v686
    %688 = vmatmul.mubr.f32.gmra.mrb[0].mxu0 %v687
    %v689 = vpop.f32.mrb[0].mxu0
    %v690 = vadd.f32 %v516, %v689
    %v691 = vpop.f32.mrb[0].mxu0
    %692 = vmatprep.mubr.f32.mxu0 0.0
    %v693 = vand.u32 %v143, 4294901760
    %v694 = vsub.f32 %v143, %v693
    %695 = vmatmul.mubr.f32.gmra.mrb[0].mxu0 %v694
    %v696 = vpop.f32.mrb[0].mxu0
    %v697 = vadd.f32 %v522, %v696
    %v698 = vpop.f32.mrb[0].mxu0
    %699 = vmatprep.mubr.f32.mxu0 0.0
    %v700 = vand.u32 %v146, 4294901760
    %v701 = vsub.f32 %v146, %v700
    %702 = vmatmul.mubr.f32.gmra.mrb[0].mxu0 %v701
    %v703 = vpop.f32.mrb[0].mxu0
    %v704 = vadd.f32 %v528, %v703
    %v705 = vpop.f32.mrb[0].mxu0
    %706 = vmatprep.mubr.f32.mxu0 0.0
    %v707 = vand.u32 %v149, 4294901760
    %v708 = vsub.f32 %v149, %v707
    %709 = vmatmul.mubr.f32.gmra.mrb[0].mxu0 %v708
    %v710 = vpop.f32.mrb[0].mxu0
    %v711 = vadd.f32 %v534, %v710
    %v712 = vpop.f32.mrb[0].mxu0
    %713 = vmatprep.mubr.f32.mxu0 0.0
    %v714 = vand.u32 %v152, 4294901760
    %v715 = vsub.f32 %v152, %v714
    %716 = vmatmul.mubr.f32.gmra.mrb[0].mxu0 %v715
    %v717 = vpop.f32.mrb[0].mxu0
    %v718 = vadd.f32 %v540, %v717
    %v719 = vpop.f32.mrb[0].mxu0
    %720 = vmatprep.mubr.f32.mxu0 0.0
    %v721 = vand.u32 %v155, 4294901760
    %v722 = vsub.f32 %v155, %v721
    %723 = vmatmul.mubr.f32.gmra.mrb[0].mxu0 %v722
    %v724 = vpop.f32.mrb[0].mxu0
    %v725 = vadd.f32 %v546, %v724
    %v726 = vpop.f32.mrb[0].mxu0
    %727 = vdwg.mxu0
    %728 = vmatprep.subr.mxu0 0.0
    %v729 = vand.u32 %v40, 4294901760
    %730 = vmatpush1.msra.mxu0 %v729
    %731 = vmatprep.subr.mxu0 0.0
    %732 = vmatpush1.msra.mxu0 0.0
    %733 = vmatprep.subr.mxu0 0.0
    %734 = vmatpush1.msra.mxu0 0.0
    %735 = vmatprep.subr.mxu0 0.0
    %736 = vmatpush1.msra.mxu0 0.0
    %737 = vmatprep.subr.mxu0 0.0
    %738 = vmatpush1.msra.mxu0 0.0
    %739 = vmatprep.subr.mxu0 0.0
    %740 = vmatpush1.msra.mxu0 0.0
    %741 = vmatprep.subr.mxu0 0.0
    %742 = vmatpush1.msra.mxu0 0.0
    %743 = vmatprep.subr.mxu0 0.0
    %744 = vmatpush1.msra.mxu0 0.0
    %745 = vmatprep.subr.mxu0 0.0
    %746 = vmatpush1.msra.mxu0 0.0
    %747 = vmatprep.subr.mxu0 0.0
    %748 = vmatpush1.msra.mxu0 0.0
    %749 = vmatprep.subr.mxu0 0.0
    %750 = vmatpush1.msra.mxu0 0.0
    %751 = vmatprep.subr.mxu0 0.0
    %752 = vmatpush1.msra.mxu0 0.0
    %753 = vmatprep.subr.mxu0 0.0
    %754 = vmatpush1.msra.mxu0 0.0
    %755 = vmatprep.subr.mxu0 0.0
    %756 = vmatpush1.msra.mxu0 0.0
    %757 = vmatprep.subr.mxu0 0.0
    %758 = vmatpush1.msra.mxu0 0.0
    %759 = vmatprep.subr.mxu0 0.0
    %760 = vmatpush1.msra.mxu0 0.0
    %761 = vmatprep.subr.mxu0 0.0
    %762 = vmatpush1.msra.mxu0 0.0
    %763 = vmatprep.subr.mxu0 0.0
    %764 = vmatpush1.msra.mxu0 0.0
    %765 = vmatprep.subr.mxu0 0.0
    %766 = vmatpush1.msra.mxu0 0.0
    %767 = vmatprep.subr.mxu0 0.0
    %768 = vmatpush1.msra.mxu0 0.0
    %769 = vmatprep.subr.mxu0 0.0
    %770 = vmatpush1.msra.mxu0 0.0
    %771 = vmatprep.subr.mxu0 0.0
    %772 = vmatpush1.msra.mxu0 0.0
    %773 = vmatprep.subr.mxu0 0.0
    %774 = vmatpush1.msra.mxu0 0.0
    %775 = vmatprep.subr.mxu0 0.0
    %776 = vmatpush1.msra.mxu0 0.0
    %777 = vmatprep.subr.mxu0 0.0
    %778 = vmatpush1.msra.mxu0 0.0
    %779 = vmatprep.subr.mxu0 0.0
    %780 = vmatpush1.msra.mxu0 0.0
    %781 = vmatprep.subr.mxu0 0.0
    %782 = vmatpush1.msra.mxu0 0.0
    %783 = vmatprep.subr.mxu0 0.0
    %784 = vmatpush1.msra.mxu0 0.0
    %785 = vmatprep.subr.mxu0 0.0
    %786 = vmatpush1.msra.mxu0 0.0
    %787 = vmatprep.subr.mxu0 0.0
    %788 = vmatpush1.msra.mxu0 0.0
    %789 = vmatprep.subr.mxu0 0.0
    %790 = vmatpush1.msra.mxu0 0.0
    %791 = vmatprep.subr.mxu0 0.0
    %792 = vmatpush1.msra.mxu0 0.0
    %793 = vmatprep.mubr.f32.mxu0 0.0
    %v794 = vand.u32 %v110, 4294901760
    %v795 = vsub.f32 %v110, %v794
    %v796 = vand.u32 %v795, 4294901760
    %797 = vmatmul.mubr.f32.gmra.mrb[0].mxu0 %v796
    %v798 = vpop.f32.mrb[0].mxu0
    %v799 = vadd.f32 %v620, %v798
    %v800 = vpop.f32.mrb[0].mxu0
    %801 = vmatprep.mubr.f32.mxu0 0.0
    %v802 = vand.u32 %v113, 4294901760
    %v803 = vsub.f32 %v113, %v802
    %v804 = vand.u32 %v803, 4294901760
    %805 = vmatmul.mubr.f32.gmra.mrb[0].mxu0 %v804
    %v806 = vpop.f32.mrb[0].mxu0
    %v807 = vadd.f32 %v627, %v806
    %v808 = vpop.f32.mrb[0].mxu0
    %809 = vmatprep.mubr.f32.mxu0 0.0
    %v810 = vand.u32 %v116, 4294901760
    %v811 = vsub.f32 %v116, %v810
    %v812 = vand.u32 %v811, 4294901760
    %813 = vmatmul.mubr.f32.gmra.mrb[0].mxu0 %v812
    %v814 = vpop.f32.mrb[0].mxu0
    %v815 = vadd.f32 %v634, %v814
    %v816 = vpop.f32.mrb[0].mxu0
    %817 = vmatprep.mubr.f32.mxu0 0.0
    %v818 = vand.u32 %v119, 4294901760
    %v819 = vsub.f32 %v119, %v818
    %v820 = vand.u32 %v819, 4294901760
    %821 = vmatmul.mubr.f32.gmra.mrb[0].mxu0 %v820
    %v822 = vpop.f32.mrb[0].mxu0
    %v823 = vadd.f32 %v641, %v822
    %v824 = vpop.f32.mrb[0].mxu0
    %825 = vmatprep.mubr.f32.mxu0 0.0
    %v826 = vand.u32 %v122, 4294901760
    %v827 = vsub.f32 %v122, %v826
    %v828 = vand.u32 %v827, 4294901760
    %829 = vmatmul.mubr.f32.gmra.mrb[0].mxu0 %v828
    %v830 = vpop.f32.mrb[0].mxu0
    %v831 = vadd.f32 %v648, %v830
    %v832 = vpop.f32.mrb[0].mxu0
    %833 = vmatprep.mubr.f32.mxu0 0.0
    %v834 = vand.u32 %v125, 4294901760
    %v835 = vsub.f32 %v125, %v834
    %v836 = vand.u32 %v835, 4294901760
    %837 = vmatmul.mubr.f32.gmra.mrb[0].mxu0 %v836
    %v838 = vpop.f32.mrb[0].mxu0
    %v839 = vadd.f32 %v655, %v838
    %v840 = vpop.f32.mrb[0].mxu0
    %841 = vmatprep.mubr.f32.mxu0 0.0
    %v842 = vand.u32 %v128, 4294901760
    %v843 = vsub.f32 %v128, %v842
    %v844 = vand.u32 %v843, 4294901760
    %845 = vmatmul.mubr.f32.gmra.mrb[0].mxu0 %v844
    %v846 = vpop.f32.mrb[0].mxu0
    %v847 = vadd.f32 %v662, %v846
    %v848 = vpop.f32.mrb[0].mxu0
    %849 = vmatprep.mubr.f32.mxu0 0.0
    %v850 = vand.u32 %v131, 4294901760
    %v851 = vsub.f32 %v131, %v850
    %v852 = vand.u32 %v851, 4294901760
    %853 = vmatmul.mubr.f32.gmra.mrb[0].mxu0 %v852
    %v854 = vpop.f32.mrb[0].mxu0
    %v855 = vadd.f32 %v669, %v854
    %v856 = vpop.f32.mrb[0].mxu0
    %857 = vmatprep.mubr.f32.mxu0 0.0
    %v858 = vand.u32 %v134, 4294901760
    %v859 = vsub.f32 %v134, %v858
    %v860 = vand.u32 %v859, 4294901760
    %861 = vmatmul.mubr.f32.gmra.mrb[0].mxu0 %v860
    %v862 = vpop.f32.mrb[0].mxu0
    %v863 = vadd.f32 %v676, %v862
    %v864 = vpop.f32.mrb[0].mxu0
    %865 = vmatprep.mubr.f32.mxu0 0.0
    %v866 = vand.u32 %v137, 4294901760
    %v867 = vsub.f32 %v137, %v866
    %v868 = vand.u32 %v867, 4294901760
    %869 = vmatmul.mubr.f32.gmra.mrb[0].mxu0 %v868
    %v870 = vpop.f32.mrb[0].mxu0
    %v871 = vadd.f32 %v683, %v870
    %v872 = vpop.f32.mrb[0].mxu0
    %873 = vmatprep.mubr.f32.mxu0 0.0
    %v874 = vand.u32 %v140, 4294901760
    %v875 = vsub.f32 %v140, %v874
    %v876 = vand.u32 %v875, 4294901760
    %877 = vmatmul.mubr.f32.gmra.mrb[0].mxu0 %v876
    %v878 = vpop.f32.mrb[0].mxu0
    %v879 = vadd.f32 %v690, %v878
    %v880 = vpop.f32.mrb[0].mxu0
    %881 = vmatprep.mubr.f32.mxu0 0.0
    %v882 = vand.u32 %v143, 4294901760
    %v883 = vsub.f32 %v143, %v882
    %v884 = vand.u32 %v883, 4294901760
    %885 = vmatmul.mubr.f32.gmra.mrb[0].mxu0 %v884
    %v886 = vpop.f32.mrb[0].mxu0
    %v887 = vadd.f32 %v697, %v886
    %v888 = vpop.f32.mrb[0].mxu0
    %889 = vmatprep.mubr.f32.mxu0 0.0
    %v890 = vand.u32 %v146, 4294901760
    %v891 = vsub.f32 %v146, %v890
    %v892 = vand.u32 %v891, 4294901760
    %893 = vmatmul.mubr.f32.gmra.mrb[0].mxu0 %v892
    %v894 = vpop.f32.mrb[0].mxu0
    %v895 = vadd.f32 %v704, %v894
    %v896 = vpop.f32.mrb[0].mxu0
    %897 = vmatprep.mubr.f32.mxu0 0.0
    %v898 = vand.u32 %v149, 4294901760
    %v899 = vsub.f32 %v149, %v898
    %v900 = vand.u32 %v899, 4294901760
    %901 = vmatmul.mubr.f32.gmra.mrb[0].mxu0 %v900
    %v902 = vpop.f32.mrb[0].mxu0
    %v903 = vadd.f32 %v711, %v902
    %v904 = vpop.f32.mrb[0].mxu0
    %905 = vmatprep.mubr.f32.mxu0 0.0
    %v906 = vand.u32 %v152, 4294901760
    %v907 = vsub.f32 %v152, %v906
    %v908 = vand.u32 %v907, 4294901760
    %909 = vmatmul.mubr.f32.gmra.mrb[0].mxu0 %v908
    %v910 = vpop.f32.mrb[0].mxu0
    %v911 = vadd.f32 %v718, %v910
    %v912 = vpop.f32.mrb[0].mxu0
    %913 = vmatprep.mubr.f32.mxu0 0.0
    %v914 = vand.u32 %v155, 4294901760
    %v915 = vsub.f32 %v155, %v914
    %v916 = vand.u32 %v915, 4294901760
    %917 = vmatmul.mubr.f32.gmra.mrb[0].mxu0 %v916
    %v918 = vpop.f32.mrb[0].mxu0
    %v919 = vadd.f32 %v725, %v918
    %v920 = vpop.f32.mrb[0].mxu0
    %921 = vdwg.mxu0
    %922 = vmatprep.subr.mxu0 0.0
    %v923 = vand.u32 %v40, 4294901760
    %v924 = vsub.f32 %v40, %v923
    %v925 = vand.u32 %v924, 4294901760
    %926 = vmatpush1.msra.mxu0 %v925
    %927 = vmatprep.subr.mxu0 0.0
    %928 = vmatpush1.msra.mxu0 0.0
    %929 = vmatprep.subr.mxu0 0.0
    %930 = vmatpush1.msra.mxu0 0.0
    %931 = vmatprep.subr.mxu0 0.0
    %932 = vmatpush1.msra.mxu0 0.0
    %933 = vmatprep.subr.mxu0 0.0
    %934 = vmatpush1.msra.mxu0 0.0
    %935 = vmatprep.subr.mxu0 0.0
    %936 = vmatpush1.msra.mxu0 0.0
    %937 = vmatprep.subr.mxu0 0.0
    %938 = vmatpush1.msra.mxu0 0.0
    %939 = vmatprep.subr.mxu0 0.0
    %940 = vmatpush1.msra.mxu0 0.0
    %941 = vmatprep.subr.mxu0 0.0
    %942 = vmatpush1.msra.mxu0 0.0
    %943 = vmatprep.subr.mxu0 0.0
    %944 = vmatpush1.msra.mxu0 0.0
    %945 = vmatprep.subr.mxu0 0.0
    %946 = vmatpush1.msra.mxu0 0.0
    %947 = vmatprep.subr.mxu0 0.0
    %948 = vmatpush1.msra.mxu0 0.0
    %949 = vmatprep.subr.mxu0 0.0
    %950 = vmatpush1.msra.mxu0 0.0
    %951 = vmatprep.subr.mxu0 0.0
    %952 = vmatpush1.msra.mxu0 0.0
    %953 = vmatprep.subr.mxu0 0.0
    %954 = vmatpush1.msra.mxu0 0.0
    %955 = vmatprep.subr.mxu0 0.0
    %956 = vmatpush1.msra.mxu0 0.0
    %957 = vmatprep.subr.mxu0 0.0
    %958 = vmatpush1.msra.mxu0 0.0
    %959 = vmatprep.subr.mxu0 0.0
    %960 = vmatpush1.msra.mxu0 0.0
    %961 = vmatprep.subr.mxu0 0.0
    %962 = vmatpush1.msra.mxu0 0.0
    %963 = vmatprep.subr.mxu0 0.0
    %964 = vmatpush1.msra.mxu0 0.0
    %965 = vmatprep.subr.mxu0 0.0
    %966 = vmatpush1.msra.mxu0 0.0
    %967 = vmatprep.subr.mxu0 0.0
    %968 = vmatpush1.msra.mxu0 0.0
    %969 = vmatprep.subr.mxu0 0.0
    %970 = vmatpush1.msra.mxu0 0.0
    %971 = vmatprep.subr.mxu0 0.0
    %972 = vmatpush1.msra.mxu0 0.0
    %973 = vmatprep.subr.mxu0 0.0
    %974 = vmatpush1.msra.mxu0 0.0
    %975 = vmatprep.subr.mxu0 0.0
    %976 = vmatpush1.msra.mxu0 0.0
    %977 = vmatprep.subr.mxu0 0.0
    %978 = vmatpush1.msra.mxu0 0.0
    %979 = vmatprep.subr.mxu0 0.0
    %980 = vmatpush1.msra.mxu0 0.0
    %981 = vmatprep.subr.mxu0 0.0
    %982 = vmatpush1.msra.mxu0 0.0
    %983 = vmatprep.subr.mxu0 0.0
    %984 = vmatpush1.msra.mxu0 0.0
    %985 = vmatprep.subr.mxu0 0.0
    %986 = vmatpush1.msra.mxu0 0.0
    %987 = vmatprep.subr.mxu0 0.0
    %988 = vmatpush1.msra.mxu0 0.0
    %989 = vmatprep.mubr.f32.mxu0 0.0
    %v990 = vand.u32 %v110, 4294901760
    %991 = vmatmul.mubr.f32.gmra.mrb[0].mxu0 %v990
    %v992 = vpop.f32.mrb[0].mxu0
    %v993 = vadd.f32 %v799, %v992
    %v994 = vpop.f32.mrb[0].mxu0
    %995 = vmatprep.mubr.f32.mxu0 0.0
    %v996 = vand.u32 %v113, 4294901760
    %997 = vmatmul.mubr.f32.gmra.mrb[0].mxu0 %v996
    %v998 = vpop.f32.mrb[0].mxu0
    %v999 = vadd.f32 %v807, %v998
    %v1000 = vpop.f32.mrb[0].mxu0
    %1001 = vmatprep.mubr.f32.mxu0 0.0
    %v1002 = vand.u32 %v116, 4294901760
    %1003 = vmatmul.mubr.f32.gmra.mrb[0].mxu0 %v1002
    %v1004 = vpop.f32.mrb[0].mxu0
    %v1005 = vadd.f32 %v815, %v1004
    %v1006 = vpop.f32.mrb[0].mxu0
    %1007 = vmatprep.mubr.f32.mxu0 0.0
    %v1008 = vand.u32 %v119, 4294901760
    %1009 = vmatmul.mubr.f32.gmra.mrb[0].mxu0 %v1008
    %v1010 = vpop.f32.mrb[0].mxu0
    %v1011 = vadd.f32 %v823, %v1010
    %v1012 = vpop.f32.mrb[0].mxu0
    %1013 = vmatprep.mubr.f32.mxu0 0.0
    %v1014 = vand.u32 %v122, 4294901760
    %1015 = vmatmul.mubr.f32.gmra.mrb[0].mxu0 %v1014
    %v1016 = vpop.f32.mrb[0].mxu0
    %v1017 = vadd.f32 %v831, %v1016
    %v1018 = vpop.f32.mrb[0].mxu0
    %1019 = vmatprep.mubr.f32.mxu0 0.0
    %v1020 = vand.u32 %v125, 4294901760
    %1021 = vmatmul.mubr.f32.gmra.mrb[0].mxu0 %v1020
    %v1022 = vpop.f32.mrb[0].mxu0
    %v1023 = vadd.f32 %v839, %v1022
    %v1024 = vpop.f32.mrb[0].mxu0
    %1025 = vmatprep.mubr.f32.mxu0 0.0
    %v1026 = vand.u32 %v128, 4294901760
    %1027 = vmatmul.mubr.f32.gmra.mrb[0].mxu0 %v1026
    %v1028 = vpop.f32.mrb[0].mxu0
    %v1029 = vadd.f32 %v847, %v1028
    %v1030 = vpop.f32.mrb[0].mxu0
    %1031 = vmatprep.mubr.f32.mxu0 0.0
    %v1032 = vand.u32 %v131, 4294901760
    %1033 = vmatmul.mubr.f32.gmra.mrb[0].mxu0 %v1032
    %v1034 = vpop.f32.mrb[0].mxu0
    %v1035 = vadd.f32 %v855, %v1034
    %v1036 = vpop.f32.mrb[0].mxu0
    %1037 = vmatprep.mubr.f32.mxu0 0.0
    %v1038 = vand.u32 %v134, 4294901760
    %1039 = vmatmul.mubr.f32.gmra.mrb[0].mxu0 %v1038
    %v1040 = vpop.f32.mrb[0].mxu0
    %v1041 = vadd.f32 %v863, %v1040
    %v1042 = vpop.f32.mrb[0].mxu0
    %1043 = vmatprep.mubr.f32.mxu0 0.0
    %v1044 = vand.u32 %v137, 4294901760
    %1045 = vmatmul.mubr.f32.gmra.mrb[0].mxu0 %v1044
    %v1046 = vpop.f32.mrb[0].mxu0
    %v1047 = vadd.f32 %v871, %v1046
    %v1048 = vpop.f32.mrb[0].mxu0
    %1049 = vmatprep.mubr.f32.mxu0 0.0
    %v1050 = vand.u32 %v140, 4294901760
    %1051 = vmatmul.mubr.f32.gmra.mrb[0].mxu0 %v1050
    %v1052 = vpop.f32.mrb[0].mxu0
    %v1053 = vadd.f32 %v879, %v1052
    %v1054 = vpop.f32.mrb[0].mxu0
    %1055 = vmatprep.mubr.f32.mxu0 0.0
    %v1056 = vand.u32 %v143, 4294901760
    %1057 = vmatmul.mubr.f32.gmra.mrb[0].mxu0 %v1056
    %v1058 = vpop.f32.mrb[0].mxu0
    %v1059 = vadd.f32 %v887, %v1058
    %v1060 = vpop.f32.mrb[0].mxu0
    %1061 = vmatprep.mubr.f32.mxu0 0.0
    %v1062 = vand.u32 %v146, 4294901760
    %1063 = vmatmul.mubr.f32.gmra.mrb[0].mxu0 %v1062
    %v1064 = vpop.f32.mrb[0].mxu0
    %v1065 = vadd.f32 %v895, %v1064
    %v1066 = vpop.f32.mrb[0].mxu0
    %1067 = vmatprep.mubr.f32.mxu0 0.0
    %v1068 = vand.u32 %v149, 4294901760
    %1069 = vmatmul.mubr.f32.gmra.mrb[0].mxu0 %v1068
    %v1070 = vpop.f32.mrb[0].mxu0
    %v1071 = vadd.f32 %v903, %v1070
    %v1072 = vpop.f32.mrb[0].mxu0
    %1073 = vmatprep.mubr.f32.mxu0 0.0
    %v1074 = vand.u32 %v152, 4294901760
    %1075 = vmatmul.mubr.f32.gmra.mrb[0].mxu0 %v1074
    %v1076 = vpop.f32.mrb[0].mxu0
    %v1077 = vadd.f32 %v911, %v1076
    %v1078 = vpop.f32.mrb[0].mxu0
    %1079 = vmatprep.mubr.f32.mxu0 0.0
    %v1080 = vand.u32 %v155, 4294901760
    %1081 = vmatmul.mubr.f32.gmra.mrb[0].mxu0 %v1080
    %v1082 = vpop.f32.mrb[0].mxu0
    %v1083 = vadd.f32 %v919, %v1082
    %v1084 = vpop.f32.mrb[0].mxu0
    %1085 = vdwg.mxu0
    %1086 = vmatprep.subr.mxu0 0.0
    %v1087 = vand.u32 %v40, 4294901760
    %1088 = vmatpush1.msra.mxu0 %v1087
    %1089 = vmatprep.subr.mxu0 0.0
    %1090 = vmatpush1.msra.mxu0 0.0
    %1091 = vmatprep.subr.mxu0 0.0
    %1092 = vmatpush1.msra.mxu0 0.0
    %1093 = vmatprep.subr.mxu0 0.0
    %1094 = vmatpush1.msra.mxu0 0.0
    %1095 = vmatprep.subr.mxu0 0.0
    %1096 = vmatpush1.msra.mxu0 0.0
    %1097 = vmatprep.subr.mxu0 0.0
    %1098 = vmatpush1.msra.mxu0 0.0
    %1099 = vmatprep.subr.mxu0 0.0
    %1100 = vmatpush1.msra.mxu0 0.0
    %1101 = vmatprep.subr.mxu0 0.0
    %1102 = vmatpush1.msra.mxu0 0.0
    %1103 = vmatprep.subr.mxu0 0.0
    %1104 = vmatpush1.msra.mxu0 0.0
    %1105 = vmatprep.subr.mxu0 0.0
    %1106 = vmatpush1.msra.mxu0 0.0
    %1107 = vmatprep.subr.mxu0 0.0
    %1108 = vmatpush1.msra.mxu0 0.0
    %1109 = vmatprep.subr.mxu0 0.0
    %1110 = vmatpush1.msra.mxu0 0.0
    %1111 = vmatprep.subr.mxu0 0.0
    %1112 = vmatpush1.msra.mxu0 0.0
    %1113 = vmatprep.subr.mxu0 0.0
    %1114 = vmatpush1.msra.mxu0 0.0
    %1115 = vmatprep.subr.mxu0 0.0
    %1116 = vmatpush1.msra.mxu0 0.0
    %1117 = vmatprep.subr.mxu0 0.0
    %1118 = vmatpush1.msra.mxu0 0.0
    %1119 = vmatprep.subr.mxu0 0.0
    %1120 = vmatpush1.msra.mxu0 0.0
    %1121 = vmatprep.subr.mxu0 0.0
    %1122 = vmatpush1.msra.mxu0 0.0
    %1123 = vmatprep.subr.mxu0 0.0
    %1124 = vmatpush1.msra.mxu0 0.0
    %1125 = vmatprep.subr.mxu0 0.0
    %1126 = vmatpush1.msra.mxu0 0.0
    %1127 = vmatprep.subr.mxu0 0.0
    %1128 = vmatpush1.msra.mxu0 0.0
    %1129 = vmatprep.subr.mxu0 0.0
    %1130 = vmatpush1.msra.mxu0 0.0
    %1131 = vmatprep.subr.mxu0 0.0
    %1132 = vmatpush1.msra.mxu0 0.0
    %1133 = vmatprep.subr.mxu0 0.0
    %1134 = vmatpush1.msra.mxu0 0.0
    %1135 = vmatprep.subr.mxu0 0.0
    %1136 = vmatpush1.msra.mxu0 0.0
    %1137 = vmatprep.subr.mxu0 0.0
    %1138 = vmatpush1.msra.mxu0 0.0
    %1139 = vmatprep.subr.mxu0 0.0
    %1140 = vmatpush1.msra.mxu0 0.0
    %1141 = vmatprep.subr.mxu0 0.0
    %1142 = vmatpush1.msra.mxu0 0.0
    %1143 = vmatprep.subr.mxu0 0.0
    %1144 = vmatpush1.msra.mxu0 0.0
    %1145 = vmatprep.subr.mxu0 0.0
    %1146 = vmatpush1.msra.mxu0 0.0
    %1147 = vmatprep.subr.mxu0 0.0
    %1148 = vmatpush1.msra.mxu0 0.0
    %1149 = vmatprep.subr.mxu0 0.0
    %1150 = vmatpush1.msra.mxu0 0.0
    %1151 = vmatprep.mubr.f32.mxu0 0.0
    %v1152 = vand.u32 %v110, 4294901760
    %1153 = vmatmul.mubr.f32.gmra.mrb[0].mxu0 %v1152
    %v1154 = vpop.f32.mrb[0].mxu0
    %v1155 = vadd.f32 %v993, %v1154
    %v1156 = vpop.f32.mrb[0].mxu0
    %1157 = vmatprep.mubr.f32.mxu0 0.0
    %v1158 = vand.u32 %v113, 4294901760
    %1159 = vmatmul.mubr.f32.gmra.mrb[0].mxu0 %v1158
    %v1160 = vpop.f32.mrb[0].mxu0
    %v1161 = vadd.f32 %v999, %v1160
    %v1162 = vpop.f32.mrb[0].mxu0
    %1163 = vmatprep.mubr.f32.mxu0 0.0
    %v1164 = vand.u32 %v116, 4294901760
    %1165 = vmatmul.mubr.f32.gmra.mrb[0].mxu0 %v1164
    %v1166 = vpop.f32.mrb[0].mxu0
    %v1167 = vadd.f32 %v1005, %v1166
    %v1168 = vpop.f32.mrb[0].mxu0
    %1169 = vmatprep.mubr.f32.mxu0 0.0
    %v1170 = vand.u32 %v119, 4294901760
    %1171 = vmatmul.mubr.f32.gmra.mrb[0].mxu0 %v1170
    %v1172 = vpop.f32.mrb[0].mxu0
    %v1173 = vadd.f32 %v1011, %v1172
    %v1174 = vpop.f32.mrb[0].mxu0
    %1175 = vmatprep.mubr.f32.mxu0 0.0
    %v1176 = vand.u32 %v122, 4294901760
    %1177 = vmatmul.mubr.f32.gmra.mrb[0].mxu0 %v1176
    %v1178 = vpop.f32.mrb[0].mxu0
    %v1179 = vadd.f32 %v1017, %v1178
    %v1180 = vpop.f32.mrb[0].mxu0
    %1181 = vmatprep.mubr.f32.mxu0 0.0
    %v1182 = vand.u32 %v125, 4294901760
    %1183 = vmatmul.mubr.f32.gmra.mrb[0].mxu0 %v1182
    %v1184 = vpop.f32.mrb[0].mxu0
    %v1185 = vadd.f32 %v1023, %v1184
    %v1186 = vpop.f32.mrb[0].mxu0
    %1187 = vmatprep.mubr.f32.mxu0 0.0
    %v1188 = vand.u32 %v128, 4294901760
    %1189 = vmatmul.mubr.f32.gmra.mrb[0].mxu0 %v1188
    %v1190 = vpop.f32.mrb[0].mxu0
    %v1191 = vadd.f32 %v1029, %v1190
    %v1192 = vpop.f32.mrb[0].mxu0
    %1193 = vmatprep.mubr.f32.mxu0 0.0
    %v1194 = vand.u32 %v131, 4294901760
    %1195 = vmatmul.mubr.f32.gmra.mrb[0].mxu0 %v1194
    %v1196 = vpop.f32.mrb[0].mxu0
    %v1197 = vadd.f32 %v1035, %v1196
    %v1198 = vpop.f32.mrb[0].mxu0
    %1199 = vmatprep.mubr.f32.mxu0 0.0
    %v1200 = vand.u32 %v134, 4294901760
    %1201 = vmatmul.mubr.f32.gmra.mrb[0].mxu0 %v1200
    %v1202 = vpop.f32.mrb[0].mxu0
    %v1203 = vadd.f32 %v1041, %v1202
    %v1204 = vpop.f32.mrb[0].mxu0
    %1205 = vmatprep.mubr.f32.mxu0 0.0
    %v1206 = vand.u32 %v137, 4294901760
    %1207 = vmatmul.mubr.f32.gmra.mrb[0].mxu0 %v1206
    %v1208 = vpop.f32.mrb[0].mxu0
    %v1209 = vadd.f32 %v1047, %v1208
    %v1210 = vpop.f32.mrb[0].mxu0
    %1211 = vmatprep.mubr.f32.mxu0 0.0
    %v1212 = vand.u32 %v140, 4294901760
    %1213 = vmatmul.mubr.f32.gmra.mrb[0].mxu0 %v1212
    %v1214 = vpop.f32.mrb[0].mxu0
    %v1215 = vadd.f32 %v1053, %v1214
    %v1216 = vpop.f32.mrb[0].mxu0
    %1217 = vmatprep.mubr.f32.mxu0 0.0
    %v1218 = vand.u32 %v143, 4294901760
    %1219 = vmatmul.mubr.f32.gmra.mrb[0].mxu0 %v1218
    %v1220 = vpop.f32.mrb[0].mxu0
    %v1221 = vadd.f32 %v1059, %v1220
    %v1222 = vpop.f32.mrb[0].mxu0
    %1223 = vmatprep.mubr.f32.mxu0 0.0
    %v1224 = vand.u32 %v146, 4294901760
    %1225 = vmatmul.mubr.f32.gmra.mrb[0].mxu0 %v1224
    %v1226 = vpop.f32.mrb[0].mxu0
    %v1227 = vadd.f32 %v1065, %v1226
    %v1228 = vpop.f32.mrb[0].mxu0
    %1229 = vmatprep.mubr.f32.mxu0 0.0
    %v1230 = vand.u32 %v149, 4294901760
    %1231 = vmatmul.mubr.f32.gmra.mrb[0].mxu0 %v1230
    %v1232 = vpop.f32.mrb[0].mxu0
    %v1233 = vadd.f32 %v1071, %v1232
    %v1234 = vpop.f32.mrb[0].mxu0
    %1235 = vmatprep.mubr.f32.mxu0 0.0
    %v1236 = vand.u32 %v152, 4294901760
    %1237 = vmatmul.mubr.f32.gmra.mrb[0].mxu0 %v1236
    %v1238 = vpop.f32.mrb[0].mxu0
    %v1239 = vadd.f32 %v1077, %v1238
    %v1240 = vpop.f32.mrb[0].mxu0
    %1241 = vmatprep.mubr.f32.mxu0 0.0
    %v1242 = vand.u32 %v155, 4294901760
    %1243 = vmatmul.mubr.f32.gmra.mrb[0].mxu0 %v1242
    %v1244 = vpop.f32.mrb[0].mxu0
    %v1245 = vadd.f32 %v1083, %v1244
    %v1246 = vpop.f32.mrb[0].mxu0
    %1247 = vdwg.mxu0
    %v1249 = vlaneseq
    %v1250 = vshrl.u32 %v1249, 7
    %v1251 = vsub.s32 0, %v1250
    %v1252 = vrot.slane %v43, %v1251
    %v1254 = vadd.f32 %v63, %v1252
    %v1255 = vadd.f32 %v66, %v1252
    %v1256 = vadd.f32 %v69, %v1252
    %v1257 = vadd.f32 %v72, %v1252
    %v1258 = vadd.f32 %v75, %v1252
    %v1259 = vadd.f32 %v78, %v1252
    %v1260 = vadd.f32 %v81, %v1252
    %v1261 = vadd.f32 %v84, %v1252
    %v1262 = vadd.f32 %v87, %v1252
    %v1263 = vadd.f32 %v90, %v1252
    %v1264 = vadd.f32 %v93, %v1252
    %v1265 = vadd.f32 %v96, %v1252
    %v1266 = vadd.f32 %v99, %v1252
    %v1267 = vadd.f32 %v102, %v1252
    %v1268 = vadd.f32 %v105, %v1252
    %v1269 = vadd.f32 %v108, %v1252
    %v1270 = vmul.f32 %v1155, 2.0
    %v1271 = vmul.f32 %v1161, 2.0
    %v1272 = vmul.f32 %v1167, 2.0
    %v1273 = vmul.f32 %v1173, 2.0
    %v1274 = vmul.f32 %v1179, 2.0
    %v1275 = vmul.f32 %v1185, 2.0
    %v1276 = vmul.f32 %v1191, 2.0
    %v1277 = vmul.f32 %v1197, 2.0
    %v1278 = vmul.f32 %v1203, 2.0
    %v1279 = vmul.f32 %v1209, 2.0
    %v1280 = vmul.f32 %v1215, 2.0
    %v1281 = vmul.f32 %v1221, 2.0
    %v1282 = vmul.f32 %v1227, 2.0
    %v1283 = vmul.f32 %v1233, 2.0
    %v1284 = vmul.f32 %v1239, 2.0
    %v1285 = vmul.f32 %v1245, 2.0
    %v1286 = vsub.f32 %v1254, %v1270
    %v1287 = vsub.f32 %v1255, %v1271
    %v1288 = vsub.f32 %v1256, %v1272
    %v1289 = vsub.f32 %v1257, %v1273
    %v1290 = vsub.f32 %v1258, %v1274
    %v1291 = vsub.f32 %v1259, %v1275
    %v1292 = vsub.f32 %v1260, %v1276
    %v1293 = vsub.f32 %v1261, %v1277
    %v1294 = vsub.f32 %v1262, %v1278
    %v1295 = vsub.f32 %v1263, %v1279
    %v1296 = vsub.f32 %v1264, %v1280
    %v1297 = vsub.f32 %v1265, %v1281
    %v1298 = vsub.f32 %v1266, %v1282
    %v1299 = vsub.f32 %v1267, %v1283
    %v1300 = vsub.f32 %v1268, %v1284
    %v1301 = vsub.f32 %v1269, %v1285
    %vm1302 = vcmask 130048
    %v1303 = vsel %vm1302, %v1286, inf
    %1304 = vmin.index.xlane.f32.xlu0 %v1303
    %v1305 = vpop.xlane.xlu0 %1304
    %v1306 = vsel %vm1302, %v1287, inf
    %1307 = vmin.index.xlane.f32.xlu0 %v1306
    %v1308 = vpop.xlane.xlu0 %1307
    %v1309 = vsel %vm1302, %v1288, inf
    %1310 = vmin.index.xlane.f32.xlu0 %v1309
    %v1311 = vpop.xlane.xlu0 %1310
    %v1312 = vsel %vm1302, %v1289, inf
    %1313 = vmin.index.xlane.f32.xlu0 %v1312
    %v1314 = vpop.xlane.xlu0 %1313
    %v1315 = vsel %vm1302, %v1290, inf
    %1316 = vmin.index.xlane.f32.xlu0 %v1315
    %v1317 = vpop.xlane.xlu0 %1316
    %v1318 = vsel %vm1302, %v1291, inf
    %1319 = vmin.index.xlane.f32.xlu0 %v1318
    %v1320 = vpop.xlane.xlu0 %1319
    %v1321 = vsel %vm1302, %v1292, inf
    %1322 = vmin.index.xlane.f32.xlu0 %v1321
    %v1323 = vpop.xlane.xlu0 %1322
    %v1324 = vsel %vm1302, %v1293, inf
    %1325 = vmin.index.xlane.f32.xlu0 %v1324
    %v1326 = vpop.xlane.xlu0 %1325
    %v1327 = vsel %vm1302, %v1294, inf
    %1328 = vmin.index.xlane.f32.xlu0 %v1327
    %v1329 = vpop.xlane.xlu0 %1328
    %v1330 = vsel %vm1302, %v1295, inf
    %1331 = vmin.index.xlane.f32.xlu0 %v1330
    %v1332 = vpop.xlane.xlu0 %1331
    %v1333 = vsel %vm1302, %v1296, inf
    %1334 = vmin.index.xlane.f32.xlu0 %v1333
    %v1335 = vpop.xlane.xlu0 %1334
    %v1336 = vsel %vm1302, %v1297, inf
    %1337 = vmin.index.xlane.f32.xlu0 %v1336
    %v1338 = vpop.xlane.xlu0 %1337
    %v1339 = vsel %vm1302, %v1298, inf
    %1340 = vmin.index.xlane.f32.xlu0 %v1339
    %v1341 = vpop.xlane.xlu0 %1340
    %v1342 = vsel %vm1302, %v1299, inf
    %1343 = vmin.index.xlane.f32.xlu0 %v1342
    %v1344 = vpop.xlane.xlu0 %1343
    %v1345 = vsel %vm1302, %v1300, inf
    %1346 = vmin.index.xlane.f32.xlu0 %v1345
    %v1347 = vpop.xlane.xlu0 %1346
    %v1348 = vsel %vm1302, %v1301, inf
    %1349 = vmin.index.xlane.f32.xlu0 %v1348
    %v1350 = vpop.xlane.xlu0 %1349
    %v1351 = vlaneseq
    %v1352 = vand.u32 %v1351, 127
    %vm1353 = vcmp.eq.s32.totalorder %v1352, %v1305
    %vm1354 = vcmp.eq.s32.totalorder %v1352, %v1308
    %vm1355 = vcmp.eq.s32.totalorder %v1352, %v1311
    %vm1356 = vcmp.eq.s32.totalorder %v1352, %v1314
    %vm1357 = vcmp.eq.s32.totalorder %v1352, %v1317
    %vm1358 = vcmp.eq.s32.totalorder %v1352, %v1320
    %vm1359 = vcmp.eq.s32.totalorder %v1352, %v1323
    %vm1360 = vcmp.eq.s32.totalorder %v1352, %v1326
    %vm1361 = vcmp.eq.s32.totalorder %v1352, %v1329
    %vm1362 = vcmp.eq.s32.totalorder %v1352, %v1332
    %vm1363 = vcmp.eq.s32.totalorder %v1352, %v1335
    %vm1364 = vcmp.eq.s32.totalorder %v1352, %v1338
    %vm1365 = vcmp.eq.s32.totalorder %v1352, %v1341
    %vm1366 = vcmp.eq.s32.totalorder %v1352, %v1344
    %vm1367 = vcmp.eq.s32.totalorder %v1352, %v1347
    %vm1368 = vcmp.eq.s32.totalorder %v1352, %v1350
    %v1369 = vsel %vm1353, 1, 0
    %v1370 = vsel %vm1354, 1, 0
    %v1371 = vsel %vm1355, 1, 0
    %v1372 = vsel %vm1356, 1, 0
    %v1373 = vsel %vm1357, 1, 0
    %v1374 = vsel %vm1358, 1, 0
    %v1375 = vsel %vm1359, 1, 0
    %v1376 = vsel %vm1360, 1, 0
    %v1377 = vsel %vm1361, 1, 0
    %v1378 = vsel %vm1362, 1, 0
    %v1379 = vsel %vm1363, 1, 0
    %v1380 = vsel %vm1364, 1, 0
    %v1381 = vsel %vm1365, 1, 0
    %v1382 = vsel %vm1366, 1, 0
    %v1383 = vsel %vm1367, 1, 0
    %v1384 = vsel %vm1368, 1, 0
    %v1385 = vcvt.s32.f32 %v1369
    %v1386 = vcvt.s32.f32 %v1370
    %v1387 = vcvt.s32.f32 %v1371
    %v1388 = vcvt.s32.f32 %v1372
    %v1389 = vcvt.s32.f32 %v1373
    %v1390 = vcvt.s32.f32 %v1374
    %v1391 = vcvt.s32.f32 %v1375
    %v1392 = vcvt.s32.f32 %v1376
    %v1393 = vcvt.s32.f32 %v1377
    %v1394 = vcvt.s32.f32 %v1378
    %v1395 = vcvt.s32.f32 %v1379
    %v1396 = vcvt.s32.f32 %v1380
    %v1397 = vcvt.s32.f32 %v1381
    %v1398 = vcvt.s32.f32 %v1382
    %v1399 = vcvt.s32.f32 %v1383
    %v1400 = vcvt.s32.f32 %v1384
    %v1402 = vsel %vm1302, %v1385, 0
    %v1405 = vsel %vm1302, %v1386, 0
    %v1408 = vsel %vm1302, %v1387, 0
    %v1411 = vsel %vm1302, %v1388, 0
    %v1414 = vsel %vm1302, %v1389, 0
    %v1417 = vsel %vm1302, %v1390, 0
    %v1420 = vsel %vm1302, %v1391, 0
    %v1423 = vsel %vm1302, %v1392, 0
    %v1426 = vsel %vm1302, %v1393, 0
    %v1429 = vsel %vm1302, %v1394, 0
    %v1432 = vsel %vm1302, %v1395, 0
    %v1435 = vsel %vm1302, %v1396, 0
    %v1438 = vsel %vm1302, %v1397, 0
    %v1441 = vsel %vm1302, %v1398, 0
    %v1444 = vsel %vm1302, %v1399, 0
    %v1447 = vsel %vm1302, %v1400, 0
    %1449 = vmatprep.subr.mxu0 0.0
    %v1450 = vand.u32 %v41, 4294901760
    %1451 = vmatpush1.msra.mxu0 %v1450
    %1452 = vmatprep.subr.mxu0 0.0
    %v1453 = vand.u32 %v42, 4294901760
    %1454 = vmatpush1.msra.mxu0 %v1453
    %1455 = vmatprep.subr.mxu0 0.0
    %1456 = vmatpush1.msra.mxu0 0.0
    %1457 = vmatprep.subr.mxu0 0.0
    %1458 = vmatpush1.msra.mxu0 0.0
    %1459 = vmatprep.subr.mxu0 0.0
    %1460 = vmatpush1.msra.mxu0 0.0
    %1461 = vmatprep.subr.mxu0 0.0
    %1462 = vmatpush1.msra.mxu0 0.0
    %1463 = vmatprep.subr.mxu0 0.0
    %1464 = vmatpush1.msra.mxu0 0.0
    %1465 = vmatprep.subr.mxu0 0.0
    %1466 = vmatpush1.msra.mxu0 0.0
    %1467 = vmatprep.subr.mxu0 0.0
    %1468 = vmatpush1.msra.mxu0 0.0
    %1469 = vmatprep.subr.mxu0 0.0
    %1470 = vmatpush1.msra.mxu0 0.0
    %1471 = vmatprep.subr.mxu0 0.0
    %1472 = vmatpush1.msra.mxu0 0.0
    %1473 = vmatprep.subr.mxu0 0.0
    %1474 = vmatpush1.msra.mxu0 0.0
    %1475 = vmatprep.subr.mxu0 0.0
    %1476 = vmatpush1.msra.mxu0 0.0
    %1477 = vmatprep.subr.mxu0 0.0
    %1478 = vmatpush1.msra.mxu0 0.0
    %1479 = vmatprep.subr.mxu0 0.0
    %1480 = vmatpush1.msra.mxu0 0.0
    %1481 = vmatprep.subr.mxu0 0.0
    %1482 = vmatpush1.msra.mxu0 0.0
    %1483 = vmatprep.subr.mxu0 0.0
    %1484 = vmatpush1.msra.mxu0 0.0
    %1485 = vmatprep.subr.mxu0 0.0
    %1486 = vmatpush1.msra.mxu0 0.0
    %1487 = vmatprep.subr.mxu0 0.0
    %1488 = vmatpush1.msra.mxu0 0.0
    %1489 = vmatprep.subr.mxu0 0.0
    %1490 = vmatpush1.msra.mxu0 0.0
    %1491 = vmatprep.subr.mxu0 0.0
    %1492 = vmatpush1.msra.mxu0 0.0
    %1493 = vmatprep.subr.mxu0 0.0
    %1494 = vmatpush1.msra.mxu0 0.0
    %1495 = vmatprep.subr.mxu0 0.0
    %1496 = vmatpush1.msra.mxu0 0.0
    %1497 = vmatprep.subr.mxu0 0.0
    %1498 = vmatpush1.msra.mxu0 0.0
    %1499 = vmatprep.subr.mxu0 0.0
    %1500 = vmatpush1.msra.mxu0 0.0
    %1501 = vmatprep.subr.mxu0 0.0
    %1502 = vmatpush1.msra.mxu0 0.0
    %1503 = vmatprep.subr.mxu0 0.0
    %1504 = vmatpush1.msra.mxu0 0.0
    %1505 = vmatprep.subr.mxu0 0.0
    %1506 = vmatpush1.msra.mxu0 0.0
    %1507 = vmatprep.subr.mxu0 0.0
    %1508 = vmatpush1.msra.mxu0 0.0
    %1509 = vmatprep.subr.mxu0 0.0
    %1510 = vmatpush1.msra.mxu0 0.0
    %1511 = vmatprep.subr.mxu0 0.0
    %1512 = vmatpush1.msra.mxu0 0.0
    %1513 = vmatprep.subr.mxu0 0.0
    %1514 = vmatpush1.msra.mxu0 0.0
    %1515 = vmatprep.mubr.f32.mxu0 0.0
    %v1516 = vand.u32 %v1402, 4294901760
    %v1517 = vsub.f32 %v1402, %v1516
    %v1518 = vand.u32 %v1517, 4294901760
    %v1519 = vsub.f32 %v1517, %v1518
    %v1520 = vand.u32 %v1519, 4294901760
    %1521 = vmatmul.mubr.f32.gmra.mrb[0].mxu0 %v1520
    %v1522 = vpop.f32.mrb[0].mxu0
    %v1523 = vadd.f32 0.0, %v1522
    %v1524 = vpop.f32.mrb[0].mxu0
    %1525 = vmatprep.mubr.f32.mxu0 0.0
    %v1526 = vand.u32 %v1405, 4294901760
    %v1527 = vsub.f32 %v1405, %v1526
    %v1528 = vand.u32 %v1527, 4294901760
    %v1529 = vsub.f32 %v1527, %v1528
    %v1530 = vand.u32 %v1529, 4294901760
    %1531 = vmatmul.mubr.f32.gmra.mrb[0].mxu0 %v1530
    %v1532 = vpop.f32.mrb[0].mxu0
    %v1533 = vadd.f32 0.0, %v1532
    %v1534 = vpop.f32.mrb[0].mxu0
    %1535 = vmatprep.mubr.f32.mxu0 0.0
    %v1536 = vand.u32 %v1408, 4294901760
    %v1537 = vsub.f32 %v1408, %v1536
    %v1538 = vand.u32 %v1537, 4294901760
    %v1539 = vsub.f32 %v1537, %v1538
    %v1540 = vand.u32 %v1539, 4294901760
    %1541 = vmatmul.mubr.f32.gmra.mrb[0].mxu0 %v1540
    %v1542 = vpop.f32.mrb[0].mxu0
    %v1543 = vadd.f32 0.0, %v1542
    %v1544 = vpop.f32.mrb[0].mxu0
    %1545 = vmatprep.mubr.f32.mxu0 0.0
    %v1546 = vand.u32 %v1411, 4294901760
    %v1547 = vsub.f32 %v1411, %v1546
    %v1548 = vand.u32 %v1547, 4294901760
    %v1549 = vsub.f32 %v1547, %v1548
    %v1550 = vand.u32 %v1549, 4294901760
    %1551 = vmatmul.mubr.f32.gmra.mrb[0].mxu0 %v1550
    %v1552 = vpop.f32.mrb[0].mxu0
    %v1553 = vadd.f32 0.0, %v1552
    %v1554 = vpop.f32.mrb[0].mxu0
    %1555 = vmatprep.mubr.f32.mxu0 0.0
    %v1556 = vand.u32 %v1414, 4294901760
    %v1557 = vsub.f32 %v1414, %v1556
    %v1558 = vand.u32 %v1557, 4294901760
    %v1559 = vsub.f32 %v1557, %v1558
    %v1560 = vand.u32 %v1559, 4294901760
    %1561 = vmatmul.mubr.f32.gmra.mrb[0].mxu0 %v1560
    %v1562 = vpop.f32.mrb[0].mxu0
    %v1563 = vadd.f32 0.0, %v1562
    %v1564 = vpop.f32.mrb[0].mxu0
    %1565 = vmatprep.mubr.f32.mxu0 0.0
    %v1566 = vand.u32 %v1417, 4294901760
    %v1567 = vsub.f32 %v1417, %v1566
    %v1568 = vand.u32 %v1567, 4294901760
    %v1569 = vsub.f32 %v1567, %v1568
    %v1570 = vand.u32 %v1569, 4294901760
    %1571 = vmatmul.mubr.f32.gmra.mrb[0].mxu0 %v1570
    %v1572 = vpop.f32.mrb[0].mxu0
    %v1573 = vadd.f32 0.0, %v1572
    %v1574 = vpop.f32.mrb[0].mxu0
    %1575 = vmatprep.mubr.f32.mxu0 0.0
    %v1576 = vand.u32 %v1420, 4294901760
    %v1577 = vsub.f32 %v1420, %v1576
    %v1578 = vand.u32 %v1577, 4294901760
    %v1579 = vsub.f32 %v1577, %v1578
    %v1580 = vand.u32 %v1579, 4294901760
    %1581 = vmatmul.mubr.f32.gmra.mrb[0].mxu0 %v1580
    %v1582 = vpop.f32.mrb[0].mxu0
    %v1583 = vadd.f32 0.0, %v1582
    %v1584 = vpop.f32.mrb[0].mxu0
    %1585 = vmatprep.mubr.f32.mxu0 0.0
    %v1586 = vand.u32 %v1423, 4294901760
    %v1587 = vsub.f32 %v1423, %v1586
    %v1588 = vand.u32 %v1587, 4294901760
    %v1589 = vsub.f32 %v1587, %v1588
    %v1590 = vand.u32 %v1589, 4294901760
    %1591 = vmatmul.mubr.f32.gmra.mrb[0].mxu0 %v1590
    %v1592 = vpop.f32.mrb[0].mxu0
    %v1593 = vadd.f32 0.0, %v1592
    %v1594 = vpop.f32.mrb[0].mxu0
    %1595 = vmatprep.mubr.f32.mxu0 0.0
    %v1596 = vand.u32 %v1426, 4294901760
    %v1597 = vsub.f32 %v1426, %v1596
    %v1598 = vand.u32 %v1597, 4294901760
    %v1599 = vsub.f32 %v1597, %v1598
    %v1600 = vand.u32 %v1599, 4294901760
    %1601 = vmatmul.mubr.f32.gmra.mrb[0].mxu0 %v1600
    %v1602 = vpop.f32.mrb[0].mxu0
    %v1603 = vadd.f32 0.0, %v1602
    %v1604 = vpop.f32.mrb[0].mxu0
    %1605 = vmatprep.mubr.f32.mxu0 0.0
    %v1606 = vand.u32 %v1429, 4294901760
    %v1607 = vsub.f32 %v1429, %v1606
    %v1608 = vand.u32 %v1607, 4294901760
    %v1609 = vsub.f32 %v1607, %v1608
    %v1610 = vand.u32 %v1609, 4294901760
    %1611 = vmatmul.mubr.f32.gmra.mrb[0].mxu0 %v1610
    %v1612 = vpop.f32.mrb[0].mxu0
    %v1613 = vadd.f32 0.0, %v1612
    %v1614 = vpop.f32.mrb[0].mxu0
    %1615 = vmatprep.mubr.f32.mxu0 0.0
    %v1616 = vand.u32 %v1432, 4294901760
    %v1617 = vsub.f32 %v1432, %v1616
    %v1618 = vand.u32 %v1617, 4294901760
    %v1619 = vsub.f32 %v1617, %v1618
    %v1620 = vand.u32 %v1619, 4294901760
    %1621 = vmatmul.mubr.f32.gmra.mrb[0].mxu0 %v1620
    %v1622 = vpop.f32.mrb[0].mxu0
    %v1623 = vadd.f32 0.0, %v1622
    %v1624 = vpop.f32.mrb[0].mxu0
    %1625 = vmatprep.mubr.f32.mxu0 0.0
    %v1626 = vand.u32 %v1435, 4294901760
    %v1627 = vsub.f32 %v1435, %v1626
    %v1628 = vand.u32 %v1627, 4294901760
    %v1629 = vsub.f32 %v1627, %v1628
    %v1630 = vand.u32 %v1629, 4294901760
    %1631 = vmatmul.mubr.f32.gmra.mrb[0].mxu0 %v1630
    %v1632 = vpop.f32.mrb[0].mxu0
    %v1633 = vadd.f32 0.0, %v1632
    %v1634 = vpop.f32.mrb[0].mxu0
    %1635 = vmatprep.mubr.f32.mxu0 0.0
    %v1636 = vand.u32 %v1438, 4294901760
    %v1637 = vsub.f32 %v1438, %v1636
    %v1638 = vand.u32 %v1637, 4294901760
    %v1639 = vsub.f32 %v1637, %v1638
    %v1640 = vand.u32 %v1639, 4294901760
    %1641 = vmatmul.mubr.f32.gmra.mrb[0].mxu0 %v1640
    %v1642 = vpop.f32.mrb[0].mxu0
    %v1643 = vadd.f32 0.0, %v1642
    %v1644 = vpop.f32.mrb[0].mxu0
    %1645 = vmatprep.mubr.f32.mxu0 0.0
    %v1646 = vand.u32 %v1441, 4294901760
    %v1647 = vsub.f32 %v1441, %v1646
    %v1648 = vand.u32 %v1647, 4294901760
    %v1649 = vsub.f32 %v1647, %v1648
    %v1650 = vand.u32 %v1649, 4294901760
    %1651 = vmatmul.mubr.f32.gmra.mrb[0].mxu0 %v1650
    %v1652 = vpop.f32.mrb[0].mxu0
    %v1653 = vadd.f32 0.0, %v1652
    %v1654 = vpop.f32.mrb[0].mxu0
    %1655 = vmatprep.mubr.f32.mxu0 0.0
    %v1656 = vand.u32 %v1444, 4294901760
    %v1657 = vsub.f32 %v1444, %v1656
    %v1658 = vand.u32 %v1657, 4294901760
    %v1659 = vsub.f32 %v1657, %v1658
    %v1660 = vand.u32 %v1659, 4294901760
    %1661 = vmatmul.mubr.f32.gmra.mrb[0].mxu0 %v1660
    %v1662 = vpop.f32.mrb[0].mxu0
    %v1663 = vadd.f32 0.0, %v1662
    %v1664 = vpop.f32.mrb[0].mxu0
    %1665 = vmatprep.mubr.f32.mxu0 0.0
    %v1666 = vand.u32 %v1447, 4294901760
    %v1667 = vsub.f32 %v1447, %v1666
    %v1668 = vand.u32 %v1667, 4294901760
    %v1669 = vsub.f32 %v1667, %v1668
    %v1670 = vand.u32 %v1669, 4294901760
    %1671 = vmatmul.mubr.f32.gmra.mrb[0].mxu0 %v1670
    %v1672 = vpop.f32.mrb[0].mxu0
    %v1673 = vadd.f32 0.0, %v1672
    %v1674 = vpop.f32.mrb[0].mxu0
    %1675 = vdwg.mxu0
    %1676 = vmatprep.subr.mxu0 0.0
    %v1677 = vand.u32 %v41, 4294901760
    %v1678 = vsub.f32 %v41, %v1677
    %v1679 = vand.u32 %v1678, 4294901760
    %v1680 = vsub.f32 %v1678, %v1679
    %v1681 = vand.u32 %v1680, 4294901760
    %1682 = vmatpush1.msra.mxu0 %v1681
    %1683 = vmatprep.subr.mxu0 0.0
    %v1684 = vand.u32 %v42, 4294901760
    %v1685 = vsub.f32 %v42, %v1684
    %v1686 = vand.u32 %v1685, 4294901760
    %v1687 = vsub.f32 %v1685, %v1686
    %v1688 = vand.u32 %v1687, 4294901760
    %1689 = vmatpush1.msra.mxu0 %v1688
    %1690 = vmatprep.subr.mxu0 0.0
    %1691 = vmatpush1.msra.mxu0 0.0
    %1692 = vmatprep.subr.mxu0 0.0
    %1693 = vmatpush1.msra.mxu0 0.0
    %1694 = vmatprep.subr.mxu0 0.0
    %1695 = vmatpush1.msra.mxu0 0.0
    %1696 = vmatprep.subr.mxu0 0.0
    %1697 = vmatpush1.msra.mxu0 0.0
    %1698 = vmatprep.subr.mxu0 0.0
    %1699 = vmatpush1.msra.mxu0 0.0
    %1700 = vmatprep.subr.mxu0 0.0
    %1701 = vmatpush1.msra.mxu0 0.0
    %1702 = vmatprep.subr.mxu0 0.0
    %1703 = vmatpush1.msra.mxu0 0.0
    %1704 = vmatprep.subr.mxu0 0.0
    %1705 = vmatpush1.msra.mxu0 0.0
    %1706 = vmatprep.subr.mxu0 0.0
    %1707 = vmatpush1.msra.mxu0 0.0
    %1708 = vmatprep.subr.mxu0 0.0
    %1709 = vmatpush1.msra.mxu0 0.0
    %1710 = vmatprep.subr.mxu0 0.0
    %1711 = vmatpush1.msra.mxu0 0.0
    %1712 = vmatprep.subr.mxu0 0.0
    %1713 = vmatpush1.msra.mxu0 0.0
    %1714 = vmatprep.subr.mxu0 0.0
    %1715 = vmatpush1.msra.mxu0 0.0
    %1716 = vmatprep.subr.mxu0 0.0
    %1717 = vmatpush1.msra.mxu0 0.0
    %1718 = vmatprep.subr.mxu0 0.0
    %1719 = vmatpush1.msra.mxu0 0.0
    %1720 = vmatprep.subr.mxu0 0.0
    %1721 = vmatpush1.msra.mxu0 0.0
    %1722 = vmatprep.subr.mxu0 0.0
    %1723 = vmatpush1.msra.mxu0 0.0
    %1724 = vmatprep.subr.mxu0 0.0
    %1725 = vmatpush1.msra.mxu0 0.0
    %1726 = vmatprep.subr.mxu0 0.0
    %1727 = vmatpush1.msra.mxu0 0.0
    %1728 = vmatprep.subr.mxu0 0.0
    %1729 = vmatpush1.msra.mxu0 0.0
    %1730 = vmatprep.subr.mxu0 0.0
    %1731 = vmatpush1.msra.mxu0 0.0
    %1732 = vmatprep.subr.mxu0 0.0
    %1733 = vmatpush1.msra.mxu0 0.0
    %1734 = vmatprep.subr.mxu0 0.0
    %1735 = vmatpush1.msra.mxu0 0.0
    %1736 = vmatprep.subr.mxu0 0.0
    %1737 = vmatpush1.msra.mxu0 0.0
    %1738 = vmatprep.subr.mxu0 0.0
    %1739 = vmatpush1.msra.mxu0 0.0
    %1740 = vmatprep.subr.mxu0 0.0
    %1741 = vmatpush1.msra.mxu0 0.0
    %1742 = vmatprep.subr.mxu0 0.0
    %1743 = vmatpush1.msra.mxu0 0.0
    %1744 = vmatprep.subr.mxu0 0.0
    %1745 = vmatpush1.msra.mxu0 0.0
    %1746 = vmatprep.subr.mxu0 0.0
    %1747 = vmatpush1.msra.mxu0 0.0
    %1748 = vmatprep.subr.mxu0 0.0
    %1749 = vmatpush1.msra.mxu0 0.0
    %1750 = vmatprep.mubr.f32.mxu0 0.0
    %v1751 = vand.u32 %v1402, 4294901760
    %1752 = vmatmul.mubr.f32.gmra.mrb[0].mxu0 %v1751
    %v1753 = vpop.f32.mrb[0].mxu0
    %v1754 = vadd.f32 %v1523, %v1753
    %v1755 = vpop.f32.mrb[0].mxu0
    %1756 = vmatprep.mubr.f32.mxu0 0.0
    %v1757 = vand.u32 %v1405, 4294901760
    %1758 = vmatmul.mubr.f32.gmra.mrb[0].mxu0 %v1757
    %v1759 = vpop.f32.mrb[0].mxu0
    %v1760 = vadd.f32 %v1533, %v1759
    %v1761 = vpop.f32.mrb[0].mxu0
    %1762 = vmatprep.mubr.f32.mxu0 0.0
    %v1763 = vand.u32 %v1408, 4294901760
    %1764 = vmatmul.mubr.f32.gmra.mrb[0].mxu0 %v1763
    %v1765 = vpop.f32.mrb[0].mxu0
    %v1766 = vadd.f32 %v1543, %v1765
    %v1767 = vpop.f32.mrb[0].mxu0
    %1768 = vmatprep.mubr.f32.mxu0 0.0
    %v1769 = vand.u32 %v1411, 4294901760
    %1770 = vmatmul.mubr.f32.gmra.mrb[0].mxu0 %v1769
    %v1771 = vpop.f32.mrb[0].mxu0
    %v1772 = vadd.f32 %v1553, %v1771
    %v1773 = vpop.f32.mrb[0].mxu0
    %1774 = vmatprep.mubr.f32.mxu0 0.0
    %v1775 = vand.u32 %v1414, 4294901760
    %1776 = vmatmul.mubr.f32.gmra.mrb[0].mxu0 %v1775
    %v1777 = vpop.f32.mrb[0].mxu0
    %v1778 = vadd.f32 %v1563, %v1777
    %v1779 = vpop.f32.mrb[0].mxu0
    %1780 = vmatprep.mubr.f32.mxu0 0.0
    %v1781 = vand.u32 %v1417, 4294901760
    %1782 = vmatmul.mubr.f32.gmra.mrb[0].mxu0 %v1781
    %v1783 = vpop.f32.mrb[0].mxu0
    %v1784 = vadd.f32 %v1573, %v1783
    %v1785 = vpop.f32.mrb[0].mxu0
    %1786 = vmatprep.mubr.f32.mxu0 0.0
    %v1787 = vand.u32 %v1420, 4294901760
    %1788 = vmatmul.mubr.f32.gmra.mrb[0].mxu0 %v1787
    %v1789 = vpop.f32.mrb[0].mxu0
    %v1790 = vadd.f32 %v1583, %v1789
    %v1791 = vpop.f32.mrb[0].mxu0
    %1792 = vmatprep.mubr.f32.mxu0 0.0
    %v1793 = vand.u32 %v1423, 4294901760
    %1794 = vmatmul.mubr.f32.gmra.mrb[0].mxu0 %v1793
    %v1795 = vpop.f32.mrb[0].mxu0
    %v1796 = vadd.f32 %v1593, %v1795
    %v1797 = vpop.f32.mrb[0].mxu0
    %1798 = vmatprep.mubr.f32.mxu0 0.0
    %v1799 = vand.u32 %v1426, 4294901760
    %1800 = vmatmul.mubr.f32.gmra.mrb[0].mxu0 %v1799
    %v1801 = vpop.f32.mrb[0].mxu0
    %v1802 = vadd.f32 %v1603, %v1801
    %v1803 = vpop.f32.mrb[0].mxu0
    %1804 = vmatprep.mubr.f32.mxu0 0.0
    %v1805 = vand.u32 %v1429, 4294901760
    %1806 = vmatmul.mubr.f32.gmra.mrb[0].mxu0 %v1805
    %v1807 = vpop.f32.mrb[0].mxu0
    %v1808 = vadd.f32 %v1613, %v1807
    %v1809 = vpop.f32.mrb[0].mxu0
    %1810 = vmatprep.mubr.f32.mxu0 0.0
    %v1811 = vand.u32 %v1432, 4294901760
    %1812 = vmatmul.mubr.f32.gmra.mrb[0].mxu0 %v1811
    %v1813 = vpop.f32.mrb[0].mxu0
    %v1814 = vadd.f32 %v1623, %v1813
    %v1815 = vpop.f32.mrb[0].mxu0
    %1816 = vmatprep.mubr.f32.mxu0 0.0
    %v1817 = vand.u32 %v1435, 4294901760
    %1818 = vmatmul.mubr.f32.gmra.mrb[0].mxu0 %v1817
    %v1819 = vpop.f32.mrb[0].mxu0
    %v1820 = vadd.f32 %v1633, %v1819
    %v1821 = vpop.f32.mrb[0].mxu0
    %1822 = vmatprep.mubr.f32.mxu0 0.0
    %v1823 = vand.u32 %v1438, 4294901760
    %1824 = vmatmul.mubr.f32.gmra.mrb[0].mxu0 %v1823
    %v1825 = vpop.f32.mrb[0].mxu0
    %v1826 = vadd.f32 %v1643, %v1825
    %v1827 = vpop.f32.mrb[0].mxu0
    %1828 = vmatprep.mubr.f32.mxu0 0.0
    %v1829 = vand.u32 %v1441, 4294901760
    %1830 = vmatmul.mubr.f32.gmra.mrb[0].mxu0 %v1829
    %v1831 = vpop.f32.mrb[0].mxu0
    %v1832 = vadd.f32 %v1653, %v1831
    %v1833 = vpop.f32.mrb[0].mxu0
    %1834 = vmatprep.mubr.f32.mxu0 0.0
    %v1835 = vand.u32 %v1444, 4294901760
    %1836 = vmatmul.mubr.f32.gmra.mrb[0].mxu0 %v1835
    %v1837 = vpop.f32.mrb[0].mxu0
    %v1838 = vadd.f32 %v1663, %v1837
    %v1839 = vpop.f32.mrb[0].mxu0
    %1840 = vmatprep.mubr.f32.mxu0 0.0
    %v1841 = vand.u32 %v1447, 4294901760
    %1842 = vmatmul.mubr.f32.gmra.mrb[0].mxu0 %v1841
    %v1843 = vpop.f32.mrb[0].mxu0
    %v1844 = vadd.f32 %v1673, %v1843
    %v1845 = vpop.f32.mrb[0].mxu0
    %1846 = vdwg.mxu0
    %1847 = vmatprep.subr.mxu0 0.0
    %v1848 = vand.u32 %v41, 4294901760
    %v1849 = vsub.f32 %v41, %v1848
    %1850 = vmatpush1.msra.mxu0 %v1849
    %1851 = vmatprep.subr.mxu0 0.0
    %v1852 = vand.u32 %v42, 4294901760
    %v1853 = vsub.f32 %v42, %v1852
    %1854 = vmatpush1.msra.mxu0 %v1853
    %1855 = vmatprep.subr.mxu0 0.0
    %1856 = vmatpush1.msra.mxu0 0.0
    %1857 = vmatprep.subr.mxu0 0.0
    %1858 = vmatpush1.msra.mxu0 0.0
    %1859 = vmatprep.subr.mxu0 0.0
    %1860 = vmatpush1.msra.mxu0 0.0
    %1861 = vmatprep.subr.mxu0 0.0
    %1862 = vmatpush1.msra.mxu0 0.0
    %1863 = vmatprep.subr.mxu0 0.0
    %1864 = vmatpush1.msra.mxu0 0.0
    %1865 = vmatprep.subr.mxu0 0.0
    %1866 = vmatpush1.msra.mxu0 0.0
    %1867 = vmatprep.subr.mxu0 0.0
    %1868 = vmatpush1.msra.mxu0 0.0
    %1869 = vmatprep.subr.mxu0 0.0
    %1870 = vmatpush1.msra.mxu0 0.0
    %1871 = vmatprep.subr.mxu0 0.0
    %1872 = vmatpush1.msra.mxu0 0.0
    %1873 = vmatprep.subr.mxu0 0.0
    %1874 = vmatpush1.msra.mxu0 0.0
    %1875 = vmatprep.subr.mxu0 0.0
    %1876 = vmatpush1.msra.mxu0 0.0
    %1877 = vmatprep.subr.mxu0 0.0
    %1878 = vmatpush1.msra.mxu0 0.0
    %1879 = vmatprep.subr.mxu0 0.0
    %1880 = vmatpush1.msra.mxu0 0.0
    %1881 = vmatprep.subr.mxu0 0.0
    %1882 = vmatpush1.msra.mxu0 0.0
    %1883 = vmatprep.subr.mxu0 0.0
    %1884 = vmatpush1.msra.mxu0 0.0
    %1885 = vmatprep.subr.mxu0 0.0
    %1886 = vmatpush1.msra.mxu0 0.0
    %1887 = vmatprep.subr.mxu0 0.0
    %1888 = vmatpush1.msra.mxu0 0.0
    %1889 = vmatprep.subr.mxu0 0.0
    %1890 = vmatpush1.msra.mxu0 0.0
    %1891 = vmatprep.subr.mxu0 0.0
    %1892 = vmatpush1.msra.mxu0 0.0
    %1893 = vmatprep.subr.mxu0 0.0
    %1894 = vmatpush1.msra.mxu0 0.0
    %1895 = vmatprep.subr.mxu0 0.0
    %1896 = vmatpush1.msra.mxu0 0.0
    %1897 = vmatprep.subr.mxu0 0.0
    %1898 = vmatpush1.msra.mxu0 0.0
    %1899 = vmatprep.subr.mxu0 0.0
    %1900 = vmatpush1.msra.mxu0 0.0
    %1901 = vmatprep.subr.mxu0 0.0
    %1902 = vmatpush1.msra.mxu0 0.0
    %1903 = vmatprep.subr.mxu0 0.0
    %1904 = vmatpush1.msra.mxu0 0.0
    %1905 = vmatprep.subr.mxu0 0.0
    %1906 = vmatpush1.msra.mxu0 0.0
    %1907 = vmatprep.subr.mxu0 0.0
    %1908 = vmatpush1.msra.mxu0 0.0
    %1909 = vmatprep.subr.mxu0 0.0
    %1910 = vmatpush1.msra.mxu0 0.0
    %1911 = vmatprep.subr.mxu0 0.0
    %1912 = vmatpush1.msra.mxu0 0.0
    %1913 = vmatprep.subr.mxu0 0.0
    %1914 = vmatpush1.msra.mxu0 0.0
    %1915 = vmatprep.mubr.f32.mxu0 0.0
    %v1916 = vand.u32 %v1402, 4294901760
    %v1917 = vsub.f32 %v1402, %v1916
    %1918 = vmatmul.mubr.f32.gmra.mrb[0].mxu0 %v1917
    %v1919 = vpop.f32.mrb[0].mxu0
    %v1920 = vadd.f32 %v1754, %v1919
    %v1921 = vpop.f32.mrb[0].mxu0
    %1922 = vmatprep.mubr.f32.mxu0 0.0
    %v1923 = vand.u32 %v1405, 4294901760
    %v1924 = vsub.f32 %v1405, %v1923
    %1925 = vmatmul.mubr.f32.gmra.mrb[0].mxu0 %v1924
    %v1926 = vpop.f32.mrb[0].mxu0
    %v1927 = vadd.f32 %v1760, %v1926
    %v1928 = vpop.f32.mrb[0].mxu0
    %1929 = vmatprep.mubr.f32.mxu0 0.0
    %v1930 = vand.u32 %v1408, 4294901760
    %v1931 = vsub.f32 %v1408, %v1930
    %1932 = vmatmul.mubr.f32.gmra.mrb[0].mxu0 %v1931
    %v1933 = vpop.f32.mrb[0].mxu0
    %v1934 = vadd.f32 %v1766, %v1933
    %v1935 = vpop.f32.mrb[0].mxu0
    %1936 = vmatprep.mubr.f32.mxu0 0.0
    %v1937 = vand.u32 %v1411, 4294901760
    %v1938 = vsub.f32 %v1411, %v1937
    %1939 = vmatmul.mubr.f32.gmra.mrb[0].mxu0 %v1938
    %v1940 = vpop.f32.mrb[0].mxu0
    %v1941 = vadd.f32 %v1772, %v1940
    %v1942 = vpop.f32.mrb[0].mxu0
    %1943 = vmatprep.mubr.f32.mxu0 0.0
    %v1944 = vand.u32 %v1414, 4294901760
    %v1945 = vsub.f32 %v1414, %v1944
    %1946 = vmatmul.mubr.f32.gmra.mrb[0].mxu0 %v1945
    %v1947 = vpop.f32.mrb[0].mxu0
    %v1948 = vadd.f32 %v1778, %v1947
    %v1949 = vpop.f32.mrb[0].mxu0
    %1950 = vmatprep.mubr.f32.mxu0 0.0
    %v1951 = vand.u32 %v1417, 4294901760
    %v1952 = vsub.f32 %v1417, %v1951
    %1953 = vmatmul.mubr.f32.gmra.mrb[0].mxu0 %v1952
    %v1954 = vpop.f32.mrb[0].mxu0
    %v1955 = vadd.f32 %v1784, %v1954
    %v1956 = vpop.f32.mrb[0].mxu0
    %1957 = vmatprep.mubr.f32.mxu0 0.0
    %v1958 = vand.u32 %v1420, 4294901760
    %v1959 = vsub.f32 %v1420, %v1958
    %1960 = vmatmul.mubr.f32.gmra.mrb[0].mxu0 %v1959
    %v1961 = vpop.f32.mrb[0].mxu0
    %v1962 = vadd.f32 %v1790, %v1961
    %v1963 = vpop.f32.mrb[0].mxu0
    %1964 = vmatprep.mubr.f32.mxu0 0.0
    %v1965 = vand.u32 %v1423, 4294901760
    %v1966 = vsub.f32 %v1423, %v1965
    %1967 = vmatmul.mubr.f32.gmra.mrb[0].mxu0 %v1966
    %v1968 = vpop.f32.mrb[0].mxu0
    %v1969 = vadd.f32 %v1796, %v1968
    %v1970 = vpop.f32.mrb[0].mxu0
    %1971 = vmatprep.mubr.f32.mxu0 0.0
    %v1972 = vand.u32 %v1426, 4294901760
    %v1973 = vsub.f32 %v1426, %v1972
    %1974 = vmatmul.mubr.f32.gmra.mrb[0].mxu0 %v1973
    %v1975 = vpop.f32.mrb[0].mxu0
    %v1976 = vadd.f32 %v1802, %v1975
    %v1977 = vpop.f32.mrb[0].mxu0
    %1978 = vmatprep.mubr.f32.mxu0 0.0
    %v1979 = vand.u32 %v1429, 4294901760
    %v1980 = vsub.f32 %v1429, %v1979
    %1981 = vmatmul.mubr.f32.gmra.mrb[0].mxu0 %v1980
    %v1982 = vpop.f32.mrb[0].mxu0
    %v1983 = vadd.f32 %v1808, %v1982
    %v1984 = vpop.f32.mrb[0].mxu0
    %1985 = vmatprep.mubr.f32.mxu0 0.0
    %v1986 = vand.u32 %v1432, 4294901760
    %v1987 = vsub.f32 %v1432, %v1986
    %1988 = vmatmul.mubr.f32.gmra.mrb[0].mxu0 %v1987
    %v1989 = vpop.f32.mrb[0].mxu0
    %v1990 = vadd.f32 %v1814, %v1989
    %v1991 = vpop.f32.mrb[0].mxu0
    %1992 = vmatprep.mubr.f32.mxu0 0.0
    %v1993 = vand.u32 %v1435, 4294901760
    %v1994 = vsub.f32 %v1435, %v1993
    %1995 = vmatmul.mubr.f32.gmra.mrb[0].mxu0 %v1994
    %v1996 = vpop.f32.mrb[0].mxu0
    %v1997 = vadd.f32 %v1820, %v1996
    %v1998 = vpop.f32.mrb[0].mxu0
    %1999 = vmatprep.mubr.f32.mxu0 0.0
    %v2000 = vand.u32 %v1438, 4294901760
    %v2001 = vsub.f32 %v1438, %v2000
    %2002 = vmatmul.mubr.f32.gmra.mrb[0].mxu0 %v2001
    %v2003 = vpop.f32.mrb[0].mxu0
    %v2004 = vadd.f32 %v1826, %v2003
    %v2005 = vpop.f32.mrb[0].mxu0
    %2006 = vmatprep.mubr.f32.mxu0 0.0
    %v2007 = vand.u32 %v1441, 4294901760
    %v2008 = vsub.f32 %v1441, %v2007
    %2009 = vmatmul.mubr.f32.gmra.mrb[0].mxu0 %v2008
    %v2010 = vpop.f32.mrb[0].mxu0
    %v2011 = vadd.f32 %v1832, %v2010
    %v2012 = vpop.f32.mrb[0].mxu0
    %2013 = vmatprep.mubr.f32.mxu0 0.0
    %v2014 = vand.u32 %v1444, 4294901760
    %v2015 = vsub.f32 %v1444, %v2014
    %2016 = vmatmul.mubr.f32.gmra.mrb[0].mxu0 %v2015
    %v2017 = vpop.f32.mrb[0].mxu0
    %v2018 = vadd.f32 %v1838, %v2017
    %v2019 = vpop.f32.mrb[0].mxu0
    %2020 = vmatprep.mubr.f32.mxu0 0.0
    %v2021 = vand.u32 %v1447, 4294901760
    %v2022 = vsub.f32 %v1447, %v2021
    %2023 = vmatmul.mubr.f32.gmra.mrb[0].mxu0 %v2022
    %v2024 = vpop.f32.mrb[0].mxu0
    %v2025 = vadd.f32 %v1844, %v2024
    %v2026 = vpop.f32.mrb[0].mxu0
    %2027 = vdwg.mxu0
    %2028 = vmatprep.subr.mxu0 0.0
    %v2029 = vand.u32 %v41, 4294901760
    %2030 = vmatpush1.msra.mxu0 %v2029
    %2031 = vmatprep.subr.mxu0 0.0
    %v2032 = vand.u32 %v42, 4294901760
    %2033 = vmatpush1.msra.mxu0 %v2032
    %2034 = vmatprep.subr.mxu0 0.0
    %2035 = vmatpush1.msra.mxu0 0.0
    %2036 = vmatprep.subr.mxu0 0.0
    %2037 = vmatpush1.msra.mxu0 0.0
    %2038 = vmatprep.subr.mxu0 0.0
    %2039 = vmatpush1.msra.mxu0 0.0
    %2040 = vmatprep.subr.mxu0 0.0
    %2041 = vmatpush1.msra.mxu0 0.0
    %2042 = vmatprep.subr.mxu0 0.0
    %2043 = vmatpush1.msra.mxu0 0.0
    %2044 = vmatprep.subr.mxu0 0.0
    %2045 = vmatpush1.msra.mxu0 0.0
    %2046 = vmatprep.subr.mxu0 0.0
    %2047 = vmatpush1.msra.mxu0 0.0
    %2048 = vmatprep.subr.mxu0 0.0
    %2049 = vmatpush1.msra.mxu0 0.0
    %2050 = vmatprep.subr.mxu0 0.0
    %2051 = vmatpush1.msra.mxu0 0.0
    %2052 = vmatprep.subr.mxu0 0.0
    %2053 = vmatpush1.msra.mxu0 0.0
    %2054 = vmatprep.subr.mxu0 0.0
    %2055 = vmatpush1.msra.mxu0 0.0
    %2056 = vmatprep.subr.mxu0 0.0
    %2057 = vmatpush1.msra.mxu0 0.0
    %2058 = vmatprep.subr.mxu0 0.0
    %2059 = vmatpush1.msra.mxu0 0.0
    %2060 = vmatprep.subr.mxu0 0.0
    %2061 = vmatpush1.msra.mxu0 0.0
    %2062 = vmatprep.subr.mxu0 0.0
    %2063 = vmatpush1.msra.mxu0 0.0
    %2064 = vmatprep.subr.mxu0 0.0
    %2065 = vmatpush1.msra.mxu0 0.0
    %2066 = vmatprep.subr.mxu0 0.0
    %2067 = vmatpush1.msra.mxu0 0.0
    %2068 = vmatprep.subr.mxu0 0.0
    %2069 = vmatpush1.msra.mxu0 0.0
    %2070 = vmatprep.subr.mxu0 0.0
    %2071 = vmatpush1.msra.mxu0 0.0
    %2072 = vmatprep.subr.mxu0 0.0
    %2073 = vmatpush1.msra.mxu0 0.0
    %2074 = vmatprep.subr.mxu0 0.0
    %2075 = vmatpush1.msra.mxu0 0.0
    %2076 = vmatprep.subr.mxu0 0.0
    %2077 = vmatpush1.msra.mxu0 0.0
    %2078 = vmatprep.subr.mxu0 0.0
    %2079 = vmatpush1.msra.mxu0 0.0
    %2080 = vmatprep.subr.mxu0 0.0
    %2081 = vmatpush1.msra.mxu0 0.0
    %2082 = vmatprep.subr.mxu0 0.0
    %2083 = vmatpush1.msra.mxu0 0.0
    %2084 = vmatprep.subr.mxu0 0.0
    %2085 = vmatpush1.msra.mxu0 0.0
    %2086 = vmatprep.subr.mxu0 0.0
    %2087 = vmatpush1.msra.mxu0 0.0
    %2088 = vmatprep.subr.mxu0 0.0
    %2089 = vmatpush1.msra.mxu0 0.0
    %2090 = vmatprep.subr.mxu0 0.0
    %2091 = vmatpush1.msra.mxu0 0.0
    %2092 = vmatprep.subr.mxu0 0.0
    %2093 = vmatpush1.msra.mxu0 0.0
    %2094 = vmatprep.mubr.f32.mxu0 0.0
    %v2095 = vand.u32 %v1402, 4294901760
    %v2096 = vsub.f32 %v1402, %v2095
    %v2097 = vand.u32 %v2096, 4294901760
    %2098 = vmatmul.mubr.f32.gmra.mrb[0].mxu0 %v2097
    %v2099 = vpop.f32.mrb[0].mxu0
    %v2100 = vadd.f32 %v1920, %v2099
    %v2101 = vpop.f32.mrb[0].mxu0
    %2102 = vmatprep.mubr.f32.mxu0 0.0
    %v2103 = vand.u32 %v1405, 4294901760
    %v2104 = vsub.f32 %v1405, %v2103
    %v2105 = vand.u32 %v2104, 4294901760
    %2106 = vmatmul.mubr.f32.gmra.mrb[0].mxu0 %v2105
    %v2107 = vpop.f32.mrb[0].mxu0
    %v2108 = vadd.f32 %v1927, %v2107
    %v2109 = vpop.f32.mrb[0].mxu0
    %2110 = vmatprep.mubr.f32.mxu0 0.0
    %v2111 = vand.u32 %v1408, 4294901760
    %v2112 = vsub.f32 %v1408, %v2111
    %v2113 = vand.u32 %v2112, 4294901760
    %2114 = vmatmul.mubr.f32.gmra.mrb[0].mxu0 %v2113
    %v2115 = vpop.f32.mrb[0].mxu0
    %v2116 = vadd.f32 %v1934, %v2115
    %v2117 = vpop.f32.mrb[0].mxu0
    %2118 = vmatprep.mubr.f32.mxu0 0.0
    %v2119 = vand.u32 %v1411, 4294901760
    %v2120 = vsub.f32 %v1411, %v2119
    %v2121 = vand.u32 %v2120, 4294901760
    %2122 = vmatmul.mubr.f32.gmra.mrb[0].mxu0 %v2121
    %v2123 = vpop.f32.mrb[0].mxu0
    %v2124 = vadd.f32 %v1941, %v2123
    %v2125 = vpop.f32.mrb[0].mxu0
    %2126 = vmatprep.mubr.f32.mxu0 0.0
    %v2127 = vand.u32 %v1414, 4294901760
    %v2128 = vsub.f32 %v1414, %v2127
    %v2129 = vand.u32 %v2128, 4294901760
    %2130 = vmatmul.mubr.f32.gmra.mrb[0].mxu0 %v2129
    %v2131 = vpop.f32.mrb[0].mxu0
    %v2132 = vadd.f32 %v1948, %v2131
    %v2133 = vpop.f32.mrb[0].mxu0
    %2134 = vmatprep.mubr.f32.mxu0 0.0
    %v2135 = vand.u32 %v1417, 4294901760
    %v2136 = vsub.f32 %v1417, %v2135
    %v2137 = vand.u32 %v2136, 4294901760
    %2138 = vmatmul.mubr.f32.gmra.mrb[0].mxu0 %v2137
    %v2139 = vpop.f32.mrb[0].mxu0
    %v2140 = vadd.f32 %v1955, %v2139
    %v2141 = vpop.f32.mrb[0].mxu0
    %2142 = vmatprep.mubr.f32.mxu0 0.0
    %v2143 = vand.u32 %v1420, 4294901760
    %v2144 = vsub.f32 %v1420, %v2143
    %v2145 = vand.u32 %v2144, 4294901760
    %2146 = vmatmul.mubr.f32.gmra.mrb[0].mxu0 %v2145
    %v2147 = vpop.f32.mrb[0].mxu0
    %v2148 = vadd.f32 %v1962, %v2147
    %v2149 = vpop.f32.mrb[0].mxu0
    %2150 = vmatprep.mubr.f32.mxu0 0.0
    %v2151 = vand.u32 %v1423, 4294901760
    %v2152 = vsub.f32 %v1423, %v2151
    %v2153 = vand.u32 %v2152, 4294901760
    %2154 = vmatmul.mubr.f32.gmra.mrb[0].mxu0 %v2153
    %v2155 = vpop.f32.mrb[0].mxu0
    %v2156 = vadd.f32 %v1969, %v2155
    %v2157 = vpop.f32.mrb[0].mxu0
    %2158 = vmatprep.mubr.f32.mxu0 0.0
    %v2159 = vand.u32 %v1426, 4294901760
    %v2160 = vsub.f32 %v1426, %v2159
    %v2161 = vand.u32 %v2160, 4294901760
    %2162 = vmatmul.mubr.f32.gmra.mrb[0].mxu0 %v2161
    %v2163 = vpop.f32.mrb[0].mxu0
    %v2164 = vadd.f32 %v1976, %v2163
    %v2165 = vpop.f32.mrb[0].mxu0
    %2166 = vmatprep.mubr.f32.mxu0 0.0
    %v2167 = vand.u32 %v1429, 4294901760
    %v2168 = vsub.f32 %v1429, %v2167
    %v2169 = vand.u32 %v2168, 4294901760
    %2170 = vmatmul.mubr.f32.gmra.mrb[0].mxu0 %v2169
    %v2171 = vpop.f32.mrb[0].mxu0
    %v2172 = vadd.f32 %v1983, %v2171
    %v2173 = vpop.f32.mrb[0].mxu0
    %2174 = vmatprep.mubr.f32.mxu0 0.0
    %v2175 = vand.u32 %v1432, 4294901760
    %v2176 = vsub.f32 %v1432, %v2175
    %v2177 = vand.u32 %v2176, 4294901760
    %2178 = vmatmul.mubr.f32.gmra.mrb[0].mxu0 %v2177
    %v2179 = vpop.f32.mrb[0].mxu0
    %v2180 = vadd.f32 %v1990, %v2179
    %v2181 = vpop.f32.mrb[0].mxu0
    %2182 = vmatprep.mubr.f32.mxu0 0.0
    %v2183 = vand.u32 %v1435, 4294901760
    %v2184 = vsub.f32 %v1435, %v2183
    %v2185 = vand.u32 %v2184, 4294901760
    %2186 = vmatmul.mubr.f32.gmra.mrb[0].mxu0 %v2185
    %v2187 = vpop.f32.mrb[0].mxu0
    %v2188 = vadd.f32 %v1997, %v2187
    %v2189 = vpop.f32.mrb[0].mxu0
    %2190 = vmatprep.mubr.f32.mxu0 0.0
    %v2191 = vand.u32 %v1438, 4294901760
    %v2192 = vsub.f32 %v1438, %v2191
    %v2193 = vand.u32 %v2192, 4294901760
    %2194 = vmatmul.mubr.f32.gmra.mrb[0].mxu0 %v2193
    %v2195 = vpop.f32.mrb[0].mxu0
    %v2196 = vadd.f32 %v2004, %v2195
    %v2197 = vpop.f32.mrb[0].mxu0
    %2198 = vmatprep.mubr.f32.mxu0 0.0
    %v2199 = vand.u32 %v1441, 4294901760
    %v2200 = vsub.f32 %v1441, %v2199
    %v2201 = vand.u32 %v2200, 4294901760
    %2202 = vmatmul.mubr.f32.gmra.mrb[0].mxu0 %v2201
    %v2203 = vpop.f32.mrb[0].mxu0
    %v2204 = vadd.f32 %v2011, %v2203
    %v2205 = vpop.f32.mrb[0].mxu0
    %2206 = vmatprep.mubr.f32.mxu0 0.0
    %v2207 = vand.u32 %v1444, 4294901760
    %v2208 = vsub.f32 %v1444, %v2207
    %v2209 = vand.u32 %v2208, 4294901760
    %2210 = vmatmul.mubr.f32.gmra.mrb[0].mxu0 %v2209
    %v2211 = vpop.f32.mrb[0].mxu0
    %v2212 = vadd.f32 %v2018, %v2211
    %v2213 = vpop.f32.mrb[0].mxu0
    %2214 = vmatprep.mubr.f32.mxu0 0.0
    %v2215 = vand.u32 %v1447, 4294901760
    %v2216 = vsub.f32 %v1447, %v2215
    %v2217 = vand.u32 %v2216, 4294901760
    %2218 = vmatmul.mubr.f32.gmra.mrb[0].mxu0 %v2217
    %v2219 = vpop.f32.mrb[0].mxu0
    %v2220 = vadd.f32 %v2025, %v2219
    %v2221 = vpop.f32.mrb[0].mxu0
    %2222 = vdwg.mxu0
    %2223 = vmatprep.subr.mxu0 0.0
    %v2224 = vand.u32 %v41, 4294901760
    %v2225 = vsub.f32 %v41, %v2224
    %v2226 = vand.u32 %v2225, 4294901760
    %2227 = vmatpush1.msra.mxu0 %v2226
    %2228 = vmatprep.subr.mxu0 0.0
    %v2229 = vand.u32 %v42, 4294901760
    %v2230 = vsub.f32 %v42, %v2229
    %v2231 = vand.u32 %v2230, 4294901760
    %2232 = vmatpush1.msra.mxu0 %v2231
    %2233 = vmatprep.subr.mxu0 0.0
    %2234 = vmatpush1.msra.mxu0 0.0
    %2235 = vmatprep.subr.mxu0 0.0
    %2236 = vmatpush1.msra.mxu0 0.0
    %2237 = vmatprep.subr.mxu0 0.0
    %2238 = vmatpush1.msra.mxu0 0.0
    %2239 = vmatprep.subr.mxu0 0.0
    %2240 = vmatpush1.msra.mxu0 0.0
    %2241 = vmatprep.subr.mxu0 0.0
    %2242 = vmatpush1.msra.mxu0 0.0
    %2243 = vmatprep.subr.mxu0 0.0
    %2244 = vmatpush1.msra.mxu0 0.0
    %2245 = vmatprep.subr.mxu0 0.0
    %2246 = vmatpush1.msra.mxu0 0.0
    %2247 = vmatprep.subr.mxu0 0.0
    %2248 = vmatpush1.msra.mxu0 0.0
    %2249 = vmatprep.subr.mxu0 0.0
    %2250 = vmatpush1.msra.mxu0 0.0
    %2251 = vmatprep.subr.mxu0 0.0
    %2252 = vmatpush1.msra.mxu0 0.0
    %2253 = vmatprep.subr.mxu0 0.0
    %2254 = vmatpush1.msra.mxu0 0.0
    %2255 = vmatprep.subr.mxu0 0.0
    %2256 = vmatpush1.msra.mxu0 0.0
    %2257 = vmatprep.subr.mxu0 0.0
    %2258 = vmatpush1.msra.mxu0 0.0
    %2259 = vmatprep.subr.mxu0 0.0
    %2260 = vmatpush1.msra.mxu0 0.0
    %2261 = vmatprep.subr.mxu0 0.0
    %2262 = vmatpush1.msra.mxu0 0.0
    %2263 = vmatprep.subr.mxu0 0.0
    %2264 = vmatpush1.msra.mxu0 0.0
    %2265 = vmatprep.subr.mxu0 0.0
    %2266 = vmatpush1.msra.mxu0 0.0
    %2267 = vmatprep.subr.mxu0 0.0
    %2268 = vmatpush1.msra.mxu0 0.0
    %2269 = vmatprep.subr.mxu0 0.0
    %2270 = vmatpush1.msra.mxu0 0.0
    %2271 = vmatprep.subr.mxu0 0.0
    %2272 = vmatpush1.msra.mxu0 0.0
    %2273 = vmatprep.subr.mxu0 0.0
    %2274 = vmatpush1.msra.mxu0 0.0
    %2275 = vmatprep.subr.mxu0 0.0
    %2276 = vmatpush1.msra.mxu0 0.0
    %2277 = vmatprep.subr.mxu0 0.0
    %2278 = vmatpush1.msra.mxu0 0.0
    %2279 = vmatprep.subr.mxu0 0.0
    %2280 = vmatpush1.msra.mxu0 0.0
    %2281 = vmatprep.subr.mxu0 0.0
    %2282 = vmatpush1.msra.mxu0 0.0
    %2283 = vmatprep.subr.mxu0 0.0
    %2284 = vmatpush1.msra.mxu0 0.0
    %2285 = vmatprep.subr.mxu0 0.0
    %2286 = vmatpush1.msra.mxu0 0.0
    %2287 = vmatprep.subr.mxu0 0.0
    %2288 = vmatpush1.msra.mxu0 0.0
    %2289 = vmatprep.subr.mxu0 0.0
    %2290 = vmatpush1.msra.mxu0 0.0
    %2291 = vmatprep.subr.mxu0 0.0
    %2292 = vmatpush1.msra.mxu0 0.0
    %2293 = vmatprep.mubr.f32.mxu0 0.0
    %v2294 = vand.u32 %v1402, 4294901760
    %2295 = vmatmul.mubr.f32.gmra.mrb[0].mxu0 %v2294
    %v2296 = vpop.f32.mrb[0].mxu0
    %v2297 = vadd.f32 %v2100, %v2296
    %v2298 = vpop.f32.mrb[0].mxu0
    %2299 = vmatprep.mubr.f32.mxu0 0.0
    %v2300 = vand.u32 %v1405, 4294901760
    %2301 = vmatmul.mubr.f32.gmra.mrb[0].mxu0 %v2300
    %v2302 = vpop.f32.mrb[0].mxu0
    %v2303 = vadd.f32 %v2108, %v2302
    %v2304 = vpop.f32.mrb[0].mxu0
    %2305 = vmatprep.mubr.f32.mxu0 0.0
    %v2306 = vand.u32 %v1408, 4294901760
    %2307 = vmatmul.mubr.f32.gmra.mrb[0].mxu0 %v2306
    %v2308 = vpop.f32.mrb[0].mxu0
    %v2309 = vadd.f32 %v2116, %v2308
    %v2310 = vpop.f32.mrb[0].mxu0
    %2311 = vmatprep.mubr.f32.mxu0 0.0
    %v2312 = vand.u32 %v1411, 4294901760
    %2313 = vmatmul.mubr.f32.gmra.mrb[0].mxu0 %v2312
    %v2314 = vpop.f32.mrb[0].mxu0
    %v2315 = vadd.f32 %v2124, %v2314
    %v2316 = vpop.f32.mrb[0].mxu0
    %2317 = vmatprep.mubr.f32.mxu0 0.0
    %v2318 = vand.u32 %v1414, 4294901760
    %2319 = vmatmul.mubr.f32.gmra.mrb[0].mxu0 %v2318
    %v2320 = vpop.f32.mrb[0].mxu0
    %v2321 = vadd.f32 %v2132, %v2320
    %v2322 = vpop.f32.mrb[0].mxu0
    %2323 = vmatprep.mubr.f32.mxu0 0.0
    %v2324 = vand.u32 %v1417, 4294901760
    %2325 = vmatmul.mubr.f32.gmra.mrb[0].mxu0 %v2324
    %v2326 = vpop.f32.mrb[0].mxu0
    %v2327 = vadd.f32 %v2140, %v2326
    %v2328 = vpop.f32.mrb[0].mxu0
    %2329 = vmatprep.mubr.f32.mxu0 0.0
    %v2330 = vand.u32 %v1420, 4294901760
    %2331 = vmatmul.mubr.f32.gmra.mrb[0].mxu0 %v2330
    %v2332 = vpop.f32.mrb[0].mxu0
    %v2333 = vadd.f32 %v2148, %v2332
    %v2334 = vpop.f32.mrb[0].mxu0
    %2335 = vmatprep.mubr.f32.mxu0 0.0
    %v2336 = vand.u32 %v1423, 4294901760
    %2337 = vmatmul.mubr.f32.gmra.mrb[0].mxu0 %v2336
    %v2338 = vpop.f32.mrb[0].mxu0
    %v2339 = vadd.f32 %v2156, %v2338
    %v2340 = vpop.f32.mrb[0].mxu0
    %2341 = vmatprep.mubr.f32.mxu0 0.0
    %v2342 = vand.u32 %v1426, 4294901760
    %2343 = vmatmul.mubr.f32.gmra.mrb[0].mxu0 %v2342
    %v2344 = vpop.f32.mrb[0].mxu0
    %v2345 = vadd.f32 %v2164, %v2344
    %v2346 = vpop.f32.mrb[0].mxu0
    %2347 = vmatprep.mubr.f32.mxu0 0.0
    %v2348 = vand.u32 %v1429, 4294901760
    %2349 = vmatmul.mubr.f32.gmra.mrb[0].mxu0 %v2348
    %v2350 = vpop.f32.mrb[0].mxu0
    %v2351 = vadd.f32 %v2172, %v2350
    %v2352 = vpop.f32.mrb[0].mxu0
    %2353 = vmatprep.mubr.f32.mxu0 0.0
    %v2354 = vand.u32 %v1432, 4294901760
    %2355 = vmatmul.mubr.f32.gmra.mrb[0].mxu0 %v2354
    %v2356 = vpop.f32.mrb[0].mxu0
    %v2357 = vadd.f32 %v2180, %v2356
    %v2358 = vpop.f32.mrb[0].mxu0
    %2359 = vmatprep.mubr.f32.mxu0 0.0
    %v2360 = vand.u32 %v1435, 4294901760
    %2361 = vmatmul.mubr.f32.gmra.mrb[0].mxu0 %v2360
    %v2362 = vpop.f32.mrb[0].mxu0
    %v2363 = vadd.f32 %v2188, %v2362
    %v2364 = vpop.f32.mrb[0].mxu0
    %2365 = vmatprep.mubr.f32.mxu0 0.0
    %v2366 = vand.u32 %v1438, 4294901760
    %2367 = vmatmul.mubr.f32.gmra.mrb[0].mxu0 %v2366
    %v2368 = vpop.f32.mrb[0].mxu0
    %v2369 = vadd.f32 %v2196, %v2368
    %v2370 = vpop.f32.mrb[0].mxu0
    %2371 = vmatprep.mubr.f32.mxu0 0.0
    %v2372 = vand.u32 %v1441, 4294901760
    %2373 = vmatmul.mubr.f32.gmra.mrb[0].mxu0 %v2372
    %v2374 = vpop.f32.mrb[0].mxu0
    %v2375 = vadd.f32 %v2204, %v2374
    %v2376 = vpop.f32.mrb[0].mxu0
    %2377 = vmatprep.mubr.f32.mxu0 0.0
    %v2378 = vand.u32 %v1444, 4294901760
    %2379 = vmatmul.mubr.f32.gmra.mrb[0].mxu0 %v2378
    %v2380 = vpop.f32.mrb[0].mxu0
    %v2381 = vadd.f32 %v2212, %v2380
    %v2382 = vpop.f32.mrb[0].mxu0
    %2383 = vmatprep.mubr.f32.mxu0 0.0
    %v2384 = vand.u32 %v1447, 4294901760
    %2385 = vmatmul.mubr.f32.gmra.mrb[0].mxu0 %v2384
    %v2386 = vpop.f32.mrb[0].mxu0
    %v2387 = vadd.f32 %v2220, %v2386
    %v2388 = vpop.f32.mrb[0].mxu0
    %2389 = vdwg.mxu0
    %2390 = vmatprep.subr.mxu0 0.0
    %v2391 = vand.u32 %v41, 4294901760
    %2392 = vmatpush1.msra.mxu0 %v2391
    %2393 = vmatprep.subr.mxu0 0.0
    %v2394 = vand.u32 %v42, 4294901760
    %2395 = vmatpush1.msra.mxu0 %v2394
    %2396 = vmatprep.subr.mxu0 0.0
    %2397 = vmatpush1.msra.mxu0 0.0
    %2398 = vmatprep.subr.mxu0 0.0
    %2399 = vmatpush1.msra.mxu0 0.0
    %2400 = vmatprep.subr.mxu0 0.0
    %2401 = vmatpush1.msra.mxu0 0.0
    %2402 = vmatprep.subr.mxu0 0.0
    %2403 = vmatpush1.msra.mxu0 0.0
    %2404 = vmatprep.subr.mxu0 0.0
    %2405 = vmatpush1.msra.mxu0 0.0
    %2406 = vmatprep.subr.mxu0 0.0
    %2407 = vmatpush1.msra.mxu0 0.0
    %2408 = vmatprep.subr.mxu0 0.0
    %2409 = vmatpush1.msra.mxu0 0.0
    %2410 = vmatprep.subr.mxu0 0.0
    %2411 = vmatpush1.msra.mxu0 0.0
    %2412 = vmatprep.subr.mxu0 0.0
    %2413 = vmatpush1.msra.mxu0 0.0
    %2414 = vmatprep.subr.mxu0 0.0
    %2415 = vmatpush1.msra.mxu0 0.0
    %2416 = vmatprep.subr.mxu0 0.0
    %2417 = vmatpush1.msra.mxu0 0.0
    %2418 = vmatprep.subr.mxu0 0.0
    %2419 = vmatpush1.msra.mxu0 0.0
    %2420 = vmatprep.subr.mxu0 0.0
    %2421 = vmatpush1.msra.mxu0 0.0
    %2422 = vmatprep.subr.mxu0 0.0
    %2423 = vmatpush1.msra.mxu0 0.0
    %2424 = vmatprep.subr.mxu0 0.0
    %2425 = vmatpush1.msra.mxu0 0.0
    %2426 = vmatprep.subr.mxu0 0.0
    %2427 = vmatpush1.msra.mxu0 0.0
    %2428 = vmatprep.subr.mxu0 0.0
    %2429 = vmatpush1.msra.mxu0 0.0
    %2430 = vmatprep.subr.mxu0 0.0
    %2431 = vmatpush1.msra.mxu0 0.0
    %2432 = vmatprep.subr.mxu0 0.0
    %2433 = vmatpush1.msra.mxu0 0.0
    %2434 = vmatprep.subr.mxu0 0.0
    %2435 = vmatpush1.msra.mxu0 0.0
    %2436 = vmatprep.subr.mxu0 0.0
    %2437 = vmatpush1.msra.mxu0 0.0
    %2438 = vmatprep.subr.mxu0 0.0
    %2439 = vmatpush1.msra.mxu0 0.0
    %2440 = vmatprep.subr.mxu0 0.0
    %2441 = vmatpush1.msra.mxu0 0.0
    %2442 = vmatprep.subr.mxu0 0.0
    %2443 = vmatpush1.msra.mxu0 0.0
    %2444 = vmatprep.subr.mxu0 0.0
    %2445 = vmatpush1.msra.mxu0 0.0
    %2446 = vmatprep.subr.mxu0 0.0
    %2447 = vmatpush1.msra.mxu0 0.0
    %2448 = vmatprep.subr.mxu0 0.0
    %2449 = vmatpush1.msra.mxu0 0.0
    %2450 = vmatprep.subr.mxu0 0.0
    %2451 = vmatpush1.msra.mxu0 0.0
    %2452 = vmatprep.subr.mxu0 0.0
    %2453 = vmatpush1.msra.mxu0 0.0
    %2454 = vmatprep.subr.mxu0 0.0
    %2455 = vmatpush1.msra.mxu0 0.0
    %2456 = vmatprep.mubr.f32.mxu0 0.0
    %v2457 = vand.u32 %v1402, 4294901760
    %2458 = vmatmul.mubr.f32.gmra.mrb[0].mxu0 %v2457
    %v2459 = vpop.f32.mrb[0].mxu0
    %v2460 = vadd.f32 %v2297, %v2459
    %v2461 = vpop.f32.mrb[0].mxu0
    %2462 = vmatprep.mubr.f32.mxu0 0.0
    %v2463 = vand.u32 %v1405, 4294901760
    %2464 = vmatmul.mubr.f32.gmra.mrb[0].mxu0 %v2463
    %v2465 = vpop.f32.mrb[0].mxu0
    %v2466 = vadd.f32 %v2303, %v2465
    %v2467 = vpop.f32.mrb[0].mxu0
    %2468 = vmatprep.mubr.f32.mxu0 0.0
    %v2469 = vand.u32 %v1408, 4294901760
    %2470 = vmatmul.mubr.f32.gmra.mrb[0].mxu0 %v2469
    %v2471 = vpop.f32.mrb[0].mxu0
    %v2472 = vadd.f32 %v2309, %v2471
    %v2473 = vpop.f32.mrb[0].mxu0
    %2474 = vmatprep.mubr.f32.mxu0 0.0
    %v2475 = vand.u32 %v1411, 4294901760
    %2476 = vmatmul.mubr.f32.gmra.mrb[0].mxu0 %v2475
    %v2477 = vpop.f32.mrb[0].mxu0
    %v2478 = vadd.f32 %v2315, %v2477
    %v2479 = vpop.f32.mrb[0].mxu0
    %2480 = vmatprep.mubr.f32.mxu0 0.0
    %v2481 = vand.u32 %v1414, 4294901760
    %2482 = vmatmul.mubr.f32.gmra.mrb[0].mxu0 %v2481
    %v2483 = vpop.f32.mrb[0].mxu0
    %v2484 = vadd.f32 %v2321, %v2483
    %v2485 = vpop.f32.mrb[0].mxu0
    %2486 = vmatprep.mubr.f32.mxu0 0.0
    %v2487 = vand.u32 %v1417, 4294901760
    %2488 = vmatmul.mubr.f32.gmra.mrb[0].mxu0 %v2487
    %v2489 = vpop.f32.mrb[0].mxu0
    %v2490 = vadd.f32 %v2327, %v2489
    %v2491 = vpop.f32.mrb[0].mxu0
    %2492 = vmatprep.mubr.f32.mxu0 0.0
    %v2493 = vand.u32 %v1420, 4294901760
    %2494 = vmatmul.mubr.f32.gmra.mrb[0].mxu0 %v2493
    %v2495 = vpop.f32.mrb[0].mxu0
    %v2496 = vadd.f32 %v2333, %v2495
    %v2497 = vpop.f32.mrb[0].mxu0
    %2498 = vmatprep.mubr.f32.mxu0 0.0
    %v2499 = vand.u32 %v1423, 4294901760
    %2500 = vmatmul.mubr.f32.gmra.mrb[0].mxu0 %v2499
    %v2501 = vpop.f32.mrb[0].mxu0
    %v2502 = vadd.f32 %v2339, %v2501
    %v2503 = vpop.f32.mrb[0].mxu0
    %2504 = vmatprep.mubr.f32.mxu0 0.0
    %v2505 = vand.u32 %v1426, 4294901760
    %2506 = vmatmul.mubr.f32.gmra.mrb[0].mxu0 %v2505
    %v2507 = vpop.f32.mrb[0].mxu0
    %v2508 = vadd.f32 %v2345, %v2507
    %v2509 = vpop.f32.mrb[0].mxu0
    %2510 = vmatprep.mubr.f32.mxu0 0.0
    %v2511 = vand.u32 %v1429, 4294901760
    %2512 = vmatmul.mubr.f32.gmra.mrb[0].mxu0 %v2511
    %v2513 = vpop.f32.mrb[0].mxu0
    %v2514 = vadd.f32 %v2351, %v2513
    %v2515 = vpop.f32.mrb[0].mxu0
    %2516 = vmatprep.mubr.f32.mxu0 0.0
    %v2517 = vand.u32 %v1432, 4294901760
    %2518 = vmatmul.mubr.f32.gmra.mrb[0].mxu0 %v2517
    %v2519 = vpop.f32.mrb[0].mxu0
    %v2520 = vadd.f32 %v2357, %v2519
    %v2521 = vpop.f32.mrb[0].mxu0
    %2522 = vmatprep.mubr.f32.mxu0 0.0
    %v2523 = vand.u32 %v1435, 4294901760
    %2524 = vmatmul.mubr.f32.gmra.mrb[0].mxu0 %v2523
    %v2525 = vpop.f32.mrb[0].mxu0
    %v2526 = vadd.f32 %v2363, %v2525
    %v2527 = vpop.f32.mrb[0].mxu0
    %2528 = vmatprep.mubr.f32.mxu0 0.0
    %v2529 = vand.u32 %v1438, 4294901760
    %2530 = vmatmul.mubr.f32.gmra.mrb[0].mxu0 %v2529
    %v2531 = vpop.f32.mrb[0].mxu0
    %v2532 = vadd.f32 %v2369, %v2531
    %v2533 = vpop.f32.mrb[0].mxu0
    %2534 = vmatprep.mubr.f32.mxu0 0.0
    %v2535 = vand.u32 %v1441, 4294901760
    %2536 = vmatmul.mubr.f32.gmra.mrb[0].mxu0 %v2535
    %v2537 = vpop.f32.mrb[0].mxu0
    %v2538 = vadd.f32 %v2375, %v2537
    %v2539 = vpop.f32.mrb[0].mxu0
    %2540 = vmatprep.mubr.f32.mxu0 0.0
    %v2541 = vand.u32 %v1444, 4294901760
    %2542 = vmatmul.mubr.f32.gmra.mrb[0].mxu0 %v2541
    %v2543 = vpop.f32.mrb[0].mxu0
    %v2544 = vadd.f32 %v2381, %v2543
    %v2545 = vpop.f32.mrb[0].mxu0
    %2546 = vmatprep.mubr.f32.mxu0 0.0
    %v2547 = vand.u32 %v1447, 4294901760
    %2548 = vmatmul.mubr.f32.gmra.mrb[0].mxu0 %v2547
    %v2549 = vpop.f32.mrb[0].mxu0
    %v2550 = vadd.f32 %v2387, %v2549
    %v2551 = vpop.f32.mrb[0].mxu0
    %2552 = vdwg.mxu0
    %s2553 = smul.u32 0, 128
    %v2554 = vlaneseq
    %v2555 = vshrl.u32 %v2554, 7
    %v2556 = vadd.s32 %v2555, 8
    %v2557 = vadd.s32 %v2555, 16
    %v2558 = vadd.s32 %v2555, 24
    %v2559 = vadd.s32 %v2555, 32
    %v2560 = vadd.s32 %v2555, 40
    %v2561 = vadd.s32 %v2555, 48
    %v2562 = vadd.s32 %v2555, 56
    %v2563 = vadd.s32 %v2555, 64
    %v2564 = vadd.s32 %v2555, 72
    %v2565 = vadd.s32 %v2555, 80
    %v2566 = vadd.s32 %v2555, 88
    %v2567 = vadd.s32 %v2555, 96
    %v2568 = vadd.s32 %v2555, 104
    %v2569 = vadd.s32 %v2555, 112
    %v2570 = vadd.s32 %v2555, 120
    %v2571 = vstv %s2553
    %v2572 = vadd.s32 %v2571, %v2555
    %v2573 = vadd.s32 %v2571, %v2556
    %v2574 = vadd.s32 %v2571, %v2557
    %v2575 = vadd.s32 %v2571, %v2558
    %v2576 = vadd.s32 %v2571, %v2559
    %v2577 = vadd.s32 %v2571, %v2560
    %v2578 = vadd.s32 %v2571, %v2561
    %v2579 = vadd.s32 %v2571, %v2562
    %v2580 = vadd.s32 %v2571, %v2563
    %v2581 = vadd.s32 %v2571, %v2564
    %v2582 = vadd.s32 %v2571, %v2565
    %v2583 = vadd.s32 %v2571, %v2566
    %v2584 = vadd.s32 %v2571, %v2567
    %v2585 = vadd.s32 %v2571, %v2568
    %v2586 = vadd.s32 %v2571, %v2569
    %v2587 = vadd.s32 %v2571, %v2570
    %vm2588 = vcmp.lt.s32.totalorder %v2572, 128
    %vm2589 = vcmp.lt.s32.totalorder %v2573, 128
    %vm2590 = vcmp.lt.s32.totalorder %v2574, 128
    %vm2591 = vcmp.lt.s32.totalorder %v2575, 128
    %vm2592 = vcmp.lt.s32.totalorder %v2576, 128
    %vm2593 = vcmp.lt.s32.totalorder %v2577, 128
    %vm2594 = vcmp.lt.s32.totalorder %v2578, 128
    %vm2595 = vcmp.lt.s32.totalorder %v2579, 128
    %vm2596 = vcmp.lt.s32.totalorder %v2580, 128
    %vm2597 = vcmp.lt.s32.totalorder %v2581, 128
    %vm2598 = vcmp.lt.s32.totalorder %v2582, 128
    %vm2599 = vcmp.lt.s32.totalorder %v2583, 128
    %vm2600 = vcmp.lt.s32.totalorder %v2584, 128
    %vm2601 = vcmp.lt.s32.totalorder %v2585, 128
    %vm2602 = vcmp.lt.s32.totalorder %v2586, 128
    %vm2603 = vcmp.lt.s32.totalorder %v2587, 128
    %v2604 = vsel %vm2588, 1, 0
    %v2605 = vsel %vm2589, 1, 0
    %v2606 = vsel %vm2590, 1, 0
    %v2607 = vsel %vm2591, 1, 0
    %v2608 = vsel %vm2592, 1, 0
    %v2609 = vsel %vm2593, 1, 0
    %v2610 = vsel %vm2594, 1, 0
    %v2611 = vsel %vm2595, 1, 0
    %v2612 = vsel %vm2596, 1, 0
    %v2613 = vsel %vm2597, 1, 0
    %v2614 = vsel %vm2598, 1, 0
    %v2615 = vsel %vm2599, 1, 0
    %v2616 = vsel %vm2600, 1, 0
    %v2617 = vsel %vm2601, 1, 0
    %v2618 = vsel %vm2602, 1, 0
    %v2619 = vsel %vm2603, 1, 0
    %v2620 = vcvt.s32.f32 %v2604
    %v2621 = vcvt.s32.f32 %v2605
    %v2622 = vcvt.s32.f32 %v2606
    %v2623 = vcvt.s32.f32 %v2607
    %v2624 = vcvt.s32.f32 %v2608
    %v2625 = vcvt.s32.f32 %v2609
    %v2626 = vcvt.s32.f32 %v2610
    %v2627 = vcvt.s32.f32 %v2611
    %v2628 = vcvt.s32.f32 %v2612
    %v2629 = vcvt.s32.f32 %v2613
    %v2630 = vcvt.s32.f32 %v2614
    %v2631 = vcvt.s32.f32 %v2615
    %v2632 = vcvt.s32.f32 %v2616
    %v2633 = vcvt.s32.f32 %v2617
    %v2634 = vcvt.s32.f32 %v2618
    %v2635 = vcvt.s32.f32 %v2619
    %v2636 = vmul.f32 %v1385, %v2620
    %v2637 = vmul.f32 %v1386, %v2621
    %v2638 = vmul.f32 %v1387, %v2622
    %v2639 = vmul.f32 %v1388, %v2623
    %v2640 = vmul.f32 %v1389, %v2624
    %v2641 = vmul.f32 %v1390, %v2625
    %v2642 = vmul.f32 %v1391, %v2626
    %v2643 = vmul.f32 %v1392, %v2627
    %v2644 = vmul.f32 %v1393, %v2628
    %v2645 = vmul.f32 %v1394, %v2629
    %v2646 = vmul.f32 %v1395, %v2630
    %v2647 = vmul.f32 %v1396, %v2631
    %v2648 = vmul.f32 %v1397, %v2632
    %v2649 = vmul.f32 %v1398, %v2633
    %v2650 = vmul.f32 %v1399, %v2634
    %v2651 = vmul.f32 %v1400, %v2635
    %v2652 = vsel %vm1302, %v2636, 0.0
    %v2653 = vsel %vm1302, %v2637, 0.0
    %v2654 = vadd.f32 %v2652, %v2653
    %v2655 = vsel %vm1302, %v2638, 0.0
    %v2656 = vadd.f32 %v2654, %v2655
    %v2657 = vsel %vm1302, %v2639, 0.0
    %v2658 = vadd.f32 %v2656, %v2657
    %v2659 = vsel %vm1302, %v2640, 0.0
    %v2660 = vadd.f32 %v2658, %v2659
    %v2661 = vsel %vm1302, %v2641, 0.0
    %v2662 = vadd.f32 %v2660, %v2661
    %v2663 = vsel %vm1302, %v2642, 0.0
    %v2664 = vadd.f32 %v2662, %v2663
    %v2665 = vsel %vm1302, %v2643, 0.0
    %v2666 = vadd.f32 %v2664, %v2665
    %v2667 = vsel %vm1302, %v2644, 0.0
    %v2668 = vadd.f32 %v2666, %v2667
    %v2669 = vsel %vm1302, %v2645, 0.0
    %v2670 = vadd.f32 %v2668, %v2669
    %v2671 = vsel %vm1302, %v2646, 0.0
    %v2672 = vadd.f32 %v2670, %v2671
    %v2673 = vsel %vm1302, %v2647, 0.0
    %v2674 = vadd.f32 %v2672, %v2673
    %v2675 = vsel %vm1302, %v2648, 0.0
    %v2676 = vadd.f32 %v2674, %v2675
    %v2677 = vsel %vm1302, %v2649, 0.0
    %v2678 = vadd.f32 %v2676, %v2677
    %v2679 = vsel %vm1302, %v2650, 0.0
    %v2680 = vadd.f32 %v2678, %v2679
    %v2681 = vsel %vm1302, %v2651, 0.0
    %v2682 = vadd.f32 %v2680, %v2681
    %v2683 = vrot.slane %v2682, 4
    %v2684 = vadd.f32 %v2682, %v2683
    %v2685 = vrot.slane %v2684, 2
    %v2686 = vadd.f32 %v2684, %v2685
    %v2687 = vrot.slane %v2686, 1
    %v2688 = vadd.f32 %v2686, %v2687
    %v2689 = vsub.f32 %v2460, %v24
    %v2690 = vsub.f32 %v2466, %v25
    %v2691 = vsub.f32 %v2472, %v26
    %v2692 = vsub.f32 %v2478, %v27
    %v2693 = vsub.f32 %v2484, %v28
    %v2694 = vsub.f32 %v2490, %v29
    %v2695 = vsub.f32 %v2496, %v30
    %v2696 = vsub.f32 %v2502, %v31
    %v2697 = vsub.f32 %v2508, %v32
    %v2698 = vsub.f32 %v2514, %v33
    %v2699 = vsub.f32 %v2520, %v34
    %v2700 = vsub.f32 %v2526, %v35
    %v2701 = vsub.f32 %v2532, %v36
    %v2702 = vsub.f32 %v2538, %v37
    %v2703 = vsub.f32 %v2544, %v38
    %v2704 = vsub.f32 %v2550, %v39
    %v2705 = vmul.f32 %v2689, %v2620
    %v2706 = vmul.f32 %v2690, %v2621
    %v2707 = vmul.f32 %v2691, %v2622
    %v2708 = vmul.f32 %v2692, %v2623
    %v2709 = vmul.f32 %v2693, %v2624
    %v2710 = vmul.f32 %v2694, %v2625
    %v2711 = vmul.f32 %v2695, %v2626
    %v2712 = vmul.f32 %v2696, %v2627
    %v2713 = vmul.f32 %v2697, %v2628
    %v2714 = vmul.f32 %v2698, %v2629
    %v2715 = vmul.f32 %v2699, %v2630
    %v2716 = vmul.f32 %v2700, %v2631
    %v2717 = vmul.f32 %v2701, %v2632
    %v2718 = vmul.f32 %v2702, %v2633
    %v2719 = vmul.f32 %v2703, %v2634
    %v2720 = vmul.f32 %v2704, %v2635
    %v2721 = vmul.f32 %v2705, %v2705
    %v2722 = vmul.f32 %v2706, %v2706
    %v2723 = vmul.f32 %v2707, %v2707
    %v2724 = vmul.f32 %v2708, %v2708
    %v2725 = vmul.f32 %v2709, %v2709
    %v2726 = vmul.f32 %v2710, %v2710
    %v2727 = vmul.f32 %v2711, %v2711
    %v2728 = vmul.f32 %v2712, %v2712
    %v2729 = vmul.f32 %v2713, %v2713
    %v2730 = vmul.f32 %v2714, %v2714
    %v2731 = vmul.f32 %v2715, %v2715
    %v2732 = vmul.f32 %v2716, %v2716
    %v2733 = vmul.f32 %v2717, %v2717
    %v2734 = vmul.f32 %v2718, %v2718
    %v2735 = vmul.f32 %v2719, %v2719
    %v2736 = vmul.f32 %v2720, %v2720
    %v2737 = vsel %vm60, %v2721, 0.0
    %v2738 = vsel %vm60, %v2722, 0.0
    %v2739 = vadd.f32 %v2737, %v2738
    %v2740 = vsel %vm60, %v2723, 0.0
    %v2741 = vadd.f32 %v2739, %v2740
    %v2742 = vsel %vm60, %v2724, 0.0
    %v2743 = vadd.f32 %v2741, %v2742
    %v2744 = vsel %vm60, %v2725, 0.0
    %v2745 = vadd.f32 %v2743, %v2744
    %v2746 = vsel %vm60, %v2726, 0.0
    %v2747 = vadd.f32 %v2745, %v2746
    %v2748 = vsel %vm60, %v2727, 0.0
    %v2749 = vadd.f32 %v2747, %v2748
    %v2750 = vsel %vm60, %v2728, 0.0
    %v2751 = vadd.f32 %v2749, %v2750
    %v2752 = vsel %vm60, %v2729, 0.0
    %v2753 = vadd.f32 %v2751, %v2752
    %v2754 = vsel %vm60, %v2730, 0.0
    %v2755 = vadd.f32 %v2753, %v2754
    %v2756 = vsel %vm60, %v2731, 0.0
    %v2757 = vadd.f32 %v2755, %v2756
    %v2758 = vsel %vm60, %v2732, 0.0
    %v2759 = vadd.f32 %v2757, %v2758
    %v2760 = vsel %vm60, %v2733, 0.0
    %v2761 = vadd.f32 %v2759, %v2760
    %v2762 = vsel %vm60, %v2734, 0.0
    %v2763 = vadd.f32 %v2761, %v2762
    %v2764 = vsel %vm60, %v2735, 0.0
    %v2765 = vadd.f32 %v2763, %v2764
    %v2766 = vsel %vm60, %v2736, 0.0
    %v2767 = vadd.f32 %v2765, %v2766
    %2768 = vadd.xlane.f32.xlu0 %v2767
    %v2769 = vpop.xlane.xlu0 %2768
    %v2770 = vrot.slane %v2769, 4
    %v2771 = vadd.f32 %v2769, %v2770
    %v2772 = vrot.slane %v2771, 2
    %v2773 = vadd.f32 %v2771, %v2772
    %v2774 = vrot.slane %v2773, 1
    %v2775 = vadd.f32 %v2773, %v2774
    %s2776 = vtos %v2775
    %2777 = vst.msk [vmem:[%s4] sm:$0xff] %vm1302, %v1286
    %2778 = vst.msk [vmem:[%s4 + $0x8] sm:$0xff] %vm1302, %v1287
    %2779 = vst.msk [vmem:[%s4 + $0x10] sm:$0xff] %vm1302, %v1288
    %2780 = vst.msk [vmem:[%s4 + $0x18] sm:$0xff] %vm1302, %v1289
    %2781 = vst.msk [vmem:[%s4 + $0x20] sm:$0xff] %vm1302, %v1290
    %2782 = vst.msk [vmem:[%s4 + $0x28] sm:$0xff] %vm1302, %v1291
    %2783 = vst.msk [vmem:[%s4 + $0x30] sm:$0xff] %vm1302, %v1292
    %2784 = vst.msk [vmem:[%s4 + $0x38] sm:$0xff] %vm1302, %v1293
    %2785 = vst.msk [vmem:[%s4 + $0x40] sm:$0xff] %vm1302, %v1294
    %2786 = vst.msk [vmem:[%s4 + $0x48] sm:$0xff] %vm1302, %v1295
    %2787 = vst.msk [vmem:[%s4 + $0x50] sm:$0xff] %vm1302, %v1296
    %2788 = vst.msk [vmem:[%s4 + $0x58] sm:$0xff] %vm1302, %v1297
    %2789 = vst.msk [vmem:[%s4 + $0x60] sm:$0xff] %vm1302, %v1298
    %2790 = vst.msk [vmem:[%s4 + $0x68] sm:$0xff] %vm1302, %v1299
    %2791 = vst.msk [vmem:[%s4 + $0x70] sm:$0xff] %vm1302, %v1300
    %2792 = vst.msk [vmem:[%s4 + $0x78] sm:$0xff] %vm1302, %v1301
    %2793 = vst.msk [vmem:[%s5] sm:$0xff] %vm1302, %v1385
    %2794 = vst.msk [vmem:[%s5 + $0x8] sm:$0xff] %vm1302, %v1386
    %2795 = vst.msk [vmem:[%s5 + $0x10] sm:$0xff] %vm1302, %v1387
    %2796 = vst.msk [vmem:[%s5 + $0x18] sm:$0xff] %vm1302, %v1388
    %2797 = vst.msk [vmem:[%s5 + $0x20] sm:$0xff] %vm1302, %v1389
    %2798 = vst.msk [vmem:[%s5 + $0x28] sm:$0xff] %vm1302, %v1390
    %2799 = vst.msk [vmem:[%s5 + $0x30] sm:$0xff] %vm1302, %v1391
    %2800 = vst.msk [vmem:[%s5 + $0x38] sm:$0xff] %vm1302, %v1392
    %2801 = vst.msk [vmem:[%s5 + $0x40] sm:$0xff] %vm1302, %v1393
    %2802 = vst.msk [vmem:[%s5 + $0x48] sm:$0xff] %vm1302, %v1394
    %2803 = vst.msk [vmem:[%s5 + $0x50] sm:$0xff] %vm1302, %v1395
    %2804 = vst.msk [vmem:[%s5 + $0x58] sm:$0xff] %vm1302, %v1396
    %2805 = vst.msk [vmem:[%s5 + $0x60] sm:$0xff] %vm1302, %v1397
    %2806 = vst.msk [vmem:[%s5 + $0x68] sm:$0xff] %vm1302, %v1398
    %2807 = vst.msk [vmem:[%s5 + $0x70] sm:$0xff] %vm1302, %v1399
    %2808 = vst.msk [vmem:[%s5 + $0x78] sm:$0xff] %vm1302, %v1400
    %2809 = vst.msk [vmem:[%s6] sm:$0xff] %vm60, %v2460
    %2810 = vst.msk [vmem:[%s6 + $0x8] sm:$0xff] %vm60, %v2466
    %2811 = vst.msk [vmem:[%s6 + $0x10] sm:$0xff] %vm60, %v2472
    %2812 = vst.msk [vmem:[%s6 + $0x18] sm:$0xff] %vm60, %v2478
    %2813 = vst.msk [vmem:[%s6 + $0x20] sm:$0xff] %vm60, %v2484
    %2814 = vst.msk [vmem:[%s6 + $0x28] sm:$0xff] %vm60, %v2490
    %2815 = vst.msk [vmem:[%s6 + $0x30] sm:$0xff] %vm60, %v2496
    %2816 = vst.msk [vmem:[%s6 + $0x38] sm:$0xff] %vm60, %v2502
    %2817 = vst.msk [vmem:[%s6 + $0x40] sm:$0xff] %vm60, %v2508
    %2818 = vst.msk [vmem:[%s6 + $0x48] sm:$0xff] %vm60, %v2514
    %2819 = vst.msk [vmem:[%s6 + $0x50] sm:$0xff] %vm60, %v2520
    %2820 = vst.msk [vmem:[%s6 + $0x58] sm:$0xff] %vm60, %v2526
    %2821 = vst.msk [vmem:[%s6 + $0x60] sm:$0xff] %vm60, %v2532
    %2822 = vst.msk [vmem:[%s6 + $0x68] sm:$0xff] %vm60, %v2538
    %2823 = vst.msk [vmem:[%s6 + $0x70] sm:$0xff] %vm60, %v2544
    %2824 = vst.msk [vmem:[%s6 + $0x78] sm:$0xff] %vm60, %v2550
    %v2825 = vlaneseq
    %v2826 = vshrl.u32 %v2825, 7
    %v2827 = vsub.s32 %v1352, %v2826
    %v2828 = vrot.slane %v1305, %v2827
    %v2829 = vadd.s32 %v1352, 4294967288
    %v2830 = vlaneseq
    %v2831 = vshrl.u32 %v2830, 7
    %v2832 = vsub.s32 %v2829, %v2831
    %v2833 = vrot.slane %v1308, %v2832
    %vm2834 = vcmask 130112
    %v2835 = vsel %vm2834, %v2833, %v2828
    %v2836 = vadd.s32 %v1352, 4294967280
    %v2837 = vlaneseq
    %v2838 = vshrl.u32 %v2837, 7
    %v2839 = vsub.s32 %v2836, %v2838
    %v2840 = vrot.slane %v1311, %v2839
    %vm2841 = vcmask 195712
    %v2842 = vsel %vm2841, %v2840, %v2835
    %v2843 = vadd.s32 %v1352, 4294967272
    %v2844 = vlaneseq
    %v2845 = vshrl.u32 %v2844, 7
    %v2846 = vsub.s32 %v2843, %v2845
    %v2847 = vrot.slane %v1314, %v2846
    %vm2848 = vcmask 261312
    %v2849 = vsel %vm2848, %v2847, %v2842
    %v2850 = vadd.s32 %v1352, 4294967264
    %v2851 = vlaneseq
    %v2852 = vshrl.u32 %v2851, 7
    %v2853 = vsub.s32 %v2850, %v2852
    %v2854 = vrot.slane %v1317, %v2853
    %vm2855 = vcmask 326912
    %v2856 = vsel %vm2855, %v2854, %v2849
    %v2857 = vadd.s32 %v1352, 4294967256
    %v2858 = vlaneseq
    %v2859 = vshrl.u32 %v2858, 7
    %v2860 = vsub.s32 %v2857, %v2859
    %v2861 = vrot.slane %v1320, %v2860
    %vm2862 = vcmask 392512
    %v2863 = vsel %vm2862, %v2861, %v2856
    %v2864 = vadd.s32 %v1352, 4294967248
    %v2865 = vlaneseq
    %v2866 = vshrl.u32 %v2865, 7
    %v2867 = vsub.s32 %v2864, %v2866
    %v2868 = vrot.slane %v1323, %v2867
    %vm2869 = vcmask 458112
    %v2870 = vsel %vm2869, %v2868, %v2863
    %v2871 = vadd.s32 %v1352, 4294967240
    %v2872 = vlaneseq
    %v2873 = vshrl.u32 %v2872, 7
    %v2874 = vsub.s32 %v2871, %v2873
    %v2875 = vrot.slane %v1326, %v2874
    %vm2876 = vcmask 523712
    %v2877 = vsel %vm2876, %v2875, %v2870
    %v2878 = vadd.s32 %v1352, 4294967232
    %v2879 = vlaneseq
    %v2880 = vshrl.u32 %v2879, 7
    %v2881 = vsub.s32 %v2878, %v2880
    %v2882 = vrot.slane %v1329, %v2881
    %vm2883 = vcmask 589312
    %v2884 = vsel %vm2883, %v2882, %v2877
    %v2885 = vadd.s32 %v1352, 4294967224
    %v2886 = vlaneseq
    %v2887 = vshrl.u32 %v2886, 7
    %v2888 = vsub.s32 %v2885, %v2887
    %v2889 = vrot.slane %v1332, %v2888
    %vm2890 = vcmask 654912
    %v2891 = vsel %vm2890, %v2889, %v2884
    %v2892 = vadd.s32 %v1352, 4294967216
    %v2893 = vlaneseq
    %v2894 = vshrl.u32 %v2893, 7
    %v2895 = vsub.s32 %v2892, %v2894
    %v2896 = vrot.slane %v1335, %v2895
    %vm2897 = vcmask 720512
    %v2898 = vsel %vm2897, %v2896, %v2891
    %v2899 = vadd.s32 %v1352, 4294967208
    %v2900 = vlaneseq
    %v2901 = vshrl.u32 %v2900, 7
    %v2902 = vsub.s32 %v2899, %v2901
    %v2903 = vrot.slane %v1338, %v2902
    %vm2904 = vcmask 786112
    %v2905 = vsel %vm2904, %v2903, %v2898
    %v2906 = vadd.s32 %v1352, 4294967200
    %v2907 = vlaneseq
    %v2908 = vshrl.u32 %v2907, 7
    %v2909 = vsub.s32 %v2906, %v2908
    %v2910 = vrot.slane %v1341, %v2909
    %vm2911 = vcmask 851712
    %v2912 = vsel %vm2911, %v2910, %v2905
    %v2913 = vadd.s32 %v1352, 4294967192
    %v2914 = vlaneseq
    %v2915 = vshrl.u32 %v2914, 7
    %v2916 = vsub.s32 %v2913, %v2915
    %v2917 = vrot.slane %v1344, %v2916
    %vm2918 = vcmask 917312
    %v2919 = vsel %vm2918, %v2917, %v2912
    %v2920 = vadd.s32 %v1352, 4294967184
    %v2921 = vlaneseq
    %v2922 = vshrl.u32 %v2921, 7
    %v2923 = vsub.s32 %v2920, %v2922
    %v2924 = vrot.slane %v1347, %v2923
    %vm2925 = vcmask 982912
    %v2926 = vsel %vm2925, %v2924, %v2919
    %v2927 = vadd.s32 %v1352, 4294967176
    %v2928 = vlaneseq
    %v2929 = vshrl.u32 %v2928, 7
    %v2930 = vsub.s32 %v2927, %v2929
    %v2931 = vrot.slane %v1350, %v2930
    %vm2932 = vcmask 1048512
    %v2933 = vsel %vm2932, %v2931, %v2926
    %2934 = vst [vmem:[#allocation2] sm:$0x1] %v2933
    %vm2935 = vcmask 122880
    %2936 = vst.msk [vmem:[%s8] sm:$0x1] %vm2935, %v2688
    %v2937 = vstv %s2776
    %2938 = vst [vmem:[%s9] sm:$0x1] %v2937
    // Predicated region
    $region18: #{vq_forward.1} parent=1 // pred_check
      _
    $region19: #{vq_forward.1} parent=1 // pred_check_branch
      %2940 = sbr.rel (0) target = $region21
    $region20: #{vq_forward.1} parent=1 // pred_region
      _
    $region21: #{vq_forward.1} parent=1 // pred_fallthru
      _
    // Predicated region
    $region22: #{vq_forward.1} parent=1 // pred_check
      _
    $region23: #{vq_forward.1} parent=1 // pred_check_branch
      %2942 = sbr.rel (0) target = $region25
    $region24: #{vq_forward.1} parent=1 // pred_region
      _
    $region25: #{vq_forward.1} parent=1 // pred_fallthru
      _
    // Predicated region
    $region26: #{vq_forward.1} parent=1 // pred_check
      _
    $region27: #{vq_forward.1} parent=1 // pred_check_branch
      %2944 = sbr.rel (0) target = $region29
    $region28: #{vq_forward.1} parent=1 // pred_region
      _
    $region29: #{vq_forward.1} parent=1 // pred_fallthru
      _
    // Predicated region
    $region30: #{vq_forward.1} parent=1 // pred_check
      _
    $region31: #{vq_forward.1} parent=1 // pred_check_branch
      %2946 = sbr.rel (0) target = $region33
    $region32: #{vq_forward.1} parent=1 // pred_region
      %s2948 = ssub.s32 16, 16
      %2949 = vsyncadd [#allocation3], %s2948
      %s2951 = sshll.u32 [#allocation2], 4
      %s2952 = int_to_ptr.vmem [resolvable:$true] %s2951
      %2954 = dma.vmem_to_hbm [thread:$0]  %s2952, 16, %s7, [#allocation3]
    $region33: #{vq_forward.1} parent=1 // pred_fallthru
      _
    // Predicated region
    $region34: #{vq_forward.1} parent=1 // pred_check
      _
    $region35: #{vq_forward.1} parent=1 // pred_check_branch
      %2956 = sbr.rel (0) target = $region37
    $region36: #{vq_forward.1} parent=1 // pred_region
      _
    $region37: #{vq_forward.1} parent=1 // pred_fallthru
      _
    // Predicated region
    $region38: #{vq_forward.1} parent=1 // pred_check
      _
    $region39: #{vq_forward.1} parent=1 // pred_check_branch
      %2958 = sbr.rel (0) target = $region41
    $region40: #{vq_forward.1} parent=1 // pred_region
      _
    $region41: #{vq_forward.1} parent=1 // pred_fallthru
      _
    // Predicated region
    $region42: #{vq_forward.1} parent=1 // pred_check
      _
    $region43: #{vq_forward.1} parent=1 // pred_check_branch
      %2960 = sbr.rel (0) target = $region45
    $region44: #{vq_forward.1} parent=1 // pred_region
      _
    $region45: #{vq_forward.1} parent=1 // pred_fallthru
      _
    // Predicated region
    $region46: #{vq_forward.1} parent=1 // pred_check
      _
    $region47: #{vq_forward.1} parent=1 // pred_check_branch
      %2962 = sbr.rel (0) target = $region49
    $region48: #{vq_forward.1} parent=1 // pred_region
      _
    $region49: #{vq_forward.1} parent=1 // pred_fallthru
      _
    // Predicated region
    $region50: #{vq_forward.1} parent=1 // pred_check
      _
    $region51: #{vq_forward.1} parent=1 // pred_check_branch
      %2964 = sbr.rel (0) target = $region53
    $region52: #{vq_forward.1} parent=1 // pred_region
      _
    $region53: #{vq_forward.1} parent=1 // pred_fallthru
      _
    // Predicated region
    $region54: #{vq_forward.1} parent=1 // pred_check
      _
    $region55: #{vq_forward.1} parent=1 // pred_check_branch
      %2966 = sbr.rel (0) target = $region57
    $region56: #{vq_forward.1} parent=1 // pred_region
      %2967 = dma.done [#allocation3], 16
    $region57: #{vq_forward.1} parent=1 // pred_fallthru
      _
    // Predicated region
    $region58: #{vq_forward.1} parent=1 // pred_check
      _
    $region59: #{vq_forward.1} parent=1 // pred_check_branch
      %2969 = sbr.rel (0) target = $region61
    $region60: #{vq_forward.1} parent=1 // pred_region
      _
    $region61: #{vq_forward.1} parent=1 // pred_fallthru
      _
    // Predicated region
    $region62: #{vq_forward.1} parent=1 // pred_check
      _
    $region63: #{vq_forward.1} parent=1 // pred_check_branch
      %2971 = sbr.rel (0) target = $region65
    $region64: #{vq_forward.1} parent=1 // pred_region
      _
    $region65: #{vq_forward.1} parent=1 // pred_fallthru
      _
    %2972 = vsyncpa [#allocation3], 1

</llo_original>
